<compile_context>
chip_gen: v6e
topology: v6e:2x2x1
jax: 0.10.0
libtpu: 0.0.40
codegen_flags: <defaults>
</compile_context>

<pallas_src>
import functools

import jax
import jax.numpy as jnp
import numpy as np
from jax import lax
from jax.experimental import pallas as pl
from jax.experimental.pallas import tpu as pltpu

KSIZE = 4
STRIDE = 2
PAD = 1
SLOPE = 0.2
BN_EPS = 1e-5


def _round_up(x, m):
    return ((x + m - 1) // m) * m


@functools.lru_cache(maxsize=None)
def _vmem_budget():
    """Returns (working-set budget, explicit scoped-VMEM limit) in bytes."""
    try:
        cap = pltpu.get_tpu_info().vmem_capacity_bytes
    except Exception:  # conservative fallback sized for v7x (64 MiB physical)
        cap = 64 * 1024 * 1024
    limit = min((cap * 3) // 4, 100 * 1024 * 1024)
    return (limit * 3) // 4, limit


def _pick_tm(m, k, cout):
    """Largest M tile whose double-buffered working set fits the VMEM budget."""
    budget, _ = _vmem_budget()
    # Resident: bf16 weight (double-buffered) + stat buffers + slack.
    fixed = 4 * k * cout + 256 * cout + (256 << 10)
    # Per M-row: bf16 patches + bf16 out (double-buffered) + f32 accumulator.
    per_row = 4 * k + 4 * cout + 4 * cout
    tm = (budget - fixed) // max(per_row, 1)
    tm = max(8, min(16384, (tm // 8) * 8))
    return min(tm, _round_up(m, 8))


def _compiler_params(semantics):
    _, limit = _vmem_budget()
    return pltpu.CompilerParams(dimension_semantics=semantics,
                                vmem_limit_bytes=limit)


# ---------------------------------------------------------------------------
# Pallas kernels
# ---------------------------------------------------------------------------
def _conv_act_kernel(p_ref, w_ref, o_ref, *, act):
    # Conv-as-matmul + activation; f32 accumulate, bf16 writeback.
    acc = jnp.dot(p_ref[...], w_ref[...], preferred_element_type=jnp.float32)
    if act == "lrelu":
        y = jnp.where(acc > 0, acc, SLOPE * acc)
    else:  # "sigmoid"
        y = jax.nn.sigmoid(acc)
    o_ref[...] = y.astype(o_ref.dtype)


def _conv_stats_kernel(p_ref, w_ref, o_ref, sum_ref, ssq_ref):
    # BN layers: raw conv output (bf16) + per-channel sum / sumsq partials
    # accumulated across the (arbitrary) inner grid axis.  The partials are
    # kept as (8, Cout) sublane groups (no in-kernel cross-sublane reduce);
    # the tiny final reduction happens in the JAX glue.
    @pl.when(pl.program_id(1) == 0)
    def _():
        sum_ref[...] = jnp.zeros_like(sum_ref)
        ssq_ref[...] = jnp.zeros_like(ssq_ref)

    acc = jnp.dot(p_ref[...], w_ref[...], preferred_element_type=jnp.float32)
    o_ref[...] = acc.astype(o_ref.dtype)

    tm, cout = acc.shape
    g = acc.reshape(tm // 8, 8, cout)
    sum_ref[...] += jnp.sum(g, axis=0)
    ssq_ref[...] += jnp.sum(g * g, axis=0)


# ---------------------------------------------------------------------------
# pallas_call wrappers (M-tiled, weight resident across the M axis)
# ---------------------------------------------------------------------------
def _conv_act_call(patches, w_mat, act, tm):
    mp, k = patches.shape
    cout = w_mat.shape[1]
    return pl.pallas_call(
        functools.partial(_conv_act_kernel, act=act),
        out_shape=jax.ShapeDtypeStruct((mp, cout), jnp.bfloat16),
        grid_spec=pltpu.PrefetchScalarGridSpec(
            num_scalar_prefetch=0,
            grid=(mp // tm,),
            in_specs=[
                pl.BlockSpec((tm, k), lambda i: (i, 0)),
                pl.BlockSpec((k, cout), lambda i: (0, 0)),
            ],
            out_specs=pl.BlockSpec((tm, cout), lambda i: (i, 0)),
        ),
        compiler_params=_compiler_params(("parallel",)),
    )(patches, w_mat)


def _conv_stats_call(patches, w_mat, tm, nsplit):
    mp, k = patches.shape
    cout = w_mat.shape[1]
    nblk = mp // tm
    inner = nblk // nsplit
    return pl.pallas_call(
        _conv_stats_kernel,
        out_shape=(
            jax.ShapeDtypeStruct((mp, cout), jnp.bfloat16),
            jax.ShapeDtypeStruct((nsplit * 8, cout), jnp.float32),
            jax.ShapeDtypeStruct((nsplit * 8, cout), jnp.float32),
        ),
        grid_spec=pltpu.PrefetchScalarGridSpec(
            num_scalar_prefetch=0,
            # Leading "parallel" axis -> v7x megacore sharding of the stats
            # pass; on 1-TC chips it is just a loop split.
            grid=(nsplit, inner),
            in_specs=[
                pl.BlockSpec((tm, k), lambda c, i: (c * inner + i, 0)),
                pl.BlockSpec((k, cout), lambda c, i: (0, 0)),
            ],
            out_specs=[
                pl.BlockSpec((tm, cout), lambda c, i: (c * inner + i, 0)),
                pl.BlockSpec((8, cout), lambda c, i: (c, 0)),
                pl.BlockSpec((8, cout), lambda c, i: (c, 0)),
            ],
        ),
        compiler_params=_compiler_params(("parallel", "arbitrary")),
    )(patches, w_mat)


# ---------------------------------------------------------------------------
# JAX glue: im2col (with fused pending BN+LeakyReLU), layer driver, init
# ---------------------------------------------------------------------------
def im2col(x_nhwc, pending=None):
    """Optionally applies the previous BN layer's scale/shift + LeakyReLU
    (fused into this producer -> no extra HBM pass), then zero-pads and
    gathers 4x4/stride-2 patches as bf16 (N*Ho*Wo, 16*C)."""
    x = x_nhwc
    if pending is not None:
        scale, shift = pending
        xf = x.astype(jnp.float32) * scale + shift
        x = jnp.where(xf > 0, xf, SLOPE * xf)
    x = x.astype(jnp.bfloat16)
    n, h, w, c = x.shape
    xp = jnp.pad(x, ((0, 0), (PAD, PAD), (PAD, PAD), (0, 0)))
    ho = (h + 2 * PAD - KSIZE) // STRIDE + 1
    wo = (w + 2 * PAD - KSIZE) // STRIDE + 1
    cols = []
    for i in range(KSIZE):
        for j in range(KSIZE):
            cols.append(
                xp[:, i : i + STRIDE * ho : STRIDE, j : j + STRIDE * wo : STRIDE, :]
            )
    p = jnp.stack(cols, axis=3)  # (N, Ho, Wo, 16, C); tap index = i*KSIZE + j
    return p.reshape(n * ho * wo, KSIZE * KSIZE * c), ho, wo


def conv_layer(x_nhwc, w_oihw, mode, gamma=None, beta=None, pending=None):
    """One CBR2d layer.  `pending` is (scale, shift) from the previous BN
    layer, applied inside this layer's im2col producer.  Returns (out_nhwc,
    new_pending) where new_pending is this layer's (scale, shift) if it has
    BatchNorm (its output is the raw conv result)."""
    n = x_nhwc.shape[0]
    cout = w_oihw.shape[0]
    patches, ho, wo = im2col(x_nhwc, pending)
    m, k = patches.shape

    # (Cout, Cin, kh, kw) -> (kh*kw*Cin, Cout), matching the im2col tap order.
    w_mat = jnp.transpose(w_oihw, (2, 3, 1, 0)).reshape(k, cout).astype(jnp.bfloat16)

    tm = _pick_tm(m, k, cout)
    nblk = -(-m // tm)
    if mode == "bn":
        nsplit = 2 if nblk >= 2 else 1
        nblk = _round_up(nblk, nsplit)
    else:
        nsplit = 1
    m_pad = nblk * tm
    if m_pad != m:
        # Zero patch rows are exact under the matmul -> contribute nothing to
        # the BN sums (we divide by the true m below).
        patches = jnp.pad(patches, ((0, m_pad - m), (0, 0)))

    if mode == "bn":
        y, psum, pssq = _conv_stats_call(patches, w_mat, tm, nsplit)
        csum = jnp.sum(psum, axis=0)
        cssq = jnp.sum(pssq, axis=0)
        # Training-mode (biased) batch statistics, as in PyTorch .train().
        mean = csum / m
        # TODO(synk): shifted/Welford form if used at very large M.
        var = jnp.maximum(cssq / m - mean * mean, 0.0)
        scale = (gamma * lax.rsqrt(var + BN_EPS)).astype(jnp.float32)
        shift = (beta - mean * scale).astype(jnp.float32)
        out2d = y
        new_pending = (scale, shift)   # consumed by the next layer's im2col
    elif mode in ("lrelu", "sigmoid"):
        out2d = _conv_act_call(patches, w_mat, mode, tm)
        new_pending = None
    else:
        raise ValueError(mode)

    return out2d[:m].reshape(n, ho, wo, cout), new_pending


def init_params(key, in_channels, out_channels, nker):
    """Deterministic init matching BaseNetwork.init_weights('normal', 0.02)."""
    chans = [in_channels, nker, 2 * nker, 4 * nker, 8 * nker, out_channels]
    params = []
    for li in range(5):
        key, kw, kg = jax.random.split(key, 3)
        cin, cout = chans[li], chans[li + 1]
        w = 0.02 * jax.random.normal(kw, (cout, cin, KSIZE, KSIZE), jnp.float32)
        if li in (1, 2, 3):  # enc2..enc4 have BatchNorm
            gamma = 1.0 + 0.02 * jax.random.normal(kg, (cout,), jnp.float32)
            beta = jnp.zeros((cout,), jnp.float32)
        else:
            gamma, beta = None, None
        params.append((w, gamma, beta))
    return params


def _forward_impl(x_nchw, params):
    """Full FaceDis forward. Input NCHW (PyTorch convention), output NCHW."""
    x = jnp.transpose(x_nchw, (0, 2, 3, 1))  # -> NHWC
    modes = ["lrelu", "bn", "bn", "bn", "sigmoid"]
    pending = None
    for (w, gamma, beta), mode in zip(params, modes):
        x, pending = conv_layer(x, w, mode, gamma, beta, pending)
    return jnp.transpose(x, (0, 3, 1, 2)).astype(jnp.float32)  # NHWC -> NCHW


face_dis_forward = jax.jit(_forward_impl)


# ---------------------------------------------------------------------------
# Pure-JAX f32 reference (silent correctness check)
# ---------------------------------------------------------------------------
def _ref_forward(x_nchw, params):
    x = jnp.transpose(x_nchw, (0, 2, 3, 1)).astype(jnp.float32)
    modes = ["lrelu", "bn", "bn", "bn", "sigmoid"]
    for (w, gamma, beta), mode in zip(params, modes):
        w_hwio = jnp.transpose(w, (2, 3, 1, 0))
        x = lax.conv_general_dilated(
            x, w_hwio, (STRIDE, STRIDE), ((PAD, PAD), (PAD, PAD)),
            dimension_numbers=("NHWC", "HWIO", "NHWC"),
        )
        if mode == "bn":
            mean = jnp.mean(x, axis=(0, 1, 2), keepdims=True)
            var = jnp.mean((x - mean) ** 2, axis=(0, 1, 2), keepdims=True)
            x = (x - mean) * lax.rsqrt(var + BN_EPS) * gamma + beta
            x = jnp.where(x > 0, x, SLOPE * x)
        elif mode == "lrelu":
            x = jnp.where(x > 0, x, SLOPE * x)
        else:
            x = jax.nn.sigmoid(x)
    return jnp.transpose(x, (0, 3, 1, 2))


if __name__ == "__main__":
    # Small shapes: 5 stride-2 convs need spatial >= 32 to reach 1x1.
    N, IN_CH, H, W = 2, 3, 32, 32
    NKER, OUT_CH = 8, 1

    _vmem_budget()  # query device VMEM once, outside any trace

    key = jax.random.PRNGKey(0)
    key, kx = jax.random.split(key)
    x = jax.random.normal(kx, (N, IN_CH, H, W), jnp.float32)
    params = init_params(key, IN_CH, OUT_CH, NKER)

    out = face_dis_forward(x, params)
    out = jax.block_until_ready(out)
    assert out.shape == (N, OUT_CH, 1, 1), out.shape

    ref = jax.block_until_ready(_ref_forward(x, params))
    # bf16 matmul operands / bf16 intermediates (f32 accumulation and BN math)
    # vs the all-f32 reference.
    np.testing.assert_allclose(np.asarray(out), np.asarray(ref), rtol=2e-2, atol=2e-2)

    print("KERNEL_OK")
</pallas_src>

<mosaic_0001>
module attributes {stable_mosaic.version = 11 : i64} {
  func.func @_conv_act_kernel(%arg0: i32, %arg1: memref<512x48xbf16, #tpu.memory_space<vmem>>, %arg2: memref<48x8xbf16, #tpu.memory_space<vmem>>, %arg3: memref<512x8xbf16, #tpu.memory_space<vmem>>) attributes {dimension_semantics = [#tpu.dimension_semantics<parallel>], iteration_bounds = array<i64: 1>, scalar_prefetch = 0 : i64, scratch_operands = 0 : i64, tpu.core_type = #tpu.core_type<tc>, window_params = [{transform_indices = @transform_0, window_bounds = array<i64: 512, 48>}, {pipeline_mode = #tpu.pipeline_mode<synchronous>, transform_indices = @transform_1, window_bounds = array<i64: 48, 8>}, {transform_indices = @transform_2, window_bounds = array<i64: 512, 8>}]} {
    %c0 = arith.constant 0 : index
    %c0_0 = arith.constant 0 : index
    %0 = vector.load %arg1[%c0, %c0_0] : memref<512x48xbf16, #tpu.memory_space<vmem>>, vector<512x48xbf16>
    %c0_1 = arith.constant 0 : index
    %c0_2 = arith.constant 0 : index
    %1 = vector.load %arg2[%c0_1, %c0_2] : memref<48x8xbf16, #tpu.memory_space<vmem>>, vector<48x8xbf16>
    %cst = arith.constant dense<0.000000e+00> : vector<512x8xf32>
    %2 = tpu.matmul %0, %1, %cst {dimension_numbers = #tpu.dot_dimension_numbers<[1], [0], [0], [1], [0, 0, 1, 1], [], []>} : vector<512x48xbf16>, vector<48x8xbf16>, vector<512x8xf32> -> vector<512x8xf32>
    %cst_3 = arith.constant 0.000000e+00 : f32
    %3 = vector.broadcast %cst_3 : f32 to vector<512x8xf32>
    %4 = arith.cmpf ogt, %2, %3 : vector<512x8xf32>
    %cst_4 = arith.constant 2.000000e-01 : f32
    %5 = vector.broadcast %cst_4 : f32 to vector<512x8xf32>
    %6 = arith.mulf %5, %2 : vector<512x8xf32>
    %7 = arith.select %4, %2, %6 : vector<512x8xi1>, vector<512x8xf32>
    %8 = arith.truncf %7 : vector<512x8xf32> to vector<512x8xbf16>
    %c0_5 = arith.constant 0 : index
    %c0_6 = arith.constant 0 : index
    %9 = vector.load %arg3[%c0_5, %c0_6] : memref<512x8xbf16, #tpu.memory_space<vmem>>, vector<512x8xbf16>
    tpu.vector_store %arg3[%c0_5, %c0_6], %8 {strides = array<i32>} : memref<512x8xbf16, #tpu.memory_space<vmem>>, vector<512x8xbf16>,
    return
  }
  func.func @transform_0(%arg0: i32) -> (i32, i32) {
    %c0_i32 = arith.constant 0 : i32
    %c0_i32_0 = arith.constant 0 : i32
    return %arg0, %c0_i32 : i32, i32
  }
  func.func @transform_1(%arg0: i32) -> (i32, i32) {
    %c0_i32 = arith.constant 0 : i32
    %c0_i32_0 = arith.constant 0 : i32
    %c0_i32_1 = arith.constant 0 : i32
    return %c0_i32, %c0_i32_0 : i32, i32
  }
  func.func @transform_2(%arg0: i32) -> (i32, i32) {
    %c0_i32 = arith.constant 0 : i32
    %c0_i32_0 = arith.constant 0 : i32
    return %arg0, %c0_i32 : i32, i32
  }
}

module attributes {stable_mosaic.version = 11 : i64} {
  func.func @_conv_stats_kernel(%arg0: i32, %arg1: i32, %arg2: memref<128x128xbf16, #tpu.memory_space<vmem>>, %arg3: memref<128x16xbf16, #tpu.memory_space<vmem>>, %arg4: memref<128x16xbf16, #tpu.memory_space<vmem>>, %arg5: memref<8x16xf32, #tpu.memory_space<vmem>>, %arg6: memref<8x16xf32, #tpu.memory_space<vmem>>) attributes {dimension_semantics = [#tpu.dimension_semantics<parallel>, #tpu.dimension_semantics<arbitrary>], iteration_bounds = array<i64: 1, 1>, scalar_prefetch = 0 : i64, scratch_operands = 0 : i64, tpu.core_type = #tpu.core_type<tc>, window_params = [{transform_indices = @transform_0, window_bounds = array<i64: 128, 128>}, {pipeline_mode = #tpu.pipeline_mode<synchronous>, transform_indices = @transform_1, window_bounds = array<i64: 128, 16>}, {transform_indices = @transform_2, window_bounds = array<i64: 128, 16>}, {transform_indices = @transform_3, window_bounds = array<i64: 8, 16>}, {transform_indices = @transform_4, window_bounds = array<i64: 8, 16>}]} {
    %c0_i32 = arith.constant 0 : i32
    %0 = arith.cmpi eq, %arg1, %c0_i32 : i32
    %1 = arith.extui %0 : i1 to i32
    %c0_i32_0 = arith.constant 0 : i32
    %2 = arith.cmpi ne, %1, %c0_i32_0 : i32
    scf.if %2 {
      %cst_16 = arith.constant 0.000000e+00 : f32
      %18 = vector.broadcast %cst_16 : f32 to vector<8x16xf32>
      %c0_17 = arith.constant 0 : index
      %c0_18 = arith.constant 0 : index
      %19 = vector.load %arg5[%c0_17, %c0_18] : memref<8x16xf32, #tpu.memory_space<vmem>>, vector<8x16xf32>
      tpu.vector_store %arg5[%c0_17, %c0_18], %18 {strides = array<i32>} : memref<8x16xf32, #tpu.memory_space<vmem>>, vector<8x16xf32>,
      %cst_19 = arith.constant 0.000000e+00 : f32
      %20 = vector.broadcast %cst_19 : f32 to vector<8x16xf32>
      %c0_20 = arith.constant 0 : index
      %c0_21 = arith.constant 0 : index
      %21 = vector.load %arg6[%c0_20, %c0_21] : memref<8x16xf32, #tpu.memory_space<vmem>>, vector<8x16xf32>
      tpu.vector_store %arg6[%c0_20, %c0_21], %20 {strides = array<i32>} : memref<8x16xf32, #tpu.memory_space<vmem>>, vector<8x16xf32>,
    } else {
    }
    %c0 = arith.constant 0 : index
    %c0_1 = arith.constant 0 : index
    %3 = vector.load %arg2[%c0, %c0_1] : memref<128x128xbf16, #tpu.memory_space<vmem>>, vector<128x128xbf16>
    %c0_2 = arith.constant 0 : index
    %c0_3 = arith.constant 0 : index
    %4 = vector.load %arg3[%c0_2, %c0_3] : memref<128x16xbf16, #tpu.memory_space<vmem>>, vector<128x16xbf16>
    %cst = arith.constant dense<0.000000e+00> : vector<128x16xf32>
    %5 = tpu.matmul %3, %4, %cst {dimension_numbers = #tpu.dot_dimension_numbers<[1], [0], [0], [1], [0, 0, 1, 1], [], []>} : vector<128x128xbf16>, vector<128x16xbf16>, vector<128x16xf32> -> vector<128x16xf32>
    %6 = arith.truncf %5 : vector<128x16xf32> to vector<128x16xbf16>
    %c0_4 = arith.constant 0 : index
    %c0_5 = arith.constant 0 : index
    %7 = vector.load %arg4[%c0_4, %c0_5] : memref<128x16xbf16, #tpu.memory_space<vmem>>, vector<128x16xbf16>
    tpu.vector_store %arg4[%c0_4, %c0_5], %6 {strides = array<i32>} : memref<128x16xbf16, #tpu.memory_space<vmem>>, vector<128x16xbf16>,
    %8 = vector.shape_cast %5 : vector<128x16xf32> to vector<16x8x16xf32>
    %c0_6 = arith.constant 0 : index
    %c0_7 = arith.constant 0 : index
    %9 = vector.load %arg5[%c0_6, %c0_7] : memref<8x16xf32, #tpu.memory_space<vmem>>, vector<8x16xf32>
    %cst_8 = arith.constant dense<0.000000e+00> : vector<8x16xf32>
    %10 = vector.multi_reduction <add>, %8, %cst_8 [0] : vector<16x8x16xf32> to vector<8x16xf32>
    %11 = arith.addf %9, %10 : vector<8x16xf32>
    %c0_9 = arith.constant 0 : index
    %c0_10 = arith.constant 0 : index
    %12 = vector.load %arg5[%c0_9, %c0_10] : memref<8x16xf32, #tpu.memory_space<vmem>>, vector<8x16xf32>
    tpu.vector_store %arg5[%c0_9, %c0_10], %11 {strides = array<i32>} : memref<8x16xf32, #tpu.memory_space<vmem>>, vector<8x16xf32>,
    %c0_11 = arith.constant 0 : index
    %c0_12 = arith.constant 0 : index
    %13 = vector.load %arg6[%c0_11, %c0_12] : memref<8x16xf32, #tpu.memory_space<vmem>>, vector<8x16xf32>
    %14 = arith.mulf %8, %8 : vector<16x8x16xf32>
    %cst_13 = arith.constant dense<0.000000e+00> : vector<8x16xf32>
    %15 = vector.multi_reduction <add>, %14, %cst_13 [0] : vector<16x8x16xf32> to vector<8x16xf32>
    %16 = arith.addf %13, %15 : vector<8x16xf32>
    %c0_14 = arith.constant 0 : index
    %c0_15 = arith.constant 0 : index
    %17 = vector.load %arg6[%c0_14, %c0_15] : memref<8x16xf32, #tpu.memory_space<vmem>>, vector<8x16xf32>
    tpu.vector_store %arg6[%c0_14, %c0_15], %16 {strides = array<i32>} : memref<8x16xf32, #tpu.memory_space<vmem>>, vector<8x16xf32>,
    return
  }
  func.func @transform_0(%arg0: i32, %arg1: i32) -> (i32, i32) {
    %c1_i32 = arith.constant 1 : i32
    %0 = arith.muli %arg0, %c1_i32 : i32
    %1 = arith.addi %0, %arg1 : i32
    %c0_i32 = arith.constant 0 : i32
    %c0_i32_0 = arith.constant 0 : i32
    return %1, %c0_i32 : i32, i32
  }
  func.func @transform_1(%arg0: i32, %arg1: i32) -> (i32, i32) {
    %c0_i32 = arith.constant 0 : i32
    %c0_i32_0 = arith.constant 0 : i32
    %c0_i32_1 = arith.constant 0 : i32
    return %c0_i32, %c0_i32_0 : i32, i32
  }
  func.func @transform_2(%arg0: i32, %arg1: i32) -> (i32, i32) {
    %c1_i32 = arith.constant 1 : i32
    %0 = arith.muli %arg0, %c1_i32 : i32
    %1 = arith.addi %0, %arg1 : i32
    %c0_i32 = arith.constant 0 : i32
    %c0_i32_0 = arith.constant 0 : i32
    return %1, %c0_i32 : i32, i32
  }
  func.func @transform_3(%arg0: i32, %arg1: i32) -> (i32, i32) {
    %c0_i32 = arith.constant 0 : i32
    %c0_i32_0 = arith.constant 0 : i32
    return %arg0, %c0_i32 : i32, i32
  }
  func.func @transform_4(%arg0: i32, %arg1: i32) -> (i32, i32) {
    %c0_i32 = arith.constant 0 : i32
    %c0_i32_0 = arith.constant 0 : i32
    return %arg0, %c0_i32 : i32, i32
  }
}

module attributes {stable_mosaic.version = 11 : i64} {
  func.func @_conv_stats_kernel(%arg0: i32, %arg1: i32, %arg2: memref<32x256xbf16, #tpu.memory_space<vmem>>, %arg3: memref<256x32xbf16, #tpu.memory_space<vmem>>, %arg4: memref<32x32xbf16, #tpu.memory_space<vmem>>, %arg5: memref<8x32xf32, #tpu.memory_space<vmem>>, %arg6: memref<8x32xf32, #tpu.memory_space<vmem>>) attributes {dimension_semantics = [#tpu.dimension_semantics<parallel>, #tpu.dimension_semantics<arbitrary>], iteration_bounds = array<i64: 1, 1>, scalar_prefetch = 0 : i64, scratch_operands = 0 : i64, tpu.core_type = #tpu.core_type<tc>, window_params = [{transform_indices = @transform_0, window_bounds = array<i64: 32, 256>}, {pipeline_mode = #tpu.pipeline_mode<synchronous>, transform_indices = @transform_1, window_bounds = array<i64: 256, 32>}, {transform_indices = @transform_2, window_bounds = array<i64: 32, 32>}, {transform_indices = @transform_3, window_bounds = array<i64: 8, 32>}, {transform_indices = @transform_4, window_bounds = array<i64: 8, 32>}]} {
    %c0_i32 = arith.constant 0 : i32
    %0 = arith.cmpi eq, %arg1, %c0_i32 : i32
    %1 = arith.extui %0 : i1 to i32
    %c0_i32_0 = arith.constant 0 : i32
    %2 = arith.cmpi ne, %1, %c0_i32_0 : i32
    scf.if %2 {
      %cst_16 = arith.constant 0.000000e+00 : f32
      %18 = vector.broadcast %cst_16 : f32 to vector<8x32xf32>
      %c0_17 = arith.constant 0 : index
      %c0_18 = arith.constant 0 : index
      %19 = vector.load %arg5[%c0_17, %c0_18] : memref<8x32xf32, #tpu.memory_space<vmem>>, vector<8x32xf32>
      tpu.vector_store %arg5[%c0_17, %c0_18], %18 {strides = array<i32>} : memref<8x32xf32, #tpu.memory_space<vmem>>, vector<8x32xf32>,
      %cst_19 = arith.constant 0.000000e+00 : f32
      %20 = vector.broadcast %cst_19 : f32 to vector<8x32xf32>
      %c0_20 = arith.constant 0 : index
      %c0_21 = arith.constant 0 : index
      %21 = vector.load %arg6[%c0_20, %c0_21] : memref<8x32xf32, #tpu.memory_space<vmem>>, vector<8x32xf32>
      tpu.vector_store %arg6[%c0_20, %c0_21], %20 {strides = array<i32>} : memref<8x32xf32, #tpu.memory_space<vmem>>, vector<8x32xf32>,
    } else {
    }
    %c0 = arith.constant 0 : index
    %c0_1 = arith.constant 0 : index
    %3 = vector.load %arg2[%c0, %c0_1] : memref<32x256xbf16, #tpu.memory_space<vmem>>, vector<32x256xbf16>
    %c0_2 = arith.constant 0 : index
    %c0_3 = arith.constant 0 : index
    %4 = vector.load %arg3[%c0_2, %c0_3] : memref<256x32xbf16, #tpu.memory_space<vmem>>, vector<256x32xbf16>
    %cst = arith.constant dense<0.000000e+00> : vector<32x32xf32>
    %5 = tpu.matmul %3, %4, %cst {dimension_numbers = #tpu.dot_dimension_numbers<[1], [0], [0], [1], [0, 0, 1, 1], [], []>} : vector<32x256xbf16>, vector<256x32xbf16>, vector<32x32xf32> -> vector<32x32xf32>
    %6 = arith.truncf %5 : vector<32x32xf32> to vector<32x32xbf16>
    %c0_4 = arith.constant 0 : index
    %c0_5 = arith.constant 0 : index
    %7 = vector.load %arg4[%c0_4, %c0_5] : memref<32x32xbf16, #tpu.memory_space<vmem>>, vector<32x32xbf16>
    tpu.vector_store %arg4[%c0_4, %c0_5], %6 {strides = array<i32>} : memref<32x32xbf16, #tpu.memory_space<vmem>>, vector<32x32xbf16>,
    %8 = vector.shape_cast %5 : vector<32x32xf32> to vector<4x8x32xf32>
    %c0_6 = arith.constant 0 : index
    %c0_7 = arith.constant 0 : index
    %9 = vector.load %arg5[%c0_6, %c0_7] : memref<8x32xf32, #tpu.memory_space<vmem>>, vector<8x32xf32>
    %cst_8 = arith.constant dense<0.000000e+00> : vector<8x32xf32>
    %10 = vector.multi_reduction <add>, %8, %cst_8 [0] : vector<4x8x32xf32> to vector<8x32xf32>
    %11 = arith.addf %9, %10 : vector<8x32xf32>
    %c0_9 = arith.constant 0 : index
    %c0_10 = arith.constant 0 : index
    %12 = vector.load %arg5[%c0_9, %c0_10] : memref<8x32xf32, #tpu.memory_space<vmem>>, vector<8x32xf32>
    tpu.vector_store %arg5[%c0_9, %c0_10], %11 {strides = array<i32>} : memref<8x32xf32, #tpu.memory_space<vmem>>, vector<8x32xf32>,
    %c0_11 = arith.constant 0 : index
    %c0_12 = arith.constant 0 : index
    %13 = vector.load %arg6[%c0_11, %c0_12] : memref<8x32xf32, #tpu.memory_space<vmem>>, vector<8x32xf32>
    %14 = arith.mulf %8, %8 : vector<4x8x32xf32>
    %cst_13 = arith.constant dense<0.000000e+00> : vector<8x32xf32>
    %15 = vector.multi_reduction <add>, %14, %cst_13 [0] : vector<4x8x32xf32> to vector<8x32xf32>
    %16 = arith.addf %13, %15 : vector<8x32xf32>
    %c0_14 = arith.constant 0 : index
    %c0_15 = arith.constant 0 : index
    %17 = vector.load %arg6[%c0_14, %c0_15] : memref<8x32xf32, #tpu.memory_space<vmem>>, vector<8x32xf32>
    tpu.vector_store %arg6[%c0_14, %c0_15], %16 {strides = array<i32>} : memref<8x32xf32, #tpu.memory_space<vmem>>, vector<8x32xf32>,
    return
  }
  func.func @transform_0(%arg0: i32, %arg1: i32) -> (i32, i32) {
    %c1_i32 = arith.constant 1 : i32
    %0 = arith.muli %arg0, %c1_i32 : i32
    %1 = arith.addi %0, %arg1 : i32
    %c0_i32 = arith.constant 0 : i32
    %c0_i32_0 = arith.constant 0 : i32
    return %1, %c0_i32 : i32, i32
  }
  func.func @transform_1(%arg0: i32, %arg1: i32) -> (i32, i32) {
    %c0_i32 = arith.constant 0 : i32
    %c0_i32_0 = arith.constant 0 : i32
    %c0_i32_1 = arith.constant 0 : i32
    return %c0_i32, %c0_i32_0 : i32, i32
  }
  func.func @transform_2(%arg0: i32, %arg1: i32) -> (i32, i32) {
    %c1_i32 = arith.constant 1 : i32
    %0 = arith.muli %arg0, %c1_i32 : i32
    %1 = arith.addi %0, %arg1 : i32
    %c0_i32 = arith.constant 0 : i32
    %c0_i32_0 = arith.constant 0 : i32
    return %1, %c0_i32 : i32, i32
  }
  func.func @transform_3(%arg0: i32, %arg1: i32) -> (i32, i32) {
    %c0_i32 = arith.constant 0 : i32
    %c0_i32_0 = arith.constant 0 : i32
    return %arg0, %c0_i32 : i32, i32
  }
  func.func @transform_4(%arg0: i32, %arg1: i32) -> (i32, i32) {
    %c0_i32 = arith.constant 0 : i32
    %c0_i32_0 = arith.constant 0 : i32
    return %arg0, %c0_i32 : i32, i32
  }
}

module attributes {stable_mosaic.version = 11 : i64} {
  func.func @_conv_stats_kernel(%arg0: i32, %arg1: i32, %arg2: memref<8x512xbf16, #tpu.memory_space<vmem>>, %arg3: memref<512x64xbf16, #tpu.memory_space<vmem>>, %arg4: memref<8x64xbf16, #tpu.memory_space<vmem>>, %arg5: memref<8x64xf32, #tpu.memory_space<vmem>>, %arg6: memref<8x64xf32, #tpu.memory_space<vmem>>) attributes {dimension_semantics = [#tpu.dimension_semantics<parallel>, #tpu.dimension_semantics<arbitrary>], iteration_bounds = array<i64: 1, 1>, scalar_prefetch = 0 : i64, scratch_operands = 0 : i64, tpu.core_type = #tpu.core_type<tc>, window_params = [{transform_indices = @transform_0, window_bounds = array<i64: 8, 512>}, {pipeline_mode = #tpu.pipeline_mode<synchronous>, transform_indices = @transform_1, window_bounds = array<i64: 512, 64>}, {transform_indices = @transform_2, window_bounds = array<i64: 8, 64>}, {transform_indices = @transform_3, window_bounds = array<i64: 8, 64>}, {transform_indices = @transform_4, window_bounds = array<i64: 8, 64>}]} {
    %c0_i32 = arith.constant 0 : i32
    %0 = arith.cmpi eq, %arg1, %c0_i32 : i32
    %1 = arith.extui %0 : i1 to i32
    %c0_i32_0 = arith.constant 0 : i32
    %2 = arith.cmpi ne, %1, %c0_i32_0 : i32
    scf.if %2 {
      %cst_16 = arith.constant 0.000000e+00 : f32
      %18 = vector.broadcast %cst_16 : f32 to vector<8x64xf32>
      %c0_17 = arith.constant 0 : index
      %c0_18 = arith.constant 0 : index
      %19 = vector.load %arg5[%c0_17, %c0_18] : memref<8x64xf32, #tpu.memory_space<vmem>>, vector<8x64xf32>
      tpu.vector_store %arg5[%c0_17, %c0_18], %18 {strides = array<i32>} : memref<8x64xf32, #tpu.memory_space<vmem>>, vector<8x64xf32>,
      %cst_19 = arith.constant 0.000000e+00 : f32
      %20 = vector.broadcast %cst_19 : f32 to vector<8x64xf32>
      %c0_20 = arith.constant 0 : index
      %c0_21 = arith.constant 0 : index
      %21 = vector.load %arg6[%c0_20, %c0_21] : memref<8x64xf32, #tpu.memory_space<vmem>>, vector<8x64xf32>
      tpu.vector_store %arg6[%c0_20, %c0_21], %20 {strides = array<i32>} : memref<8x64xf32, #tpu.memory_space<vmem>>, vector<8x64xf32>,
    } else {
    }
    %c0 = arith.constant 0 : index
    %c0_1 = arith.constant 0 : index
    %3 = vector.load %arg2[%c0, %c0_1] : memref<8x512xbf16, #tpu.memory_space<vmem>>, vector<8x512xbf16>
    %c0_2 = arith.constant 0 : index
    %c0_3 = arith.constant 0 : index
    %4 = vector.load %arg3[%c0_2, %c0_3] : memref<512x64xbf16, #tpu.memory_space<vmem>>, vector<512x64xbf16>
    %cst = arith.constant dense<0.000000e+00> : vector<8x64xf32>
    %5 = tpu.matmul %3, %4, %cst {dimension_numbers = #tpu.dot_dimension_numbers<[1], [0], [0], [1], [0, 0, 1, 1], [], []>} : vector<8x512xbf16>, vector<512x64xbf16>, vector<8x64xf32> -> vector<8x64xf32>
    %6 = arith.truncf %5 : vector<8x64xf32> to vector<8x64xbf16>
    %c0_4 = arith.constant 0 : index
    %c0_5 = arith.constant 0 : index
    %7 = vector.load %arg4[%c0_4, %c0_5] : memref<8x64xbf16, #tpu.memory_space<vmem>>, vector<8x64xbf16>
    tpu.vector_store %arg4[%c0_4, %c0_5], %6 {strides = array<i32>} : memref<8x64xbf16, #tpu.memory_space<vmem>>, vector<8x64xbf16>,
    %8 = vector.shape_cast %5 : vector<8x64xf32> to vector<1x8x64xf32>
    %c0_6 = arith.constant 0 : index
    %c0_7 = arith.constant 0 : index
    %9 = vector.load %arg5[%c0_6, %c0_7] : memref<8x64xf32, #tpu.memory_space<vmem>>, vector<8x64xf32>
    %cst_8 = arith.constant dense<0.000000e+00> : vector<8x64xf32>
    %10 = vector.multi_reduction <add>, %8, %cst_8 [0] : vector<1x8x64xf32> to vector<8x64xf32>
    %11 = arith.addf %9, %10 : vector<8x64xf32>
    %c0_9 = arith.constant 0 : index
    %c0_10 = arith.constant 0 : index
    %12 = vector.load %arg5[%c0_9, %c0_10] : memref<8x64xf32, #tpu.memory_space<vmem>>, vector<8x64xf32>
    tpu.vector_store %arg5[%c0_9, %c0_10], %11 {strides = array<i32>} : memref<8x64xf32, #tpu.memory_space<vmem>>, vector<8x64xf32>,
    %c0_11 = arith.constant 0 : index
    %c0_12 = arith.constant 0 : index
    %13 = vector.load %arg6[%c0_11, %c0_12] : memref<8x64xf32, #tpu.memory_space<vmem>>, vector<8x64xf32>
    %14 = arith.mulf %8, %8 : vector<1x8x64xf32>
    %cst_13 = arith.constant dense<0.000000e+00> : vector<8x64xf32>
    %15 = vector.multi_reduction <add>, %14, %cst_13 [0] : vector<1x8x64xf32> to vector<8x64xf32>
    %16 = arith.addf %13, %15 : vector<8x64xf32>
    %c0_14 = arith.constant 0 : index
    %c0_15 = arith.constant 0 : index
    %17 = vector.load %arg6[%c0_14, %c0_15] : memref<8x64xf32, #tpu.memory_space<vmem>>, vector<8x64xf32>
    tpu.vector_store %arg6[%c0_14, %c0_15], %16 {strides = array<i32>} : memref<8x64xf32, #tpu.memory_space<vmem>>, vector<8x64xf32>,
    return
  }
  func.func @transform_0(%arg0: i32, %arg1: i32) -> (i32, i32) {
    %c1_i32 = arith.constant 1 : i32
    %0 = arith.muli %arg0, %c1_i32 : i32
    %1 = arith.addi %0, %arg1 : i32
    %c0_i32 = arith.constant 0 : i32
    %c0_i32_0 = arith.constant 0 : i32
    return %1, %c0_i32 : i32, i32
  }
  func.func @transform_1(%arg0: i32, %arg1: i32) -> (i32, i32) {
    %c0_i32 = arith.constant 0 : i32
    %c0_i32_0 = arith.constant 0 : i32
    %c0_i32_1 = arith.constant 0 : i32
    return %c0_i32, %c0_i32_0 : i32, i32
  }
  func.func @transform_2(%arg0: i32, %arg1: i32) -> (i32, i32) {
    %c1_i32 = arith.constant 1 : i32
    %0 = arith.muli %arg0, %c1_i32 : i32
    %1 = arith.addi %0, %arg1 : i32
    %c0_i32 = arith.constant 0 : i32
    %c0_i32_0 = arith.constant 0 : i32
    return %1, %c0_i32 : i32, i32
  }
  func.func @transform_3(%arg0: i32, %arg1: i32) -> (i32, i32) {
    %c0_i32 = arith.constant 0 : i32
    %c0_i32_0 = arith.constant 0 : i32
    return %arg0, %c0_i32 : i32, i32
  }
  func.func @transform_4(%arg0: i32, %arg1: i32) -> (i32, i32) {
    %c0_i32 = arith.constant 0 : i32
    %c0_i32_0 = arith.constant 0 : i32
    return %arg0, %c0_i32 : i32, i32
  }
}

module attributes {stable_mosaic.version = 11 : i64} {
  func.func @_conv_act_kernel(%arg0: i32, %arg1: memref<8x1024xbf16, #tpu.memory_space<vmem>>, %arg2: memref<1024x1xbf16, #tpu.memory_space<vmem>>, %arg3: memref<8x1xbf16, #tpu.memory_space<vmem>>) attributes {dimension_semantics = [#tpu.dimension_semantics<parallel>], iteration_bounds = array<i64: 1>, scalar_prefetch = 0 : i64, scratch_operands = 0 : i64, tpu.core_type = #tpu.core_type<tc>, window_params = [{transform_indices = @transform_0, window_bounds = array<i64: 8, 1024>}, {pipeline_mode = #tpu.pipeline_mode<synchronous>, transform_indices = @transform_1, window_bounds = array<i64: 1024, 1>}, {transform_indices = @transform_2, window_bounds = array<i64: 8, 1>}]} {
    %c0 = arith.constant 0 : index
    %c0_0 = arith.constant 0 : index
    %0 = vector.load %arg1[%c0, %c0_0] : memref<8x1024xbf16, #tpu.memory_space<vmem>>, vector<8x1024xbf16>
    %c0_1 = arith.constant 0 : index
    %c0_2 = arith.constant 0 : index
    %1 = vector.load %arg2[%c0_1, %c0_2] : memref<1024x1xbf16, #tpu.memory_space<vmem>>, vector<1024x1xbf16>
    %cst = arith.constant dense<0.000000e+00> : vector<8x1xf32>
    %2 = tpu.matmul %0, %1, %cst {dimension_numbers = #tpu.dot_dimension_numbers<[1], [0], [0], [1], [0, 0, 1, 1], [], []>} : vector<8x1024xbf16>, vector<1024x1xbf16>, vector<8x1xf32> -> vector<8x1xf32>
    %3 = arith.negf %2 : vector<8x1xf32>
    %4 = math.exp %3 : vector<8x1xf32>
    %cst_3 = arith.constant 1.000000e+00 : f32
    %5 = vector.broadcast %cst_3 : f32 to vector<8x1xf32>
    %6 = arith.addf %5, %4 : vector<8x1xf32>
    %7 = arith.divf %5, %6 : vector<8x1xf32>
    %8 = arith.truncf %7 : vector<8x1xf32> to vector<8x1xbf16>
    %c0_4 = arith.constant 0 : index
    %c0_5 = arith.constant 0 : index
    %9 = vector.load %arg3[%c0_4, %c0_5] : memref<8x1xbf16, #tpu.memory_space<vmem>>, vector<8x1xbf16>
    tpu.vector_store %arg3[%c0_4, %c0_5], %8 {strides = array<i32>} : memref<8x1xbf16, #tpu.memory_space<vmem>>, vector<8x1xbf16>,
    return
  }
  func.func @transform_0(%arg0: i32) -> (i32, i32) {
    %c0_i32 = arith.constant 0 : i32
    %c0_i32_0 = arith.constant 0 : i32
    return %arg0, %c0_i32 : i32, i32
  }
  func.func @transform_1(%arg0: i32) -> (i32, i32) {
    %c0_i32 = arith.constant 0 : i32
    %c0_i32_0 = arith.constant 0 : i32
    %c0_i32_1 = arith.constant 0 : i32
    return %c0_i32, %c0_i32_0 : i32, i32
  }
  func.func @transform_2(%arg0: i32) -> (i32, i32) {
    %c0_i32 = arith.constant 0 : i32
    %c0_i32_0 = arith.constant 0 : i32
    return %arg0, %c0_i32 : i32, i32
  }
}

</mosaic_0001>

<llo_original>
// kernel: _forward_impl.5
$region0: #{_forward_impl.5}
  #allocation0 [shape = 'u32[]', space=smem, size = 0x4, offset = 0x4, fixed_abs, tag = 'smem constant byte address 0x4 - core index']
  #allocation1 [shape = 'u32[144,128]{1,0:T(1,128)}', space=vmem, size = 0x12000, scoped, tag = 'internal scratch']
  %s0 = inlined_call_operand.vmem [shape: bf16[512,48], index: 0, kind: input, shape index: {}]
  %s1 = inlined_call_operand.vmem [shape: bf16[48,8], index: 1, kind: input, shape index: {}]
  %s2 = inlined_call_operand.vmem [shape: bf16[512,8], index: 2, kind: output, shape index: {}]
  %s3 = sld [smem:[#allocation0]]
  $region18: #{_forward_impl.5} parent=0
    _
  %s5 = ssub.s32 1, %s3
  %s6 = scalar_select 0, %s5, %s3
  // Predicated region
  $region2: #{_forward_impl.5} parent=0 // pred_check
    _
  $region3: #{_forward_impl.5} parent=0 // pred_check_branch
    %8 = sbr.rel (0) target = $region5
  $region4: #{_forward_impl.5} parent=0 // pred_region
    _
  $region5: #{_forward_impl.5} parent=0 // pred_fallthru
    _
  // Predicated region
  $region6: #{_forward_impl.5} parent=0 // pred_check
    _
  $region7: #{_forward_impl.5} parent=0 // pred_check_branch
    %10 = sbr.rel (0) target = $region9
  $region8: #{_forward_impl.5} parent=0 // pred_region
    _
  $region9: #{_forward_impl.5} parent=0 // pred_fallthru
    _
  %v12 = vld [vmem:[%s0] sm:$0xf]
  %v13 = vld [vmem:[%s0 + $0x4] sm:$0xf]
  %v14 = vld [vmem:[%s0 + $0x8] sm:$0xf]
  %v15 = vld [vmem:[%s0 + $0xc] sm:$0xf]
  %v16 = vld [vmem:[%s0 + $0x10] sm:$0xf]
  %v17 = vld [vmem:[%s0 + $0x14] sm:$0xf]
  %v18 = vld [vmem:[%s0 + $0x18] sm:$0xf]
  %v19 = vld [vmem:[%s0 + $0x1c] sm:$0xf]
  %v20 = vld [vmem:[%s0 + $0x20] sm:$0xf]
  %v21 = vld [vmem:[%s0 + $0x24] sm:$0xf]
  %v22 = vld [vmem:[%s0 + $0x28] sm:$0xf]
  %v23 = vld [vmem:[%s0 + $0x2c] sm:$0xf]
  %v24 = vld [vmem:[%s0 + $0x30] sm:$0xf]
  %v25 = vld [vmem:[%s0 + $0x34] sm:$0xf]
  %v26 = vld [vmem:[%s0 + $0x38] sm:$0xf]
  %v27 = vld [vmem:[%s0 + $0x3c] sm:$0xf]
  %v28 = vld [vmem:[%s0 + $0x40] sm:$0xf]
  %v29 = vld [vmem:[%s0 + $0x44] sm:$0xf]
  %v30 = vld [vmem:[%s0 + $0x48] sm:$0xf]
  %v31 = vld [vmem:[%s0 + $0x4c] sm:$0xf]
  %v32 = vld [vmem:[%s0 + $0x50] sm:$0xf]
  %v33 = vld [vmem:[%s0 + $0x54] sm:$0xf]
  %v34 = vld [vmem:[%s0 + $0x58] sm:$0xf]
  %v35 = vld [vmem:[%s0 + $0x5c] sm:$0xf]
  %v36 = vld [vmem:[%s0 + $0x60] sm:$0xf]
  %v37 = vld [vmem:[%s0 + $0x64] sm:$0xf]
  %v38 = vld [vmem:[%s0 + $0x68] sm:$0xf]
  %v39 = vld [vmem:[%s0 + $0x6c] sm:$0xf]
  %v40 = vld [vmem:[%s0 + $0x70] sm:$0xf]
  %v41 = vld [vmem:[%s0 + $0x74] sm:$0xf]
  %v42 = vld [vmem:[%s0 + $0x78] sm:$0xf]
  %v43 = vld [vmem:[%s0 + $0x7c] sm:$0xf]
  %v44 = vld [vmem:[%s0 + $0x80] sm:$0xf]
  %v45 = vld [vmem:[%s0 + $0x84] sm:$0xf]
  %v46 = vld [vmem:[%s0 + $0x88] sm:$0xf]
  %v47 = vld [vmem:[%s0 + $0x8c] sm:$0xf]
  %v48 = vld [vmem:[%s0 + $0x90] sm:$0xf]
  %v49 = vld [vmem:[%s0 + $0x94] sm:$0xf]
  %v50 = vld [vmem:[%s0 + $0x98] sm:$0xf]
  %v51 = vld [vmem:[%s0 + $0x9c] sm:$0xf]
  %v52 = vld [vmem:[%s0 + $0xa0] sm:$0xf]
  %v53 = vld [vmem:[%s0 + $0xa4] sm:$0xf]
  %v54 = vld [vmem:[%s0 + $0xa8] sm:$0xf]
  %v55 = vld [vmem:[%s0 + $0xac] sm:$0xf]
  %v56 = vld [vmem:[%s0 + $0xb0] sm:$0xf]
  %v57 = vld [vmem:[%s0 + $0xb4] sm:$0xf]
  %v58 = vld [vmem:[%s0 + $0xb8] sm:$0xf]
  %v59 = vld [vmem:[%s0 + $0xbc] sm:$0xf]
  %v60 = vld [vmem:[%s0 + $0xc0] sm:$0xf]
  %v61 = vld [vmem:[%s0 + $0xc4] sm:$0xf]
  %v62 = vld [vmem:[%s0 + $0xc8] sm:$0xf]
  %v63 = vld [vmem:[%s0 + $0xcc] sm:$0xf]
  %v64 = vld [vmem:[%s0 + $0xd0] sm:$0xf]
  %v65 = vld [vmem:[%s0 + $0xd4] sm:$0xf]
  %v66 = vld [vmem:[%s0 + $0xd8] sm:$0xf]
  %v67 = vld [vmem:[%s0 + $0xdc] sm:$0xf]
  %v68 = vld [vmem:[%s0 + $0xe0] sm:$0xf]
  %v69 = vld [vmem:[%s0 + $0xe4] sm:$0xf]
  %v70 = vld [vmem:[%s0 + $0xe8] sm:$0xf]
  %v71 = vld [vmem:[%s0 + $0xec] sm:$0xf]
  %v72 = vld [vmem:[%s0 + $0xf0] sm:$0xf]
  %v73 = vld [vmem:[%s0 + $0xf4] sm:$0xf]
  %v74 = vld [vmem:[%s0 + $0xf8] sm:$0xf]
  %v75 = vld [vmem:[%s0 + $0xfc] sm:$0xf]
  %v76 = vld [vmem:[%s1] sm:$0xf]
  %v77 = vld [vmem:[%s1 + $0x4] sm:$0xf]
  %v78 = vld [vmem:[%s1 + $0x8] sm:$0xf]
  %v79 = vld [vmem:[%s1 + $0xc] sm:$0xf]
  %v80 = vld [vmem:[%s1 + $0x10] sm:$0xf]
  %v81 = vld [vmem:[%s1 + $0x14] sm:$0xf]
  %v146 = vunpack.c.l.b16 %v12
  %v147 = vunpack.c.l.b16 %v13
  %v148 = vunpack.c.l.b16 %v14
  %v149 = vunpack.c.l.b16 %v15
  %v150 = vunpack.c.l.b16 %v16
  %v151 = vunpack.c.l.b16 %v17
  %v152 = vunpack.c.l.b16 %v18
  %v153 = vunpack.c.l.b16 %v19
  %v154 = vunpack.c.l.b16 %v20
  %v155 = vunpack.c.l.b16 %v21
  %v156 = vunpack.c.l.b16 %v22
  %v157 = vunpack.c.l.b16 %v23
  %v158 = vunpack.c.l.b16 %v24
  %v159 = vunpack.c.l.b16 %v25
  %v160 = vunpack.c.l.b16 %v26
  %v161 = vunpack.c.l.b16 %v27
  %v162 = vunpack.c.l.b16 %v28
  %v163 = vunpack.c.l.b16 %v29
  %v164 = vunpack.c.l.b16 %v30
  %v165 = vunpack.c.l.b16 %v31
  %v166 = vunpack.c.l.b16 %v32
  %v167 = vunpack.c.l.b16 %v33
  %v168 = vunpack.c.l.b16 %v34
  %v169 = vunpack.c.l.b16 %v35
  %v170 = vunpack.c.l.b16 %v36
  %v171 = vunpack.c.l.b16 %v37
  %v172 = vunpack.c.l.b16 %v38
  %v173 = vunpack.c.l.b16 %v39
  %v174 = vunpack.c.l.b16 %v40
  %v175 = vunpack.c.l.b16 %v41
  %v176 = vunpack.c.l.b16 %v42
  %v177 = vunpack.c.l.b16 %v43
  %v178 = vunpack.c.l.b16 %v44
  %v179 = vunpack.c.l.b16 %v45
  %v180 = vunpack.c.l.b16 %v46
  %v181 = vunpack.c.l.b16 %v47
  %v182 = vunpack.c.l.b16 %v48
  %v183 = vunpack.c.l.b16 %v49
  %v184 = vunpack.c.l.b16 %v50
  %v185 = vunpack.c.l.b16 %v51
  %v186 = vunpack.c.l.b16 %v52
  %v187 = vunpack.c.l.b16 %v53
  %v188 = vunpack.c.l.b16 %v54
  %v189 = vunpack.c.l.b16 %v55
  %v190 = vunpack.c.l.b16 %v56
  %v191 = vunpack.c.l.b16 %v57
  %v192 = vunpack.c.l.b16 %v58
  %v193 = vunpack.c.l.b16 %v59
  %v194 = vunpack.c.l.b16 %v60
  %v195 = vunpack.c.l.b16 %v61
  %v196 = vunpack.c.l.b16 %v62
  %v197 = vunpack.c.l.b16 %v63
  %v198 = vunpack.c.l.b16 %v64
  %v199 = vunpack.c.l.b16 %v65
  %v200 = vunpack.c.l.b16 %v66
  %v201 = vunpack.c.l.b16 %v67
  %v202 = vunpack.c.l.b16 %v68
  %v203 = vunpack.c.l.b16 %v69
  %v204 = vunpack.c.l.b16 %v70
  %v205 = vunpack.c.l.b16 %v71
  %v206 = vunpack.c.l.b16 %v72
  %v207 = vunpack.c.l.b16 %v73
  %v208 = vunpack.c.l.b16 %v74
  %v209 = vunpack.c.l.b16 %v75
  %v210 = vpack.c.b16 %v147, %v146
  %v211 = vpack.c.b16 %v149, %v148
  %v212 = vpack.c.b16 %v151, %v150
  %v213 = vpack.c.b16 %v153, %v152
  %v214 = vpack.c.b16 %v155, %v154
  %v215 = vpack.c.b16 %v157, %v156
  %v216 = vpack.c.b16 %v159, %v158
  %v217 = vpack.c.b16 %v161, %v160
  %v218 = vpack.c.b16 %v163, %v162
  %v219 = vpack.c.b16 %v165, %v164
  %v220 = vpack.c.b16 %v167, %v166
  %v221 = vpack.c.b16 %v169, %v168
  %v222 = vpack.c.b16 %v171, %v170
  %v223 = vpack.c.b16 %v173, %v172
  %v224 = vpack.c.b16 %v175, %v174
  %v225 = vpack.c.b16 %v177, %v176
  %v226 = vpack.c.b16 %v179, %v178
  %v227 = vpack.c.b16 %v181, %v180
  %v228 = vpack.c.b16 %v183, %v182
  %v229 = vpack.c.b16 %v185, %v184
  %v230 = vpack.c.b16 %v187, %v186
  %v231 = vpack.c.b16 %v189, %v188
  %v232 = vpack.c.b16 %v191, %v190
  %v233 = vpack.c.b16 %v193, %v192
  %v234 = vpack.c.b16 %v195, %v194
  %v235 = vpack.c.b16 %v197, %v196
  %v236 = vpack.c.b16 %v199, %v198
  %v237 = vpack.c.b16 %v201, %v200
  %v238 = vpack.c.b16 %v203, %v202
  %v239 = vpack.c.b16 %v205, %v204
  %v240 = vpack.c.b16 %v207, %v206
  %v241 = vpack.c.b16 %v209, %v208
  %v248 = vunpack.c.l.b16 %v76
  %v249 = vunpack.c.l.b16 %v77
  %v250 = vunpack.c.l.b16 %v78
  %v251 = vunpack.c.l.b16 %v79
  %v252 = vunpack.c.l.b16 %v80
  %v253 = vunpack.c.l.b16 %v81
  %v254 = vpack.c.b16 %v249, %v248
  %v255 = vpack.c.b16 %v251, %v250
  %v256 = vpack.c.b16 %v253, %v252
  %vm260 = vcmask 392192
  %v262 = vsel %vm260, %v210, 0
  %v265 = vsel %vm260, %v211, 0
  %v268 = vsel %vm260, %v212, 0
  %v271 = vsel %vm260, %v213, 0
  %v274 = vsel %vm260, %v214, 0
  %v277 = vsel %vm260, %v215, 0
  %v280 = vsel %vm260, %v216, 0
  %v283 = vsel %vm260, %v217, 0
  %v286 = vsel %vm260, %v218, 0
  %v289 = vsel %vm260, %v219, 0
  %v292 = vsel %vm260, %v220, 0
  %v295 = vsel %vm260, %v221, 0
  %v298 = vsel %vm260, %v222, 0
  %v301 = vsel %vm260, %v223, 0
  %v304 = vsel %vm260, %v224, 0
  %v307 = vsel %vm260, %v225, 0
  %v310 = vsel %vm260, %v226, 0
  %v313 = vsel %vm260, %v227, 0
  %v316 = vsel %vm260, %v228, 0
  %v319 = vsel %vm260, %v229, 0
  %v322 = vsel %vm260, %v230, 0
  %v325 = vsel %vm260, %v231, 0
  %v328 = vsel %vm260, %v232, 0
  %v331 = vsel %vm260, %v233, 0
  %v334 = vsel %vm260, %v234, 0
  %v337 = vsel %vm260, %v235, 0
  %v340 = vsel %vm260, %v236, 0
  %v343 = vsel %vm260, %v237, 0
  %v346 = vsel %vm260, %v238, 0
  %v349 = vsel %vm260, %v239, 0
  %v352 = vsel %vm260, %v240, 0
  %v355 = vsel %vm260, %v241, 0
  %357 = vmatprep.subr.bf16.mxu0 0
  %358 = vmatpush1.bf16.msra.mxu0 0
  %359 = vmatprep.subr.bf16.mxu0 0
  %360 = vmatpush1.bf16.msra.mxu0 0
  %361 = vmatprep.subr.bf16.mxu0 0
  %362 = vmatpush1.bf16.msra.mxu0 0
  %363 = vmatprep.subr.bf16.mxu0 0
  %364 = vmatpush1.bf16.msra.mxu0 0
  %365 = vmatprep.subr.bf16.mxu0 0
  %366 = vmatpush1.bf16.msra.mxu0 0
  %367 = vmatprep.subr.bf16.mxu0 0
  %368 = vmatpush1.bf16.msra.mxu0 %v256
  %369 = vmatprep.subr.bf16.mxu0 0
  %370 = vmatpush1.bf16.msra.mxu0 %v255
  %371 = vmatprep.subr.bf16.mxu0 0
  %372 = vmatpush1.bf16.msra.mxu0 %v254
  %373 = vmatprep.subr.bf16.mxu0 0
  %374 = vmatpush2.bf16.msra.mxu0 0
  %375 = vmatprep.subr.bf16.mxu0 0
  %376 = vmatpush2.bf16.msra.mxu0 0
  %377 = vmatprep.subr.bf16.mxu0 0
  %378 = vmatpush2.bf16.msra.mxu0 0
  %379 = vmatprep.subr.bf16.mxu0 0
  %380 = vmatpush2.bf16.msra.mxu0 0
  %381 = vmatprep.subr.bf16.mxu0 0
  %382 = vmatpush2.bf16.msra.mxu0 0
  %383 = vmatprep.subr.bf16.mxu0 0
  %384 = vmatpush2.bf16.msra.mxu0 0
  %385 = vmatprep.subr.bf16.mxu0 0
  %386 = vmatpush2.bf16.msra.mxu0 0
  %387 = vmatprep.subr.bf16.mxu0 0
  %388 = vmatpush2.bf16.msra.mxu0 0
  %389 = vmatprep.mubr.bf16.mxu0 0
  %390 = vmatmul.mubr.bf16.gmra.mxu0 %v262
  %v391 = vpop.f32.mrf.mxu0
  %v392 = vadd.f32 0.0, %v391
  %v393 = vpop.f32.mrf.mxu0
  %v394 = vpop.f32.mrf.mxu0
  %v395 = vadd.f32 0.0, %v394
  %v396 = vpop.f32.mrf.mxu0
  %397 = vmatprep.mubr.bf16.mxu0 0
  %398 = vmatmul.mubr.bf16.gmra.mxu0 %v265
  %v399 = vpop.f32.mrf.mxu0
  %v400 = vadd.f32 0.0, %v399
  %v401 = vpop.f32.mrf.mxu0
  %v402 = vpop.f32.mrf.mxu0
  %v403 = vadd.f32 0.0, %v402
  %v404 = vpop.f32.mrf.mxu0
  %405 = vmatprep.mubr.bf16.mxu0 0
  %406 = vmatmul.mubr.bf16.gmra.mxu0 %v268
  %v407 = vpop.f32.mrf.mxu0
  %v408 = vadd.f32 0.0, %v407
  %v409 = vpop.f32.mrf.mxu0
  %v410 = vpop.f32.mrf.mxu0
  %v411 = vadd.f32 0.0, %v410
  %v412 = vpop.f32.mrf.mxu0
  %413 = vmatprep.mubr.bf16.mxu0 0
  %414 = vmatmul.mubr.bf16.gmra.mxu0 %v271
  %v415 = vpop.f32.mrf.mxu0
  %v416 = vadd.f32 0.0, %v415
  %v417 = vpop.f32.mrf.mxu0
  %v418 = vpop.f32.mrf.mxu0
  %v419 = vadd.f32 0.0, %v418
  %v420 = vpop.f32.mrf.mxu0
  %421 = vmatprep.mubr.bf16.mxu0 0
  %422 = vmatmul.mubr.bf16.gmra.mxu0 %v274
  %v423 = vpop.f32.mrf.mxu0
  %v424 = vadd.f32 0.0, %v423
  %v425 = vpop.f32.mrf.mxu0
  %v426 = vpop.f32.mrf.mxu0
  %v427 = vadd.f32 0.0, %v426
  %v428 = vpop.f32.mrf.mxu0
  %429 = vmatprep.mubr.bf16.mxu0 0
  %430 = vmatmul.mubr.bf16.gmra.mxu0 %v277
  %v431 = vpop.f32.mrf.mxu0
  %v432 = vadd.f32 0.0, %v431
  %v433 = vpop.f32.mrf.mxu0
  %v434 = vpop.f32.mrf.mxu0
  %v435 = vadd.f32 0.0, %v434
  %v436 = vpop.f32.mrf.mxu0
  %437 = vmatprep.mubr.bf16.mxu0 0
  %438 = vmatmul.mubr.bf16.gmra.mxu0 %v280
  %v439 = vpop.f32.mrf.mxu0
  %v440 = vadd.f32 0.0, %v439
  %v441 = vpop.f32.mrf.mxu0
  %v442 = vpop.f32.mrf.mxu0
  %v443 = vadd.f32 0.0, %v442
  %v444 = vpop.f32.mrf.mxu0
  %445 = vmatprep.mubr.bf16.mxu0 0
  %446 = vmatmul.mubr.bf16.gmra.mxu0 %v283
  %v447 = vpop.f32.mrf.mxu0
  %v448 = vadd.f32 0.0, %v447
  %v449 = vpop.f32.mrf.mxu0
  %v450 = vpop.f32.mrf.mxu0
  %v451 = vadd.f32 0.0, %v450
  %v452 = vpop.f32.mrf.mxu0
  %453 = vmatprep.mubr.bf16.mxu0 0
  %454 = vmatmul.mubr.bf16.gmra.mxu0 %v286
  %v455 = vpop.f32.mrf.mxu0
  %v456 = vadd.f32 0.0, %v455
  %v457 = vpop.f32.mrf.mxu0
  %v458 = vpop.f32.mrf.mxu0
  %v459 = vadd.f32 0.0, %v458
  %v460 = vpop.f32.mrf.mxu0
  %461 = vmatprep.mubr.bf16.mxu0 0
  %462 = vmatmul.mubr.bf16.gmra.mxu0 %v289
  %v463 = vpop.f32.mrf.mxu0
  %v464 = vadd.f32 0.0, %v463
  %v465 = vpop.f32.mrf.mxu0
  %v466 = vpop.f32.mrf.mxu0
  %v467 = vadd.f32 0.0, %v466
  %v468 = vpop.f32.mrf.mxu0
  %469 = vmatprep.mubr.bf16.mxu0 0
  %470 = vmatmul.mubr.bf16.gmra.mxu0 %v292
  %v471 = vpop.f32.mrf.mxu0
  %v472 = vadd.f32 0.0, %v471
  %v473 = vpop.f32.mrf.mxu0
  %v474 = vpop.f32.mrf.mxu0
  %v475 = vadd.f32 0.0, %v474
  %v476 = vpop.f32.mrf.mxu0
  %477 = vmatprep.mubr.bf16.mxu0 0
  %478 = vmatmul.mubr.bf16.gmra.mxu0 %v295
  %v479 = vpop.f32.mrf.mxu0
  %v480 = vadd.f32 0.0, %v479
  %v481 = vpop.f32.mrf.mxu0
  %v482 = vpop.f32.mrf.mxu0
  %v483 = vadd.f32 0.0, %v482
  %v484 = vpop.f32.mrf.mxu0
  %485 = vmatprep.mubr.bf16.mxu0 0
  %486 = vmatmul.mubr.bf16.gmra.mxu0 %v298
  %v487 = vpop.f32.mrf.mxu0
  %v488 = vadd.f32 0.0, %v487
  %v489 = vpop.f32.mrf.mxu0
  %v490 = vpop.f32.mrf.mxu0
  %v491 = vadd.f32 0.0, %v490
  %v492 = vpop.f32.mrf.mxu0
  %493 = vmatprep.mubr.bf16.mxu0 0
  %494 = vmatmul.mubr.bf16.gmra.mxu0 %v301
  %v495 = vpop.f32.mrf.mxu0
  %v496 = vadd.f32 0.0, %v495
  %v497 = vpop.f32.mrf.mxu0
  %v498 = vpop.f32.mrf.mxu0
  %v499 = vadd.f32 0.0, %v498
  %v500 = vpop.f32.mrf.mxu0
  %501 = vmatprep.mubr.bf16.mxu0 0
  %502 = vmatmul.mubr.bf16.gmra.mxu0 %v304
  %v503 = vpop.f32.mrf.mxu0
  %v504 = vadd.f32 0.0, %v503
  %v505 = vpop.f32.mrf.mxu0
  %v506 = vpop.f32.mrf.mxu0
  %v507 = vadd.f32 0.0, %v506
  %v508 = vpop.f32.mrf.mxu0
  %509 = vmatprep.mubr.bf16.mxu0 0
  %510 = vmatmul.mubr.bf16.gmra.mxu0 %v307
  %v511 = vpop.f32.mrf.mxu0
  %v512 = vadd.f32 0.0, %v511
  %v513 = vpop.f32.mrf.mxu0
  %v514 = vpop.f32.mrf.mxu0
  %v515 = vadd.f32 0.0, %v514
  %v516 = vpop.f32.mrf.mxu0
  %517 = vmatprep.mubr.bf16.mxu0 0
  %518 = vmatmul.mubr.bf16.gmra.mxu0 %v310
  %v519 = vpop.f32.mrf.mxu0
  %v520 = vadd.f32 0.0, %v519
  %v521 = vpop.f32.mrf.mxu0
  %v522 = vpop.f32.mrf.mxu0
  %v523 = vadd.f32 0.0, %v522
  %v524 = vpop.f32.mrf.mxu0
  %525 = vmatprep.mubr.bf16.mxu0 0
  %526 = vmatmul.mubr.bf16.gmra.mxu0 %v313
  %v527 = vpop.f32.mrf.mxu0
  %v528 = vadd.f32 0.0, %v527
  %v529 = vpop.f32.mrf.mxu0
  %v530 = vpop.f32.mrf.mxu0
  %v531 = vadd.f32 0.0, %v530
  %v532 = vpop.f32.mrf.mxu0
  %533 = vmatprep.mubr.bf16.mxu0 0
  %534 = vmatmul.mubr.bf16.gmra.mxu0 %v316
  %v535 = vpop.f32.mrf.mxu0
  %v536 = vadd.f32 0.0, %v535
  %v537 = vpop.f32.mrf.mxu0
  %v538 = vpop.f32.mrf.mxu0
  %v539 = vadd.f32 0.0, %v538
  %v540 = vpop.f32.mrf.mxu0
  %541 = vmatprep.mubr.bf16.mxu0 0
  %542 = vmatmul.mubr.bf16.gmra.mxu0 %v319
  %v543 = vpop.f32.mrf.mxu0
  %v544 = vadd.f32 0.0, %v543
  %v545 = vpop.f32.mrf.mxu0
  %v546 = vpop.f32.mrf.mxu0
  %v547 = vadd.f32 0.0, %v546
  %v548 = vpop.f32.mrf.mxu0
  %549 = vmatprep.mubr.bf16.mxu0 0
  %550 = vmatmul.mubr.bf16.gmra.mxu0 %v322
  %v551 = vpop.f32.mrf.mxu0
  %v552 = vadd.f32 0.0, %v551
  %v553 = vpop.f32.mrf.mxu0
  %v554 = vpop.f32.mrf.mxu0
  %v555 = vadd.f32 0.0, %v554
  %v556 = vpop.f32.mrf.mxu0
  %557 = vmatprep.mubr.bf16.mxu0 0
  %558 = vmatmul.mubr.bf16.gmra.mxu0 %v325
  %v559 = vpop.f32.mrf.mxu0
  %v560 = vadd.f32 0.0, %v559
  %v561 = vpop.f32.mrf.mxu0
  %v562 = vpop.f32.mrf.mxu0
  %v563 = vadd.f32 0.0, %v562
  %v564 = vpop.f32.mrf.mxu0
  %565 = vmatprep.mubr.bf16.mxu0 0
  %566 = vmatmul.mubr.bf16.gmra.mxu0 %v328
  %v567 = vpop.f32.mrf.mxu0
  %v568 = vadd.f32 0.0, %v567
  %v569 = vpop.f32.mrf.mxu0
  %v570 = vpop.f32.mrf.mxu0
  %v571 = vadd.f32 0.0, %v570
  %v572 = vpop.f32.mrf.mxu0
  %573 = vmatprep.mubr.bf16.mxu0 0
  %574 = vmatmul.mubr.bf16.gmra.mxu0 %v331
  %v575 = vpop.f32.mrf.mxu0
  %v576 = vadd.f32 0.0, %v575
  %v577 = vpop.f32.mrf.mxu0
  %v578 = vpop.f32.mrf.mxu0
  %v579 = vadd.f32 0.0, %v578
  %v580 = vpop.f32.mrf.mxu0
  %581 = vmatprep.mubr.bf16.mxu0 0
  %582 = vmatmul.mubr.bf16.gmra.mxu0 %v334
  %v583 = vpop.f32.mrf.mxu0
  %v584 = vadd.f32 0.0, %v583
  %v585 = vpop.f32.mrf.mxu0
  %v586 = vpop.f32.mrf.mxu0
  %v587 = vadd.f32 0.0, %v586
  %v588 = vpop.f32.mrf.mxu0
  %589 = vmatprep.mubr.bf16.mxu0 0
  %590 = vmatmul.mubr.bf16.gmra.mxu0 %v337
  %v591 = vpop.f32.mrf.mxu0
  %v592 = vadd.f32 0.0, %v591
  %v593 = vpop.f32.mrf.mxu0
  %v594 = vpop.f32.mrf.mxu0
  %v595 = vadd.f32 0.0, %v594
  %v596 = vpop.f32.mrf.mxu0
  %597 = vmatprep.mubr.bf16.mxu0 0
  %598 = vmatmul.mubr.bf16.gmra.mxu0 %v340
  %v599 = vpop.f32.mrf.mxu0
  %v600 = vadd.f32 0.0, %v599
  %v601 = vpop.f32.mrf.mxu0
  %v602 = vpop.f32.mrf.mxu0
  %v603 = vadd.f32 0.0, %v602
  %v604 = vpop.f32.mrf.mxu0
  %605 = vmatprep.mubr.bf16.mxu0 0
  %606 = vmatmul.mubr.bf16.gmra.mxu0 %v343
  %v607 = vpop.f32.mrf.mxu0
  %v608 = vadd.f32 0.0, %v607
  %v609 = vpop.f32.mrf.mxu0
  %v610 = vpop.f32.mrf.mxu0
  %v611 = vadd.f32 0.0, %v610
  %v612 = vpop.f32.mrf.mxu0
  %613 = vmatprep.mubr.bf16.mxu0 0
  %614 = vmatmul.mubr.bf16.gmra.mxu0 %v346
  %v615 = vpop.f32.mrf.mxu0
  %v616 = vadd.f32 0.0, %v615
  %v617 = vpop.f32.mrf.mxu0
  %v618 = vpop.f32.mrf.mxu0
  %v619 = vadd.f32 0.0, %v618
  %v620 = vpop.f32.mrf.mxu0
  %621 = vmatprep.mubr.bf16.mxu0 0
  %622 = vmatmul.mubr.bf16.gmra.mxu0 %v349
  %v623 = vpop.f32.mrf.mxu0
  %v624 = vadd.f32 0.0, %v623
  %v625 = vpop.f32.mrf.mxu0
  %v626 = vpop.f32.mrf.mxu0
  %v627 = vadd.f32 0.0, %v626
  %v628 = vpop.f32.mrf.mxu0
  %629 = vmatprep.mubr.bf16.mxu0 0
  %630 = vmatmul.mubr.bf16.gmra.mxu0 %v352
  %v631 = vpop.f32.mrf.mxu0
  %v632 = vadd.f32 0.0, %v631
  %v633 = vpop.f32.mrf.mxu0
  %v634 = vpop.f32.mrf.mxu0
  %v635 = vadd.f32 0.0, %v634
  %v636 = vpop.f32.mrf.mxu0
  %637 = vmatprep.mubr.bf16.mxu0 0
  %638 = vmatmul.mubr.bf16.gmra.mxu0 %v355
  %v639 = vpop.f32.mrf.mxu0
  %v640 = vadd.f32 0.0, %v639
  %v641 = vpop.f32.mrf.mxu0
  %v642 = vpop.f32.mrf.mxu0
  %v643 = vadd.f32 0.0, %v642
  %v644 = vpop.f32.mrf.mxu0
  %645 = vdwg.mxu0
  %vm646 = vcmp.gt.f32.partialorder %v392, 0.0
  %vm647 = vcmp.gt.f32.partialorder %v395, 0.0
  %vm648 = vcmp.gt.f32.partialorder %v400, 0.0
  %vm649 = vcmp.gt.f32.partialorder %v403, 0.0
  %vm650 = vcmp.gt.f32.partialorder %v408, 0.0
  %vm651 = vcmp.gt.f32.partialorder %v411, 0.0
  %vm652 = vcmp.gt.f32.partialorder %v416, 0.0
  %vm653 = vcmp.gt.f32.partialorder %v419, 0.0
  %vm654 = vcmp.gt.f32.partialorder %v424, 0.0
  %vm655 = vcmp.gt.f32.partialorder %v427, 0.0
  %vm656 = vcmp.gt.f32.partialorder %v432, 0.0
  %vm657 = vcmp.gt.f32.partialorder %v435, 0.0
  %vm658 = vcmp.gt.f32.partialorder %v440, 0.0
  %vm659 = vcmp.gt.f32.partialorder %v443, 0.0
  %vm660 = vcmp.gt.f32.partialorder %v448, 0.0
  %vm661 = vcmp.gt.f32.partialorder %v451, 0.0
  %vm662 = vcmp.gt.f32.partialorder %v456, 0.0
  %vm663 = vcmp.gt.f32.partialorder %v459, 0.0
  %vm664 = vcmp.gt.f32.partialorder %v464, 0.0
  %vm665 = vcmp.gt.f32.partialorder %v467, 0.0
  %vm666 = vcmp.gt.f32.partialorder %v472, 0.0
  %vm667 = vcmp.gt.f32.partialorder %v475, 0.0
  %vm668 = vcmp.gt.f32.partialorder %v480, 0.0
  %vm669 = vcmp.gt.f32.partialorder %v483, 0.0
  %vm670 = vcmp.gt.f32.partialorder %v488, 0.0
  %vm671 = vcmp.gt.f32.partialorder %v491, 0.0
  %vm672 = vcmp.gt.f32.partialorder %v496, 0.0
  %vm673 = vcmp.gt.f32.partialorder %v499, 0.0
  %vm674 = vcmp.gt.f32.partialorder %v504, 0.0
  %vm675 = vcmp.gt.f32.partialorder %v507, 0.0
  %vm676 = vcmp.gt.f32.partialorder %v512, 0.0
  %vm677 = vcmp.gt.f32.partialorder %v515, 0.0
  %vm678 = vcmp.gt.f32.partialorder %v520, 0.0
  %vm679 = vcmp.gt.f32.partialorder %v523, 0.0
  %vm680 = vcmp.gt.f32.partialorder %v528, 0.0
  %vm681 = vcmp.gt.f32.partialorder %v531, 0.0
  %vm682 = vcmp.gt.f32.partialorder %v536, 0.0
  %vm683 = vcmp.gt.f32.partialorder %v539, 0.0
  %vm684 = vcmp.gt.f32.partialorder %v544, 0.0
  %vm685 = vcmp.gt.f32.partialorder %v547, 0.0
  %vm686 = vcmp.gt.f32.partialorder %v552, 0.0
  %vm687 = vcmp.gt.f32.partialorder %v555, 0.0
  %vm688 = vcmp.gt.f32.partialorder %v560, 0.0
  %vm689 = vcmp.gt.f32.partialorder %v563, 0.0
  %vm690 = vcmp.gt.f32.partialorder %v568, 0.0
  %vm691 = vcmp.gt.f32.partialorder %v571, 0.0
  %vm692 = vcmp.gt.f32.partialorder %v576, 0.0
  %vm693 = vcmp.gt.f32.partialorder %v579, 0.0
  %vm694 = vcmp.gt.f32.partialorder %v584, 0.0
  %vm695 = vcmp.gt.f32.partialorder %v587, 0.0
  %vm696 = vcmp.gt.f32.partialorder %v592, 0.0
  %vm697 = vcmp.gt.f32.partialorder %v595, 0.0
  %vm698 = vcmp.gt.f32.partialorder %v600, 0.0
  %vm699 = vcmp.gt.f32.partialorder %v603, 0.0
  %vm700 = vcmp.gt.f32.partialorder %v608, 0.0
  %vm701 = vcmp.gt.f32.partialorder %v611, 0.0
  %vm702 = vcmp.gt.f32.partialorder %v616, 0.0
  %vm703 = vcmp.gt.f32.partialorder %v619, 0.0
  %vm704 = vcmp.gt.f32.partialorder %v624, 0.0
  %vm705 = vcmp.gt.f32.partialorder %v627, 0.0
  %vm706 = vcmp.gt.f32.partialorder %v632, 0.0
  %vm707 = vcmp.gt.f32.partialorder %v635, 0.0
  %vm708 = vcmp.gt.f32.partialorder %v640, 0.0
  %vm709 = vcmp.gt.f32.partialorder %v643, 0.0
  %v710 = vmul.f32 %v392, 0.2
  %v711 = vmul.f32 %v395, 0.2
  %v712 = vmul.f32 %v400, 0.2
  %v713 = vmul.f32 %v403, 0.2
  %v714 = vmul.f32 %v408, 0.2
  %v715 = vmul.f32 %v411, 0.2
  %v716 = vmul.f32 %v416, 0.2
  %v717 = vmul.f32 %v419, 0.2
  %v718 = vmul.f32 %v424, 0.2
  %v719 = vmul.f32 %v427, 0.2
  %v720 = vmul.f32 %v432, 0.2
  %v721 = vmul.f32 %v435, 0.2
  %v722 = vmul.f32 %v440, 0.2
  %v723 = vmul.f32 %v443, 0.2
  %v724 = vmul.f32 %v448, 0.2
  %v725 = vmul.f32 %v451, 0.2
  %v726 = vmul.f32 %v456, 0.2
  %v727 = vmul.f32 %v459, 0.2
  %v728 = vmul.f32 %v464, 0.2
  %v729 = vmul.f32 %v467, 0.2
  %v730 = vmul.f32 %v472, 0.2
  %v731 = vmul.f32 %v475, 0.2
  %v732 = vmul.f32 %v480, 0.2
  %v733 = vmul.f32 %v483, 0.2
  %v734 = vmul.f32 %v488, 0.2
  %v735 = vmul.f32 %v491, 0.2
  %v736 = vmul.f32 %v496, 0.2
  %v737 = vmul.f32 %v499, 0.2
  %v738 = vmul.f32 %v504, 0.2
  %v739 = vmul.f32 %v507, 0.2
  %v740 = vmul.f32 %v512, 0.2
  %v741 = vmul.f32 %v515, 0.2
  %v742 = vmul.f32 %v520, 0.2
  %v743 = vmul.f32 %v523, 0.2
  %v744 = vmul.f32 %v528, 0.2
  %v745 = vmul.f32 %v531, 0.2
  %v746 = vmul.f32 %v536, 0.2
  %v747 = vmul.f32 %v539, 0.2
  %v748 = vmul.f32 %v544, 0.2
  %v749 = vmul.f32 %v547, 0.2
  %v750 = vmul.f32 %v552, 0.2
  %v751 = vmul.f32 %v555, 0.2
  %v752 = vmul.f32 %v560, 0.2
  %v753 = vmul.f32 %v563, 0.2
  %v754 = vmul.f32 %v568, 0.2
  %v755 = vmul.f32 %v571, 0.2
  %v756 = vmul.f32 %v576, 0.2
  %v757 = vmul.f32 %v579, 0.2
  %v758 = vmul.f32 %v584, 0.2
  %v759 = vmul.f32 %v587, 0.2
  %v760 = vmul.f32 %v592, 0.2
  %v761 = vmul.f32 %v595, 0.2
  %v762 = vmul.f32 %v600, 0.2
  %v763 = vmul.f32 %v603, 0.2
  %v764 = vmul.f32 %v608, 0.2
  %v765 = vmul.f32 %v611, 0.2
  %v766 = vmul.f32 %v616, 0.2
  %v767 = vmul.f32 %v619, 0.2
  %v768 = vmul.f32 %v624, 0.2
  %v769 = vmul.f32 %v627, 0.2
  %v770 = vmul.f32 %v632, 0.2
  %v771 = vmul.f32 %v635, 0.2
  %v772 = vmul.f32 %v640, 0.2
  %v773 = vmul.f32 %v643, 0.2
  %v774 = vsel %vm646, %v392, %v710
  %v775 = vsel %vm647, %v395, %v711
  %v776 = vsel %vm648, %v400, %v712
  %v777 = vsel %vm649, %v403, %v713
  %v778 = vsel %vm650, %v408, %v714
  %v779 = vsel %vm651, %v411, %v715
  %v780 = vsel %vm652, %v416, %v716
  %v781 = vsel %vm653, %v419, %v717
  %v782 = vsel %vm654, %v424, %v718
  %v783 = vsel %vm655, %v427, %v719
  %v784 = vsel %vm656, %v432, %v720
  %v785 = vsel %vm657, %v435, %v721
  %v786 = vsel %vm658, %v440, %v722
  %v787 = vsel %vm659, %v443, %v723
  %v788 = vsel %vm660, %v448, %v724
  %v789 = vsel %vm661, %v451, %v725
  %v790 = vsel %vm662, %v456, %v726
  %v791 = vsel %vm663, %v459, %v727
  %v792 = vsel %vm664, %v464, %v728
  %v793 = vsel %vm665, %v467, %v729
  %v794 = vsel %vm666, %v472, %v730
  %v795 = vsel %vm667, %v475, %v731
  %v796 = vsel %vm668, %v480, %v732
  %v797 = vsel %vm669, %v483, %v733
  %v798 = vsel %vm670, %v488, %v734
  %v799 = vsel %vm671, %v491, %v735
  %v800 = vsel %vm672, %v496, %v736
  %v801 = vsel %vm673, %v499, %v737
  %v802 = vsel %vm674, %v504, %v738
  %v803 = vsel %vm675, %v507, %v739
  %v804 = vsel %vm676, %v512, %v740
  %v805 = vsel %vm677, %v515, %v741
  %v806 = vsel %vm678, %v520, %v742
  %v807 = vsel %vm679, %v523, %v743
  %v808 = vsel %vm680, %v528, %v744
  %v809 = vsel %vm681, %v531, %v745
  %v810 = vsel %vm682, %v536, %v746
  %v811 = vsel %vm683, %v539, %v747
  %v812 = vsel %vm684, %v544, %v748
  %v813 = vsel %vm685, %v547, %v749
  %v814 = vsel %vm686, %v552, %v750
  %v815 = vsel %vm687, %v555, %v751
  %v816 = vsel %vm688, %v560, %v752
  %v817 = vsel %vm689, %v563, %v753
  %v818 = vsel %vm690, %v568, %v754
  %v819 = vsel %vm691, %v571, %v755
  %v820 = vsel %vm692, %v576, %v756
  %v821 = vsel %vm693, %v579, %v757
  %v822 = vsel %vm694, %v584, %v758
  %v823 = vsel %vm695, %v587, %v759
  %v824 = vsel %vm696, %v592, %v760
  %v825 = vsel %vm697, %v595, %v761
  %v826 = vsel %vm698, %v600, %v762
  %v827 = vsel %vm699, %v603, %v763
  %v828 = vsel %vm700, %v608, %v764
  %v829 = vsel %vm701, %v611, %v765
  %v830 = vsel %vm702, %v616, %v766
  %v831 = vsel %vm703, %v619, %v767
  %v832 = vsel %vm704, %v624, %v768
  %v833 = vsel %vm705, %v627, %v769
  %v834 = vsel %vm706, %v632, %v770
  %v835 = vsel %vm707, %v635, %v771
  %v836 = vsel %vm708, %v640, %v772
  %v837 = vsel %vm709, %v643, %v773
  %v838 = vpack.c.bf16 %v775, %v774
  %v839 = vpack.c.bf16 %v777, %v776
  %v840 = vpack.c.bf16 %v779, %v778
  %v841 = vpack.c.bf16 %v781, %v780
  %v842 = vpack.c.bf16 %v783, %v782
  %v843 = vpack.c.bf16 %v785, %v784
  %v844 = vpack.c.bf16 %v787, %v786
  %v845 = vpack.c.bf16 %v789, %v788
  %v846 = vpack.c.bf16 %v791, %v790
  %v847 = vpack.c.bf16 %v793, %v792
  %v848 = vpack.c.bf16 %v795, %v794
  %v849 = vpack.c.bf16 %v797, %v796
  %v850 = vpack.c.bf16 %v799, %v798
  %v851 = vpack.c.bf16 %v801, %v800
  %v852 = vpack.c.bf16 %v803, %v802
  %v853 = vpack.c.bf16 %v805, %v804
  %v854 = vpack.c.bf16 %v807, %v806
  %v855 = vpack.c.bf16 %v809, %v808
  %v856 = vpack.c.bf16 %v811, %v810
  %v857 = vpack.c.bf16 %v813, %v812
  %v858 = vpack.c.bf16 %v815, %v814
  %v859 = vpack.c.bf16 %v817, %v816
  %v860 = vpack.c.bf16 %v819, %v818
  %v861 = vpack.c.bf16 %v821, %v820
  %v862 = vpack.c.bf16 %v823, %v822
  %v863 = vpack.c.bf16 %v825, %v824
  %v864 = vpack.c.bf16 %v827, %v826
  %v865 = vpack.c.bf16 %v829, %v828
  %v866 = vpack.c.bf16 %v831, %v830
  %v867 = vpack.c.bf16 %v833, %v832
  %v868 = vpack.c.bf16 %v835, %v834
  %v869 = vpack.c.bf16 %v837, %v836
  %v902 = vunpack.c.l.b16 %v838
  %v903 = vunpack.c.h.b16 %v838
  %v904 = vunpack.c.l.b16 %v839
  %v905 = vunpack.c.h.b16 %v839
  %v906 = vunpack.c.l.b16 %v840
  %v907 = vunpack.c.h.b16 %v840
  %v908 = vunpack.c.l.b16 %v841
  %v909 = vunpack.c.h.b16 %v841
  %v910 = vunpack.c.l.b16 %v842
  %v911 = vunpack.c.h.b16 %v842
  %v912 = vunpack.c.l.b16 %v843
  %v913 = vunpack.c.h.b16 %v843
  %v914 = vunpack.c.l.b16 %v844
  %v915 = vunpack.c.h.b16 %v844
  %v916 = vunpack.c.l.b16 %v845
  %v917 = vunpack.c.h.b16 %v845
  %v918 = vunpack.c.l.b16 %v846
  %v919 = vunpack.c.h.b16 %v846
  %v920 = vunpack.c.l.b16 %v847
  %v921 = vunpack.c.h.b16 %v847
  %v922 = vunpack.c.l.b16 %v848
  %v923 = vunpack.c.h.b16 %v848
  %v924 = vunpack.c.l.b16 %v849
  %v925 = vunpack.c.h.b16 %v849
  %v926 = vunpack.c.l.b16 %v850
  %v927 = vunpack.c.h.b16 %v850
  %v928 = vunpack.c.l.b16 %v851
  %v929 = vunpack.c.h.b16 %v851
  %v930 = vunpack.c.l.b16 %v852
  %v931 = vunpack.c.h.b16 %v852
  %v932 = vunpack.c.l.b16 %v853
  %v933 = vunpack.c.h.b16 %v853
  %v934 = vunpack.c.l.b16 %v854
  %v935 = vunpack.c.h.b16 %v854
  %v936 = vunpack.c.l.b16 %v855
  %v937 = vunpack.c.h.b16 %v855
  %v938 = vunpack.c.l.b16 %v856
  %v939 = vunpack.c.h.b16 %v856
  %v940 = vunpack.c.l.b16 %v857
  %v941 = vunpack.c.h.b16 %v857
  %v942 = vunpack.c.l.b16 %v858
  %v943 = vunpack.c.h.b16 %v858
  %v944 = vunpack.c.l.b16 %v859
  %v945 = vunpack.c.h.b16 %v859
  %v946 = vunpack.c.l.b16 %v860
  %v947 = vunpack.c.h.b16 %v860
  %v948 = vunpack.c.l.b16 %v861
  %v949 = vunpack.c.h.b16 %v861
  %v950 = vunpack.c.l.b16 %v862
  %v951 = vunpack.c.h.b16 %v862
  %v952 = vunpack.c.l.b16 %v863
  %v953 = vunpack.c.h.b16 %v863
  %v954 = vunpack.c.l.b16 %v864
  %v955 = vunpack.c.h.b16 %v864
  %v956 = vunpack.c.l.b16 %v865
  %v957 = vunpack.c.h.b16 %v865
  %v958 = vunpack.c.l.b16 %v866
  %v959 = vunpack.c.h.b16 %v866
  %v960 = vunpack.c.l.b16 %v867
  %v961 = vunpack.c.h.b16 %v867
  %v962 = vunpack.c.l.b16 %v868
  %v963 = vunpack.c.h.b16 %v868
  %v964 = vunpack.c.l.b16 %v869
  %v965 = vunpack.c.h.b16 %v869
  %v966 = vpack.c.b16 %v902, %v902
  %v967 = vpack.c.b16 %v903, %v903
  %v968 = vpack.c.b16 %v904, %v904
  %v969 = vpack.c.b16 %v905, %v905
  %v970 = vpack.c.b16 %v906, %v906
  %v971 = vpack.c.b16 %v907, %v907
  %v972 = vpack.c.b16 %v908, %v908
  %v973 = vpack.c.b16 %v909, %v909
  %v974 = vpack.c.b16 %v910, %v910
  %v975 = vpack.c.b16 %v911, %v911
  %v976 = vpack.c.b16 %v912, %v912
  %v977 = vpack.c.b16 %v913, %v913
  %v978 = vpack.c.b16 %v914, %v914
  %v979 = vpack.c.b16 %v915, %v915
  %v980 = vpack.c.b16 %v916, %v916
  %v981 = vpack.c.b16 %v917, %v917
  %v982 = vpack.c.b16 %v918, %v918
  %v983 = vpack.c.b16 %v919, %v919
  %v984 = vpack.c.b16 %v920, %v920
  %v985 = vpack.c.b16 %v921, %v921
  %v986 = vpack.c.b16 %v922, %v922
  %v987 = vpack.c.b16 %v923, %v923
  %v988 = vpack.c.b16 %v924, %v924
  %v989 = vpack.c.b16 %v925, %v925
  %v990 = vpack.c.b16 %v926, %v926
  %v991 = vpack.c.b16 %v927, %v927
  %v992 = vpack.c.b16 %v928, %v928
  %v993 = vpack.c.b16 %v929, %v929
  %v994 = vpack.c.b16 %v930, %v930
  %v995 = vpack.c.b16 %v931, %v931
  %v996 = vpack.c.b16 %v932, %v932
  %v997 = vpack.c.b16 %v933, %v933
  %v998 = vpack.c.b16 %v934, %v934
  %v999 = vpack.c.b16 %v935, %v935
  %v1000 = vpack.c.b16 %v936, %v936
  %v1001 = vpack.c.b16 %v937, %v937
  %v1002 = vpack.c.b16 %v938, %v938
  %v1003 = vpack.c.b16 %v939, %v939
  %v1004 = vpack.c.b16 %v940, %v940
  %v1005 = vpack.c.b16 %v941, %v941
  %v1006 = vpack.c.b16 %v942, %v942
  %v1007 = vpack.c.b16 %v943, %v943
  %v1008 = vpack.c.b16 %v944, %v944
  %v1009 = vpack.c.b16 %v945, %v945
  %v1010 = vpack.c.b16 %v946, %v946
  %v1011 = vpack.c.b16 %v947, %v947
  %v1012 = vpack.c.b16 %v948, %v948
  %v1013 = vpack.c.b16 %v949, %v949
  %v1014 = vpack.c.b16 %v950, %v950
  %v1015 = vpack.c.b16 %v951, %v951
  %v1016 = vpack.c.b16 %v952, %v952
  %v1017 = vpack.c.b16 %v953, %v953
  %v1018 = vpack.c.b16 %v954, %v954
  %v1019 = vpack.c.b16 %v955, %v955
  %v1020 = vpack.c.b16 %v956, %v956
  %v1021 = vpack.c.b16 %v957, %v957
  %v1022 = vpack.c.b16 %v958, %v958
  %v1023 = vpack.c.b16 %v959, %v959
  %v1024 = vpack.c.b16 %v960, %v960
  %v1025 = vpack.c.b16 %v961, %v961
  %v1026 = vpack.c.b16 %v962, %v962
  %v1027 = vpack.c.b16 %v963, %v963
  %v1028 = vpack.c.b16 %v964, %v964
  %v1029 = vpack.c.b16 %v965, %v965
  %vm1094 = vcmask 60416
  %1095 = vst.msk [vmem:[%s2] sm:$0xf] %vm1094, %v966
  %1096 = vst.msk [vmem:[%s2 + $0x4] sm:$0xf] %vm1094, %v967
  %1097 = vst.msk [vmem:[%s2 + $0x8] sm:$0xf] %vm1094, %v968
  %1098 = vst.msk [vmem:[%s2 + $0xc] sm:$0xf] %vm1094, %v969
  %1099 = vst.msk [vmem:[%s2 + $0x10] sm:$0xf] %vm1094, %v970
  %1100 = vst.msk [vmem:[%s2 + $0x14] sm:$0xf] %vm1094, %v971
  %1101 = vst.msk [vmem:[%s2 + $0x18] sm:$0xf] %vm1094, %v972
  %1102 = vst.msk [vmem:[%s2 + $0x1c] sm:$0xf] %vm1094, %v973
  %1103 = vst.msk [vmem:[%s2 + $0x20] sm:$0xf] %vm1094, %v974
  %1104 = vst.msk [vmem:[%s2 + $0x24] sm:$0xf] %vm1094, %v975
  %1105 = vst.msk [vmem:[%s2 + $0x28] sm:$0xf] %vm1094, %v976
  %1106 = vst.msk [vmem:[%s2 + $0x2c] sm:$0xf] %vm1094, %v977
  %1107 = vst.msk [vmem:[%s2 + $0x30] sm:$0xf] %vm1094, %v978
  %1108 = vst.msk [vmem:[%s2 + $0x34] sm:$0xf] %vm1094, %v979
  %1109 = vst.msk [vmem:[%s2 + $0x38] sm:$0xf] %vm1094, %v980
  %1110 = vst.msk [vmem:[%s2 + $0x3c] sm:$0xf] %vm1094, %v981
  %1111 = vst.msk [vmem:[%s2 + $0x40] sm:$0xf] %vm1094, %v982
  %1112 = vst.msk [vmem:[%s2 + $0x44] sm:$0xf] %vm1094, %v983
  %1113 = vst.msk [vmem:[%s2 + $0x48] sm:$0xf] %vm1094, %v984
  %1114 = vst.msk [vmem:[%s2 + $0x4c] sm:$0xf] %vm1094, %v985
  %1115 = vst.msk [vmem:[%s2 + $0x50] sm:$0xf] %vm1094, %v986
  %1116 = vst.msk [vmem:[%s2 + $0x54] sm:$0xf] %vm1094, %v987
  %1117 = vst.msk [vmem:[%s2 + $0x58] sm:$0xf] %vm1094, %v988
  %1118 = vst.msk [vmem:[%s2 + $0x5c] sm:$0xf] %vm1094, %v989
  %1119 = vst.msk [vmem:[%s2 + $0x60] sm:$0xf] %vm1094, %v990
  %1120 = vst.msk [vmem:[%s2 + $0x64] sm:$0xf] %vm1094, %v991
  %1121 = vst.msk [vmem:[%s2 + $0x68] sm:$0xf] %vm1094, %v992
  %1122 = vst.msk [vmem:[%s2 + $0x6c] sm:$0xf] %vm1094, %v993
  %1123 = vst.msk [vmem:[%s2 + $0x70] sm:$0xf] %vm1094, %v994
  %1124 = vst.msk [vmem:[%s2 + $0x74] sm:$0xf] %vm1094, %v995
  %1125 = vst.msk [vmem:[%s2 + $0x78] sm:$0xf] %vm1094, %v996
  %1126 = vst.msk [vmem:[%s2 + $0x7c] sm:$0xf] %vm1094, %v997
  %1127 = vst.msk [vmem:[%s2 + $0x80] sm:$0xf] %vm1094, %v998
  %1128 = vst.msk [vmem:[%s2 + $0x84] sm:$0xf] %vm1094, %v999
  %1129 = vst.msk [vmem:[%s2 + $0x88] sm:$0xf] %vm1094, %v1000
  %1130 = vst.msk [vmem:[%s2 + $0x8c] sm:$0xf] %vm1094, %v1001
  %1131 = vst.msk [vmem:[%s2 + $0x90] sm:$0xf] %vm1094, %v1002
  %1132 = vst.msk [vmem:[%s2 + $0x94] sm:$0xf] %vm1094, %v1003
  %1133 = vst.msk [vmem:[%s2 + $0x98] sm:$0xf] %vm1094, %v1004
  %1134 = vst.msk [vmem:[%s2 + $0x9c] sm:$0xf] %vm1094, %v1005
  %1135 = vst.msk [vmem:[%s2 + $0xa0] sm:$0xf] %vm1094, %v1006
  %1136 = vst.msk [vmem:[%s2 + $0xa4] sm:$0xf] %vm1094, %v1007
  %1137 = vst.msk [vmem:[%s2 + $0xa8] sm:$0xf] %vm1094, %v1008
  %1138 = vst.msk [vmem:[%s2 + $0xac] sm:$0xf] %vm1094, %v1009
  %1139 = vst.msk [vmem:[%s2 + $0xb0] sm:$0xf] %vm1094, %v1010
  %1140 = vst.msk [vmem:[%s2 + $0xb4] sm:$0xf] %vm1094, %v1011
  %1141 = vst.msk [vmem:[%s2 + $0xb8] sm:$0xf] %vm1094, %v1012
  %1142 = vst.msk [vmem:[%s2 + $0xbc] sm:$0xf] %vm1094, %v1013
  %1143 = vst.msk [vmem:[%s2 + $0xc0] sm:$0xf] %vm1094, %v1014
  %1144 = vst.msk [vmem:[%s2 + $0xc4] sm:$0xf] %vm1094, %v1015
  %1145 = vst.msk [vmem:[%s2 + $0xc8] sm:$0xf] %vm1094, %v1016
  %1146 = vst.msk [vmem:[%s2 + $0xcc] sm:$0xf] %vm1094, %v1017
  %1147 = vst.msk [vmem:[%s2 + $0xd0] sm:$0xf] %vm1094, %v1018
  %1148 = vst.msk [vmem:[%s2 + $0xd4] sm:$0xf] %vm1094, %v1019
  %1149 = vst.msk [vmem:[%s2 + $0xd8] sm:$0xf] %vm1094, %v1020
  %1150 = vst.msk [vmem:[%s2 + $0xdc] sm:$0xf] %vm1094, %v1021
  %1151 = vst.msk [vmem:[%s2 + $0xe0] sm:$0xf] %vm1094, %v1022
  %1152 = vst.msk [vmem:[%s2 + $0xe4] sm:$0xf] %vm1094, %v1023
  %1153 = vst.msk [vmem:[%s2 + $0xe8] sm:$0xf] %vm1094, %v1024
  %1154 = vst.msk [vmem:[%s2 + $0xec] sm:$0xf] %vm1094, %v1025
  %1155 = vst.msk [vmem:[%s2 + $0xf0] sm:$0xf] %vm1094, %v1026
  %1156 = vst.msk [vmem:[%s2 + $0xf4] sm:$0xf] %vm1094, %v1027
  %1157 = vst.msk [vmem:[%s2 + $0xf8] sm:$0xf] %vm1094, %v1028
  %1158 = vst.msk [vmem:[%s2 + $0xfc] sm:$0xf] %vm1094, %v1029
  // Predicated region
  $region10: #{_forward_impl.5} parent=0 // pred_check
    _
  $region11: #{_forward_impl.5} parent=0 // pred_check_branch
    %1160 = sbr.rel (0) target = $region13
  $region12: #{_forward_impl.5} parent=0 // pred_region
    _
  $region13: #{_forward_impl.5} parent=0 // pred_fallthru
    _
  // Predicated region
  $region14: #{_forward_impl.5} parent=0 // pred_check
    _
  $region15: #{_forward_impl.5} parent=0 // pred_check_branch
    %1162 = sbr.rel (0) target = $region17
  $region16: #{_forward_impl.5} parent=0 // pred_region
    _
  $region17: #{_forward_impl.5} parent=0 // pred_fallthru
    _

// kernel: _forward_impl.6
$region0: #{_forward_impl.6}
  #allocation0 [shape = 'u32[]', space=smem, size = 0x4, offset = 0x4, fixed_abs, tag = 'smem constant byte address 0x4 - core index']
  #allocation1 [shape = 'u32[144,128]{1,0:T(1,128)}', space=vmem, size = 0x12000, scoped, tag = 'internal scratch']
  %s0 = inlined_call_operand.vmem [shape: bf16[128,128], index: 0, kind: input, shape index: {}]
  %s1 = inlined_call_operand.vmem [shape: bf16[128,16], index: 1, kind: input, shape index: {}]
  %s2 = inlined_call_operand.vmem [shape: bf16[128,16], index: 2, kind: output, shape index: {0}]
  %s3 = inlined_call_operand.vmem [shape: f32[8,16], index: 3, kind: output, shape index: {1}]
  %s4 = inlined_call_operand.vmem [shape: f32[8,16], index: 4, kind: output, shape index: {2}]
  %5 = xla_tuple %s2, %s3, %s4
  %s6 = sld [smem:[#allocation0]]
  $region38: #{_forward_impl.6} parent=0
    _
  %s8 = ssub.s32 1, %s6
  %s9 = scalar_select 0, %s8, %s6
  // Predicated region
  $region2: #{_forward_impl.6} parent=0 // pred_check
    _
  $region3: #{_forward_impl.6} parent=0 // pred_check_branch
    %11 = sbr.rel (0) target = $region5
  $region4: #{_forward_impl.6} parent=0 // pred_region
    %s12 = sadd.s32 0, 0
    %s13 = smul.u32 16, %s12
    %p14 = scmp.lt.s32.totalorder %s13, 15
    %s15 = scalar_select %p14, %s13, 15
    %s16 = smul.addr %s15, 4
    %s17 = scalar_lea.vmem %s0, %s16
    %s18 = sadd.s32 0, 0
    %s19 = smul.u32 16, %s18
  $region5: #{_forward_impl.6} parent=0 // pred_fallthru
    _
  // Predicated region
  $region6: #{_forward_impl.6} parent=0 // pred_check
    _
  $region7: #{_forward_impl.6} parent=0 // pred_check_branch
    %21 = sbr.rel (0) target = $region9
  $region8: #{_forward_impl.6} parent=0 // pred_region
    _
  $region9: #{_forward_impl.6} parent=0 // pred_fallthru
    _
  %s22 = sadd.s32 0, 0
  %s23 = smul.u32 16, %s22
  %p24 = scmp.lt.s32.totalorder %s23, 15
  %s25 = scalar_select %p24, %s23, 15
  %s26 = smul.addr %s25, 4
  %s27 = scalar_lea.vmem %s0, %s26
  %s28 = sadd.s32 0, 0
  %s29 = smul.u32 16, %s28
  %p30 = scmp.lt.s32.totalorder %s29, 15
  %s31 = scalar_select %p30, %s29, 15
  %s32 = smul.addr %s31, 4
  %s33 = scalar_lea.vmem %s2, %s32
  %s34 = sadd.s32 0, 0
  %s35 = smul.u32 16, %s34
  %p36 = scmp.lt.s32.totalorder %s35, 15
  %s37 = scalar_select %p36, %s35, 15
  %s38 = smul.addr %s37, 4
  %s39 = scalar_lea.vmem %s0, %s38
  %s40 = sadd.s32 0, 0
  %s41 = smul.u32 16, %s40
  %s42 = sadd.s32 0, 0
  %s43 = smul.u32 16, %s42
  %p44 = scmp.lt.s32.totalorder %s43, 15
  %s45 = scalar_select %p44, %s43, 15
  %s46 = smul.addr %s45, 4
  %s47 = scalar_lea.vmem %s2, %s46
  %s48 = sadd.s32 0, 0
  %s49 = smul.u32 16, %s48
  %p51 = scmp.eq.s32.totalorder 0, 0
  // Predicated region
  $region10: #{_forward_impl.6} parent=0 // pred_check
    %p52 = pneg %p51
  $region11: #{_forward_impl.6} parent=0 // pred_check_branch
    %54 = sbr.rel (%p52) target = $region13
  $region12: #{_forward_impl.6} parent=0 // pred_region
    %vm55 = vcmask 130048
    %56 = vst.msk [vmem:[%s3] sm:$0xff] %vm55, 0.0
    %57 = vst.msk [vmem:[%s4] sm:$0xff] %vm55, 0.0
  $region13: #{_forward_impl.6} parent=0 // pred_fallthru
    _
  %v58 = vld [vmem:[%s39] sm:$0xf]
  %v59 = vld [vmem:[%s39 + $0x4] sm:$0xf]
  %v60 = vld [vmem:[%s39 + $0x8] sm:$0xf]
  %v61 = vld [vmem:[%s39 + $0xc] sm:$0xf]
  %v62 = vld [vmem:[%s39 + $0x10] sm:$0xf]
  %v63 = vld [vmem:[%s39 + $0x14] sm:$0xf]
  %v64 = vld [vmem:[%s39 + $0x18] sm:$0xf]
  %v65 = vld [vmem:[%s39 + $0x1c] sm:$0xf]
  %v66 = vld [vmem:[%s39 + $0x20] sm:$0xf]
  %v67 = vld [vmem:[%s39 + $0x24] sm:$0xf]
  %v68 = vld [vmem:[%s39 + $0x28] sm:$0xf]
  %v69 = vld [vmem:[%s39 + $0x2c] sm:$0xf]
  %v70 = vld [vmem:[%s39 + $0x30] sm:$0xf]
  %v71 = vld [vmem:[%s39 + $0x34] sm:$0xf]
  %v72 = vld [vmem:[%s39 + $0x38] sm:$0xf]
  %v73 = vld [vmem:[%s39 + $0x3c] sm:$0xf]
  %v74 = vld [vmem:[%s1] sm:$0xf]
  %v75 = vld [vmem:[%s1 + $0x4] sm:$0xf]
  %v76 = vld [vmem:[%s1 + $0x8] sm:$0xf]
  %v77 = vld [vmem:[%s1 + $0xc] sm:$0xf]
  %v78 = vld [vmem:[%s1 + $0x10] sm:$0xf]
  %v79 = vld [vmem:[%s1 + $0x14] sm:$0xf]
  %v80 = vld [vmem:[%s1 + $0x18] sm:$0xf]
  %v81 = vld [vmem:[%s1 + $0x1c] sm:$0xf]
  %v82 = vld [vmem:[%s1 + $0x20] sm:$0xf]
  %v83 = vld [vmem:[%s1 + $0x24] sm:$0xf]
  %v84 = vld [vmem:[%s1 + $0x28] sm:$0xf]
  %v85 = vld [vmem:[%s1 + $0x2c] sm:$0xf]
  %v86 = vld [vmem:[%s1 + $0x30] sm:$0xf]
  %v87 = vld [vmem:[%s1 + $0x34] sm:$0xf]
  %v88 = vld [vmem:[%s1 + $0x38] sm:$0xf]
  %v89 = vld [vmem:[%s1 + $0x3c] sm:$0xf]
  %v106 = vunpack.c.l.b16 %v58
  %v107 = vunpack.c.l.b16 %v59
  %v108 = vunpack.c.l.b16 %v60
  %v109 = vunpack.c.l.b16 %v61
  %v110 = vunpack.c.l.b16 %v62
  %v111 = vunpack.c.l.b16 %v63
  %v112 = vunpack.c.l.b16 %v64
  %v113 = vunpack.c.l.b16 %v65
  %v114 = vunpack.c.l.b16 %v66
  %v115 = vunpack.c.l.b16 %v67
  %v116 = vunpack.c.l.b16 %v68
  %v117 = vunpack.c.l.b16 %v69
  %v118 = vunpack.c.l.b16 %v70
  %v119 = vunpack.c.l.b16 %v71
  %v120 = vunpack.c.l.b16 %v72
  %v121 = vunpack.c.l.b16 %v73
  %v122 = vpack.c.b16 %v107, %v106
  %v123 = vpack.c.b16 %v109, %v108
  %v124 = vpack.c.b16 %v111, %v110
  %v125 = vpack.c.b16 %v113, %v112
  %v126 = vpack.c.b16 %v115, %v114
  %v127 = vpack.c.b16 %v117, %v116
  %v128 = vpack.c.b16 %v119, %v118
  %v129 = vpack.c.b16 %v121, %v120
  %v154 = vunpack.c.l.b16 %v74
  %v155 = vunpack.c.l.b16 %v75
  %v156 = vunpack.c.l.b16 %v76
  %v157 = vunpack.c.l.b16 %v77
  %v158 = vunpack.c.l.b16 %v78
  %v159 = vunpack.c.l.b16 %v79
  %v160 = vunpack.c.l.b16 %v80
  %v161 = vunpack.c.l.b16 %v81
  %v162 = vunpack.c.l.b16 %v82
  %v163 = vunpack.c.l.b16 %v83
  %v164 = vunpack.c.l.b16 %v84
  %v165 = vunpack.c.l.b16 %v85
  %v166 = vunpack.c.l.b16 %v86
  %v167 = vunpack.c.l.b16 %v87
  %v168 = vunpack.c.l.b16 %v88
  %v169 = vunpack.c.l.b16 %v89
  %v170 = vpack.c.b16 %v155, %v154
  %v171 = vpack.c.b16 %v157, %v156
  %v172 = vpack.c.b16 %v159, %v158
  %v173 = vpack.c.b16 %v161, %v160
  %v174 = vpack.c.b16 %v163, %v162
  %v175 = vpack.c.b16 %v165, %v164
  %v176 = vpack.c.b16 %v167, %v166
  %v177 = vpack.c.b16 %v169, %v168
  %186 = vmatprep.subr.bf16.mxu0 0
  %187 = vmatpush1.bf16.msra.mxu0 %v177
  %188 = vmatprep.subr.bf16.mxu0 0
  %189 = vmatpush1.bf16.msra.mxu0 %v176
  %190 = vmatprep.subr.bf16.mxu0 0
  %191 = vmatpush1.bf16.msra.mxu0 %v175
  %192 = vmatprep.subr.bf16.mxu0 0
  %193 = vmatpush1.bf16.msra.mxu0 %v174
  %194 = vmatprep.subr.bf16.mxu0 0
  %195 = vmatpush1.bf16.msra.mxu0 %v173
  %196 = vmatprep.subr.bf16.mxu0 0
  %197 = vmatpush1.bf16.msra.mxu0 %v172
  %198 = vmatprep.subr.bf16.mxu0 0
  %199 = vmatpush1.bf16.msra.mxu0 %v171
  %200 = vmatprep.subr.bf16.mxu0 0
  %201 = vmatpush1.bf16.msra.mxu0 %v170
  %202 = vmatprep.subr.bf16.mxu0 0
  %203 = vmatpush2.bf16.msra.mxu0 0
  %204 = vmatprep.subr.bf16.mxu0 0
  %205 = vmatpush2.bf16.msra.mxu0 0
  %206 = vmatprep.subr.bf16.mxu0 0
  %207 = vmatpush2.bf16.msra.mxu0 0
  %208 = vmatprep.subr.bf16.mxu0 0
  %209 = vmatpush2.bf16.msra.mxu0 0
  %210 = vmatprep.subr.bf16.mxu0 0
  %211 = vmatpush2.bf16.msra.mxu0 0
  %212 = vmatprep.subr.bf16.mxu0 0
  %213 = vmatpush2.bf16.msra.mxu0 0
  %214 = vmatprep.subr.bf16.mxu0 0
  %215 = vmatpush2.bf16.msra.mxu0 0
  %216 = vmatprep.subr.bf16.mxu0 0
  %217 = vmatpush2.bf16.msra.mxu0 0
  %218 = vmatprep.mubr.bf16.mxu0 0
  %219 = vmatmul.mubr.bf16.gmra.mxu0 %v122
  %v220 = vpop.f32.mrf.mxu0
  %v221 = vadd.f32 0.0, %v220
  %v222 = vpop.f32.mrf.mxu0
  %v223 = vpop.f32.mrf.mxu0
  %v224 = vadd.f32 0.0, %v223
  %v225 = vpop.f32.mrf.mxu0
  %226 = vmatprep.mubr.bf16.mxu0 0
  %227 = vmatmul.mubr.bf16.gmra.mxu0 %v123
  %v228 = vpop.f32.mrf.mxu0
  %v229 = vadd.f32 0.0, %v228
  %v230 = vpop.f32.mrf.mxu0
  %v231 = vpop.f32.mrf.mxu0
  %v232 = vadd.f32 0.0, %v231
  %v233 = vpop.f32.mrf.mxu0
  %234 = vmatprep.mubr.bf16.mxu0 0
  %235 = vmatmul.mubr.bf16.gmra.mxu0 %v124
  %v236 = vpop.f32.mrf.mxu0
  %v237 = vadd.f32 0.0, %v236
  %v238 = vpop.f32.mrf.mxu0
  %v239 = vpop.f32.mrf.mxu0
  %v240 = vadd.f32 0.0, %v239
  %v241 = vpop.f32.mrf.mxu0
  %242 = vmatprep.mubr.bf16.mxu0 0
  %243 = vmatmul.mubr.bf16.gmra.mxu0 %v125
  %v244 = vpop.f32.mrf.mxu0
  %v245 = vadd.f32 0.0, %v244
  %v246 = vpop.f32.mrf.mxu0
  %v247 = vpop.f32.mrf.mxu0
  %v248 = vadd.f32 0.0, %v247
  %v249 = vpop.f32.mrf.mxu0
  %250 = vmatprep.mubr.bf16.mxu0 0
  %251 = vmatmul.mubr.bf16.gmra.mxu0 %v126
  %v252 = vpop.f32.mrf.mxu0
  %v253 = vadd.f32 0.0, %v252
  %v254 = vpop.f32.mrf.mxu0
  %v255 = vpop.f32.mrf.mxu0
  %v256 = vadd.f32 0.0, %v255
  %v257 = vpop.f32.mrf.mxu0
  %258 = vmatprep.mubr.bf16.mxu0 0
  %259 = vmatmul.mubr.bf16.gmra.mxu0 %v127
  %v260 = vpop.f32.mrf.mxu0
  %v261 = vadd.f32 0.0, %v260
  %v262 = vpop.f32.mrf.mxu0
  %v263 = vpop.f32.mrf.mxu0
  %v264 = vadd.f32 0.0, %v263
  %v265 = vpop.f32.mrf.mxu0
  %266 = vmatprep.mubr.bf16.mxu0 0
  %267 = vmatmul.mubr.bf16.gmra.mxu0 %v128
  %v268 = vpop.f32.mrf.mxu0
  %v269 = vadd.f32 0.0, %v268
  %v270 = vpop.f32.mrf.mxu0
  %v271 = vpop.f32.mrf.mxu0
  %v272 = vadd.f32 0.0, %v271
  %v273 = vpop.f32.mrf.mxu0
  %274 = vmatprep.mubr.bf16.mxu0 0
  %275 = vmatmul.mubr.bf16.gmra.mxu0 %v129
  %v276 = vpop.f32.mrf.mxu0
  %v277 = vadd.f32 0.0, %v276
  %v278 = vpop.f32.mrf.mxu0
  %v279 = vpop.f32.mrf.mxu0
  %v280 = vadd.f32 0.0, %v279
  %v281 = vpop.f32.mrf.mxu0
  %282 = vdwg.mxu0
  %v283 = vpack.c.bf16 %v224, %v221
  %v284 = vpack.c.bf16 %v232, %v229
  %v285 = vpack.c.bf16 %v240, %v237
  %v286 = vpack.c.bf16 %v248, %v245
  %v287 = vpack.c.bf16 %v256, %v253
  %v288 = vpack.c.bf16 %v264, %v261
  %v289 = vpack.c.bf16 %v272, %v269
  %v290 = vpack.c.bf16 %v280, %v277
  %v299 = vunpack.c.l.b16 %v283
  %v300 = vunpack.c.h.b16 %v283
  %v301 = vunpack.c.l.b16 %v284
  %v302 = vunpack.c.h.b16 %v284
  %v303 = vunpack.c.l.b16 %v285
  %v304 = vunpack.c.h.b16 %v285
  %v305 = vunpack.c.l.b16 %v286
  %v306 = vunpack.c.h.b16 %v286
  %v307 = vunpack.c.l.b16 %v287
  %v308 = vunpack.c.h.b16 %v287
  %v309 = vunpack.c.l.b16 %v288
  %v310 = vunpack.c.h.b16 %v288
  %v311 = vunpack.c.l.b16 %v289
  %v312 = vunpack.c.h.b16 %v289
  %v313 = vunpack.c.l.b16 %v290
  %v314 = vunpack.c.h.b16 %v290
  %v315 = vpack.c.b16 %v299, %v299
  %v316 = vpack.c.b16 %v300, %v300
  %v317 = vpack.c.b16 %v301, %v301
  %v318 = vpack.c.b16 %v302, %v302
  %v319 = vpack.c.b16 %v303, %v303
  %v320 = vpack.c.b16 %v304, %v304
  %v321 = vpack.c.b16 %v305, %v305
  %v322 = vpack.c.b16 %v306, %v306
  %v323 = vpack.c.b16 %v307, %v307
  %v324 = vpack.c.b16 %v308, %v308
  %v325 = vpack.c.b16 %v309, %v309
  %v326 = vpack.c.b16 %v310, %v310
  %v327 = vpack.c.b16 %v311, %v311
  %v328 = vpack.c.b16 %v312, %v312
  %v329 = vpack.c.b16 %v313, %v313
  %v330 = vpack.c.b16 %v314, %v314
  %vm347 = vcmask 125952
  %348 = vst.msk [vmem:[%s47] sm:$0xf] %vm347, %v315
  %349 = vst.msk [vmem:[%s47 + $0x4] sm:$0xf] %vm347, %v316
  %350 = vst.msk [vmem:[%s47 + $0x8] sm:$0xf] %vm347, %v317
  %351 = vst.msk [vmem:[%s47 + $0xc] sm:$0xf] %vm347, %v318
  %352 = vst.msk [vmem:[%s47 + $0x10] sm:$0xf] %vm347, %v319
  %353 = vst.msk [vmem:[%s47 + $0x14] sm:$0xf] %vm347, %v320
  %354 = vst.msk [vmem:[%s47 + $0x18] sm:$0xf] %vm347, %v321
  %355 = vst.msk [vmem:[%s47 + $0x1c] sm:$0xf] %vm347, %v322
  %356 = vst.msk [vmem:[%s47 + $0x20] sm:$0xf] %vm347, %v323
  %357 = vst.msk [vmem:[%s47 + $0x24] sm:$0xf] %vm347, %v324
  %358 = vst.msk [vmem:[%s47 + $0x28] sm:$0xf] %vm347, %v325
  %359 = vst.msk [vmem:[%s47 + $0x2c] sm:$0xf] %vm347, %v326
  %360 = vst.msk [vmem:[%s47 + $0x30] sm:$0xf] %vm347, %v327
  %361 = vst.msk [vmem:[%s47 + $0x34] sm:$0xf] %vm347, %v328
  %362 = vst.msk [vmem:[%s47 + $0x38] sm:$0xf] %vm347, %v329
  %363 = vst.msk [vmem:[%s47 + $0x3c] sm:$0xf] %vm347, %v330
  %v364 = vld [vmem:[%s3] sm:$0xff]
  %vm365 = vcmask 130048
  %v366 = vsel %vm365, %v221, 0.0
  %v367 = vsel %vm365, %v224, 0.0
  %v368 = vadd.f32 %v366, %v367
  %v369 = vsel %vm365, %v229, 0.0
  %v370 = vadd.f32 %v368, %v369
  %v371 = vsel %vm365, %v232, 0.0
  %v372 = vadd.f32 %v370, %v371
  %v373 = vsel %vm365, %v237, 0.0
  %v374 = vadd.f32 %v372, %v373
  %v375 = vsel %vm365, %v240, 0.0
  %v376 = vadd.f32 %v374, %v375
  %v377 = vsel %vm365, %v245, 0.0
  %v378 = vadd.f32 %v376, %v377
  %v379 = vsel %vm365, %v248, 0.0
  %v380 = vadd.f32 %v378, %v379
  %v381 = vsel %vm365, %v253, 0.0
  %v382 = vadd.f32 %v380, %v381
  %v383 = vsel %vm365, %v256, 0.0
  %v384 = vadd.f32 %v382, %v383
  %v385 = vsel %vm365, %v261, 0.0
  %v386 = vadd.f32 %v384, %v385
  %v387 = vsel %vm365, %v264, 0.0
  %v388 = vadd.f32 %v386, %v387
  %v389 = vsel %vm365, %v269, 0.0
  %v390 = vadd.f32 %v388, %v389
  %v391 = vsel %vm365, %v272, 0.0
  %v392 = vadd.f32 %v390, %v391
  %v393 = vsel %vm365, %v277, 0.0
  %v394 = vadd.f32 %v392, %v393
  %v395 = vsel %vm365, %v280, 0.0
  %v396 = vadd.f32 %v394, %v395
  %v397 = vadd.f32 %v364, %v396
  %398 = vst.msk [vmem:[%s3] sm:$0xff] %vm365, %v397
  %v399 = vld [vmem:[%s4] sm:$0xff]
  %v400 = vmul.f32 %v221, %v221
  %v401 = vmul.f32 %v224, %v224
  %v402 = vmul.f32 %v229, %v229
  %v403 = vmul.f32 %v232, %v232
  %v404 = vmul.f32 %v237, %v237
  %v405 = vmul.f32 %v240, %v240
  %v406 = vmul.f32 %v245, %v245
  %v407 = vmul.f32 %v248, %v248
  %v408 = vmul.f32 %v253, %v253
  %v409 = vmul.f32 %v256, %v256
  %v410 = vmul.f32 %v261, %v261
  %v411 = vmul.f32 %v264, %v264
  %v412 = vmul.f32 %v269, %v269
  %v413 = vmul.f32 %v272, %v272
  %v414 = vmul.f32 %v277, %v277
  %v415 = vmul.f32 %v280, %v280
  %v416 = vsel %vm365, %v400, 0.0
  %v417 = vsel %vm365, %v401, 0.0
  %v418 = vadd.f32 %v416, %v417
  %v419 = vsel %vm365, %v402, 0.0
  %v420 = vadd.f32 %v418, %v419
  %v421 = vsel %vm365, %v403, 0.0
  %v422 = vadd.f32 %v420, %v421
  %v423 = vsel %vm365, %v404, 0.0
  %v424 = vadd.f32 %v422, %v423
  %v425 = vsel %vm365, %v405, 0.0
  %v426 = vadd.f32 %v424, %v425
  %v427 = vsel %vm365, %v406, 0.0
  %v428 = vadd.f32 %v426, %v427
  %v429 = vsel %vm365, %v407, 0.0
  %v430 = vadd.f32 %v428, %v429
  %v431 = vsel %vm365, %v408, 0.0
  %v432 = vadd.f32 %v430, %v431
  %v433 = vsel %vm365, %v409, 0.0
  %v434 = vadd.f32 %v432, %v433
  %v435 = vsel %vm365, %v410, 0.0
  %v436 = vadd.f32 %v434, %v435
  %v437 = vsel %vm365, %v411, 0.0
  %v438 = vadd.f32 %v436, %v437
  %v439 = vsel %vm365, %v412, 0.0
  %v440 = vadd.f32 %v438, %v439
  %v441 = vsel %vm365, %v413, 0.0
  %v442 = vadd.f32 %v440, %v441
  %v443 = vsel %vm365, %v414, 0.0
  %v444 = vadd.f32 %v442, %v443
  %v445 = vsel %vm365, %v415, 0.0
  %v446 = vadd.f32 %v444, %v445
  %v447 = vadd.f32 %v399, %v446
  %448 = vst.msk [vmem:[%s4] sm:$0xff] %vm365, %v447
  %s449 = sadd.s32 0, 0
  %s450 = smul.u32 16, %s449
  %p451 = scmp.lt.s32.totalorder %s450, 15
  %s452 = scalar_select %p451, %s450, 15
  %s453 = smul.addr %s452, 4
  %s454 = scalar_lea.vmem %s2, %s453
  // Predicated region
  $region14: #{_forward_impl.6} parent=0 // pred_check
    _
  $region15: #{_forward_impl.6} parent=0 // pred_check_branch
    %456 = sbr.rel (0) target = $region17
  $region16: #{_forward_impl.6} parent=0 // pred_region
    %s457 = sadd.s32 0, 0
    %s458 = smul.u32 16, %s457
  $region17: #{_forward_impl.6} parent=0 // pred_fallthru
    _
  // Predicated region
  $region18: #{_forward_impl.6} parent=0 // pred_check
    _
  $region19: #{_forward_impl.6} parent=0 // pred_check_branch
    %460 = sbr.rel (0) target = $region21
  $region20: #{_forward_impl.6} parent=0 // pred_region
    _
  $region21: #{_forward_impl.6} parent=0 // pred_fallthru
    _
  // Predicated region
  $region22: #{_forward_impl.6} parent=0 // pred_check
    _
  $region23: #{_forward_impl.6} parent=0 // pred_check_branch
    %462 = sbr.rel (0) target = $region25
  $region24: #{_forward_impl.6} parent=0 // pred_region
    _
  $region25: #{_forward_impl.6} parent=0 // pred_fallthru
    _
  // Predicated region
  $region26: #{_forward_impl.6} parent=0 // pred_check
    _
  $region27: #{_forward_impl.6} parent=0 // pred_check_branch
    %464 = sbr.rel (0) target = $region29
  $region28: #{_forward_impl.6} parent=0 // pred_region
    %s465 = sadd.s32 0, 0
    %s466 = smul.u32 16, %s465
    %p467 = scmp.lt.s32.totalorder %s466, 15
    %s468 = scalar_select %p467, %s466, 15
    %s469 = smul.addr %s468, 4
    %s470 = scalar_lea.vmem %s2, %s469
  $region29: #{_forward_impl.6} parent=0 // pred_fallthru
    _
  // Predicated region
  $region30: #{_forward_impl.6} parent=0 // pred_check
    _
  $region31: #{_forward_impl.6} parent=0 // pred_check_branch
    %472 = sbr.rel (0) target = $region33
  $region32: #{_forward_impl.6} parent=0 // pred_region
    _
  $region33: #{_forward_impl.6} parent=0 // pred_fallthru
    _
  // Predicated region
  $region34: #{_forward_impl.6} parent=0 // pred_check
    _
  $region35: #{_forward_impl.6} parent=0 // pred_check_branch
    %474 = sbr.rel (0) target = $region37
  $region36: #{_forward_impl.6} parent=0 // pred_region
    _
  $region37: #{_forward_impl.6} parent=0 // pred_fallthru
    _

// kernel: _forward_impl.7
$region0: #{_forward_impl.7}
  #allocation0 [shape = 'u32[]', space=smem, size = 0x4, offset = 0x4, fixed_abs, tag = 'smem constant byte address 0x4 - core index']
  #allocation1 [shape = 'u32[144,128]{1,0:T(1,128)}', space=vmem, size = 0x12000, scoped, tag = 'internal scratch']
  %s0 = inlined_call_operand.vmem [shape: bf16[32,256], index: 0, kind: input, shape index: {}]
  %s1 = inlined_call_operand.vmem [shape: bf16[256,32], index: 1, kind: input, shape index: {}]
  %s2 = inlined_call_operand.vmem [shape: bf16[32,32], index: 2, kind: output, shape index: {0}]
  %s3 = inlined_call_operand.vmem [shape: f32[8,32], index: 3, kind: output, shape index: {1}]
  %s4 = inlined_call_operand.vmem [shape: f32[8,32], index: 4, kind: output, shape index: {2}]
  %5 = xla_tuple %s2, %s3, %s4
  %s6 = sld [smem:[#allocation0]]
  $region38: #{_forward_impl.7} parent=0
    _
  %s8 = ssub.s32 1, %s6
  %s9 = scalar_select 0, %s8, %s6
  // Predicated region
  $region2: #{_forward_impl.7} parent=0 // pred_check
    _
  $region3: #{_forward_impl.7} parent=0 // pred_check_branch
    %11 = sbr.rel (0) target = $region5
  $region4: #{_forward_impl.7} parent=0 // pred_region
    %s12 = sadd.s32 0, 0
    %s13 = smul.u32 4, %s12
    %p14 = scmp.lt.s32.totalorder %s13, 3
    %s15 = scalar_select %p14, %s13, 3
    %s16 = smul.addr %s15, 2
    %s17 = smul.addr %s16, 4
    %s18 = scalar_lea.vmem %s0, %s17
    %s19 = sadd.s32 0, 0
    %s20 = smul.u32 4, %s19
  $region5: #{_forward_impl.7} parent=0 // pred_fallthru
    _
  // Predicated region
  $region6: #{_forward_impl.7} parent=0 // pred_check
    _
  $region7: #{_forward_impl.7} parent=0 // pred_check_branch
    %22 = sbr.rel (0) target = $region9
  $region8: #{_forward_impl.7} parent=0 // pred_region
    _
  $region9: #{_forward_impl.7} parent=0 // pred_fallthru
    _
  %s23 = sadd.s32 0, 0
  %s24 = smul.u32 4, %s23
  %p25 = scmp.lt.s32.totalorder %s24, 3
  %s26 = scalar_select %p25, %s24, 3
  %s27 = smul.addr %s26, 2
  %s28 = smul.addr %s27, 4
  %s29 = scalar_lea.vmem %s0, %s28
  %s30 = sadd.s32 0, 0
  %s31 = smul.u32 4, %s30
  %p32 = scmp.lt.s32.totalorder %s31, 3
  %s33 = scalar_select %p32, %s31, 3
  %s34 = smul.addr %s33, 4
  %s35 = scalar_lea.vmem %s2, %s34
  %s36 = sadd.s32 0, 0
  %s37 = smul.u32 4, %s36
  %p38 = scmp.lt.s32.totalorder %s37, 3
  %s39 = scalar_select %p38, %s37, 3
  %s40 = smul.addr %s39, 2
  %s41 = smul.addr %s40, 4
  %s42 = scalar_lea.vmem %s0, %s41
  %s43 = sadd.s32 0, 0
  %s44 = smul.u32 4, %s43
  %s45 = sadd.s32 0, 0
  %s46 = smul.u32 4, %s45
  %p47 = scmp.lt.s32.totalorder %s46, 3
  %s48 = scalar_select %p47, %s46, 3
  %s49 = smul.addr %s48, 4
  %s50 = scalar_lea.vmem %s2, %s49
  %s51 = sadd.s32 0, 0
  %s52 = smul.u32 4, %s51
  %p54 = scmp.eq.s32.totalorder 0, 0
  // Predicated region
  $region10: #{_forward_impl.7} parent=0 // pred_check
    %p55 = pneg %p54
  $region11: #{_forward_impl.7} parent=0 // pred_check_branch
    %57 = sbr.rel (%p55) target = $region13
  $region12: #{_forward_impl.7} parent=0 // pred_region
    %vm58 = vcmask 261120
    %59 = vst.msk [vmem:[%s3] sm:$0xff] %vm58, 0.0
    %60 = vst.msk [vmem:[%s4] sm:$0xff] %vm58, 0.0
  $region13: #{_forward_impl.7} parent=0 // pred_fallthru
    _
  %v61 = vld [vmem:[%s42] sm:$0xff]
  %v62 = vld [vmem:[%s42 + $0x8] sm:$0xff]
  %v63 = vld [vmem:[%s42 + $0x10] sm:$0xff]
  %v64 = vld [vmem:[%s42 + $0x18] sm:$0xff]
  %v65 = vld [vmem:[%s1] sm:$0xf]
  %v66 = vld [vmem:[%s1 + $0x4] sm:$0xf]
  %v67 = vld [vmem:[%s1 + $0x8] sm:$0xf]
  %v68 = vld [vmem:[%s1 + $0xc] sm:$0xf]
  %v69 = vld [vmem:[%s1 + $0x10] sm:$0xf]
  %v70 = vld [vmem:[%s1 + $0x14] sm:$0xf]
  %v71 = vld [vmem:[%s1 + $0x18] sm:$0xf]
  %v72 = vld [vmem:[%s1 + $0x1c] sm:$0xf]
  %v73 = vld [vmem:[%s1 + $0x20] sm:$0xf]
  %v74 = vld [vmem:[%s1 + $0x24] sm:$0xf]
  %v75 = vld [vmem:[%s1 + $0x28] sm:$0xf]
  %v76 = vld [vmem:[%s1 + $0x2c] sm:$0xf]
  %v77 = vld [vmem:[%s1 + $0x30] sm:$0xf]
  %v78 = vld [vmem:[%s1 + $0x34] sm:$0xf]
  %v79 = vld [vmem:[%s1 + $0x38] sm:$0xf]
  %v80 = vld [vmem:[%s1 + $0x3c] sm:$0xf]
  %v81 = vld [vmem:[%s1 + $0x40] sm:$0xf]
  %v82 = vld [vmem:[%s1 + $0x44] sm:$0xf]
  %v83 = vld [vmem:[%s1 + $0x48] sm:$0xf]
  %v84 = vld [vmem:[%s1 + $0x4c] sm:$0xf]
  %v85 = vld [vmem:[%s1 + $0x50] sm:$0xf]
  %v86 = vld [vmem:[%s1 + $0x54] sm:$0xf]
  %v87 = vld [vmem:[%s1 + $0x58] sm:$0xf]
  %v88 = vld [vmem:[%s1 + $0x5c] sm:$0xf]
  %v89 = vld [vmem:[%s1 + $0x60] sm:$0xf]
  %v90 = vld [vmem:[%s1 + $0x64] sm:$0xf]
  %v91 = vld [vmem:[%s1 + $0x68] sm:$0xf]
  %v92 = vld [vmem:[%s1 + $0x6c] sm:$0xf]
  %v93 = vld [vmem:[%s1 + $0x70] sm:$0xf]
  %v94 = vld [vmem:[%s1 + $0x74] sm:$0xf]
  %v95 = vld [vmem:[%s1 + $0x78] sm:$0xf]
  %v96 = vld [vmem:[%s1 + $0x7c] sm:$0xf]
  %v101 = vunpack.c.l.b16 %v61
  %v102 = vunpack.c.h.b16 %v61
  %v103 = vunpack.c.l.b16 %v62
  %v104 = vunpack.c.h.b16 %v62
  %v105 = vunpack.c.l.b16 %v63
  %v106 = vunpack.c.h.b16 %v63
  %v107 = vunpack.c.l.b16 %v64
  %v108 = vunpack.c.h.b16 %v64
  %v109 = vpack.c.b16 %v103, %v101
  %v110 = vpack.c.b16 %v104, %v102
  %v111 = vpack.c.b16 %v107, %v105
  %v112 = vpack.c.b16 %v108, %v106
  %v149 = vunpack.c.l.b16 %v65
  %v150 = vunpack.c.l.b16 %v66
  %v151 = vunpack.c.l.b16 %v67
  %v152 = vunpack.c.l.b16 %v68
  %v153 = vunpack.c.l.b16 %v69
  %v154 = vunpack.c.l.b16 %v70
  %v155 = vunpack.c.l.b16 %v71
  %v156 = vunpack.c.l.b16 %v72
  %v157 = vunpack.c.l.b16 %v73
  %v158 = vunpack.c.l.b16 %v74
  %v159 = vunpack.c.l.b16 %v75
  %v160 = vunpack.c.l.b16 %v76
  %v161 = vunpack.c.l.b16 %v77
  %v162 = vunpack.c.l.b16 %v78
  %v163 = vunpack.c.l.b16 %v79
  %v164 = vunpack.c.l.b16 %v80
  %v165 = vunpack.c.l.b16 %v81
  %v166 = vunpack.c.l.b16 %v82
  %v167 = vunpack.c.l.b16 %v83
  %v168 = vunpack.c.l.b16 %v84
  %v169 = vunpack.c.l.b16 %v85
  %v170 = vunpack.c.l.b16 %v86
  %v171 = vunpack.c.l.b16 %v87
  %v172 = vunpack.c.l.b16 %v88
  %v173 = vunpack.c.l.b16 %v89
  %v174 = vunpack.c.l.b16 %v90
  %v175 = vunpack.c.l.b16 %v91
  %v176 = vunpack.c.l.b16 %v92
  %v177 = vunpack.c.l.b16 %v93
  %v178 = vunpack.c.l.b16 %v94
  %v179 = vunpack.c.l.b16 %v95
  %v180 = vunpack.c.l.b16 %v96
  %v181 = vpack.c.b16 %v150, %v149
  %v182 = vpack.c.b16 %v152, %v151
  %v183 = vpack.c.b16 %v154, %v153
  %v184 = vpack.c.b16 %v156, %v155
  %v185 = vpack.c.b16 %v158, %v157
  %v186 = vpack.c.b16 %v160, %v159
  %v187 = vpack.c.b16 %v162, %v161
  %v188 = vpack.c.b16 %v164, %v163
  %v189 = vpack.c.b16 %v166, %v165
  %v190 = vpack.c.b16 %v168, %v167
  %v191 = vpack.c.b16 %v170, %v169
  %v192 = vpack.c.b16 %v172, %v171
  %v193 = vpack.c.b16 %v174, %v173
  %v194 = vpack.c.b16 %v176, %v175
  %v195 = vpack.c.b16 %v178, %v177
  %v196 = vpack.c.b16 %v180, %v179
  %213 = vmatprep.subr.bf16.mxu0 0
  %214 = vmatpush1.bf16.msra.mxu0 %v188
  %215 = vmatprep.subr.bf16.mxu0 0
  %216 = vmatpush1.bf16.msra.mxu0 %v187
  %217 = vmatprep.subr.bf16.mxu0 0
  %218 = vmatpush1.bf16.msra.mxu0 %v186
  %219 = vmatprep.subr.bf16.mxu0 0
  %220 = vmatpush1.bf16.msra.mxu0 %v185
  %221 = vmatprep.subr.bf16.mxu0 0
  %222 = vmatpush1.bf16.msra.mxu0 %v184
  %223 = vmatprep.subr.bf16.mxu0 0
  %224 = vmatpush1.bf16.msra.mxu0 %v183
  %225 = vmatprep.subr.bf16.mxu0 0
  %226 = vmatpush1.bf16.msra.mxu0 %v182
  %227 = vmatprep.subr.bf16.mxu0 0
  %228 = vmatpush1.bf16.msra.mxu0 %v181
  %229 = vmatprep.subr.bf16.mxu0 0
  %230 = vmatpush2.bf16.msra.mxu0 %v196
  %231 = vmatprep.subr.bf16.mxu0 0
  %232 = vmatpush2.bf16.msra.mxu0 %v195
  %233 = vmatprep.subr.bf16.mxu0 0
  %234 = vmatpush2.bf16.msra.mxu0 %v194
  %235 = vmatprep.subr.bf16.mxu0 0
  %236 = vmatpush2.bf16.msra.mxu0 %v193
  %237 = vmatprep.subr.bf16.mxu0 0
  %238 = vmatpush2.bf16.msra.mxu0 %v192
  %239 = vmatprep.subr.bf16.mxu0 0
  %240 = vmatpush2.bf16.msra.mxu0 %v191
  %241 = vmatprep.subr.bf16.mxu0 0
  %242 = vmatpush2.bf16.msra.mxu0 %v190
  %243 = vmatprep.subr.bf16.mxu0 0
  %244 = vmatpush2.bf16.msra.mxu0 %v189
  %245 = vmatprep.mubr.bf16.mxu0 %v110
  %246 = vmatmul.mubr.bf16.gmra.mxu0 %v109
  %v247 = vpop.f32.mrf.mxu0
  %v248 = vadd.f32 0.0, %v247
  %v249 = vpop.f32.mrf.mxu0
  %v250 = vpop.f32.mrf.mxu0
  %v251 = vadd.f32 0.0, %v250
  %v252 = vpop.f32.mrf.mxu0
  %253 = vmatprep.mubr.bf16.mxu0 %v112
  %254 = vmatmul.mubr.bf16.gmra.mxu0 %v111
  %v255 = vpop.f32.mrf.mxu0
  %v256 = vadd.f32 0.0, %v255
  %v257 = vpop.f32.mrf.mxu0
  %v258 = vpop.f32.mrf.mxu0
  %v259 = vadd.f32 0.0, %v258
  %v260 = vpop.f32.mrf.mxu0
  %261 = vdwg.mxu0
  %v262 = vpack.c.bf16 %v251, %v248
  %v263 = vpack.c.bf16 %v259, %v256
  %v266 = vunpack.c.l.b16 %v262
  %v267 = vunpack.c.h.b16 %v262
  %v268 = vunpack.c.l.b16 %v263
  %v269 = vunpack.c.h.b16 %v263
  %v270 = vpack.c.b16 %v266, %v266
  %v271 = vpack.c.b16 %v267, %v267
  %v272 = vpack.c.b16 %v268, %v268
  %v273 = vpack.c.b16 %v269, %v269
  %vm278 = vcmask 257024
  %279 = vst.msk [vmem:[%s50] sm:$0xf] %vm278, %v270
  %280 = vst.msk [vmem:[%s50 + $0x4] sm:$0xf] %vm278, %v271
  %281 = vst.msk [vmem:[%s50 + $0x8] sm:$0xf] %vm278, %v272
  %282 = vst.msk [vmem:[%s50 + $0xc] sm:$0xf] %vm278, %v273
  %v283 = vld [vmem:[%s3] sm:$0xff]
  %vm284 = vcmask 261120
  %v285 = vsel %vm284, %v248, 0.0
  %v286 = vsel %vm284, %v251, 0.0
  %v287 = vadd.f32 %v285, %v286
  %v288 = vsel %vm284, %v256, 0.0
  %v289 = vadd.f32 %v287, %v288
  %v290 = vsel %vm284, %v259, 0.0
  %v291 = vadd.f32 %v289, %v290
  %v292 = vadd.f32 %v283, %v291
  %293 = vst.msk [vmem:[%s3] sm:$0xff] %vm284, %v292
  %v294 = vld [vmem:[%s4] sm:$0xff]
  %v295 = vmul.f32 %v248, %v248
  %v296 = vmul.f32 %v251, %v251
  %v297 = vmul.f32 %v256, %v256
  %v298 = vmul.f32 %v259, %v259
  %v299 = vsel %vm284, %v295, 0.0
  %v300 = vsel %vm284, %v296, 0.0
  %v301 = vadd.f32 %v299, %v300
  %v302 = vsel %vm284, %v297, 0.0
  %v303 = vadd.f32 %v301, %v302
  %v304 = vsel %vm284, %v298, 0.0
  %v305 = vadd.f32 %v303, %v304
  %v306 = vadd.f32 %v294, %v305
  %307 = vst.msk [vmem:[%s4] sm:$0xff] %vm284, %v306
  %s308 = sadd.s32 0, 0
  %s309 = smul.u32 4, %s308
  %p310 = scmp.lt.s32.totalorder %s309, 3
  %s311 = scalar_select %p310, %s309, 3
  %s312 = smul.addr %s311, 4
  %s313 = scalar_lea.vmem %s2, %s312
  // Predicated region
  $region14: #{_forward_impl.7} parent=0 // pred_check
    _
  $region15: #{_forward_impl.7} parent=0 // pred_check_branch
    %315 = sbr.rel (0) target = $region17
  $region16: #{_forward_impl.7} parent=0 // pred_region
    %s316 = sadd.s32 0, 0
    %s317 = smul.u32 4, %s316
  $region17: #{_forward_impl.7} parent=0 // pred_fallthru
    _
  // Predicated region
  $region18: #{_forward_impl.7} parent=0 // pred_check
    _
  $region19: #{_forward_impl.7} parent=0 // pred_check_branch
    %319 = sbr.rel (0) target = $region21
  $region20: #{_forward_impl.7} parent=0 // pred_region
    _
  $region21: #{_forward_impl.7} parent=0 // pred_fallthru
    _
  // Predicated region
  $region22: #{_forward_impl.7} parent=0 // pred_check
    _
  $region23: #{_forward_impl.7} parent=0 // pred_check_branch
    %321 = sbr.rel (0) target = $region25
  $region24: #{_forward_impl.7} parent=0 // pred_region
    _
  $region25: #{_forward_impl.7} parent=0 // pred_fallthru
    _
  // Predicated region
  $region26: #{_forward_impl.7} parent=0 // pred_check
    _
  $region27: #{_forward_impl.7} parent=0 // pred_check_branch
    %323 = sbr.rel (0) target = $region29
  $region28: #{_forward_impl.7} parent=0 // pred_region
    %s324 = sadd.s32 0, 0
    %s325 = smul.u32 4, %s324
    %p326 = scmp.lt.s32.totalorder %s325, 3
    %s327 = scalar_select %p326, %s325, 3
    %s328 = smul.addr %s327, 4
    %s329 = scalar_lea.vmem %s2, %s328
  $region29: #{_forward_impl.7} parent=0 // pred_fallthru
    _
  // Predicated region
  $region30: #{_forward_impl.7} parent=0 // pred_check
    _
  $region31: #{_forward_impl.7} parent=0 // pred_check_branch
    %331 = sbr.rel (0) target = $region33
  $region32: #{_forward_impl.7} parent=0 // pred_region
    _
  $region33: #{_forward_impl.7} parent=0 // pred_fallthru
    _
  // Predicated region
  $region34: #{_forward_impl.7} parent=0 // pred_check
    _
  $region35: #{_forward_impl.7} parent=0 // pred_check_branch
    %333 = sbr.rel (0) target = $region37
  $region36: #{_forward_impl.7} parent=0 // pred_region
    _
  $region37: #{_forward_impl.7} parent=0 // pred_fallthru
    _

// kernel: _forward_impl.8
$region0: #{_forward_impl.8}
  #allocation0 [shape = 'u32[]', space=smem, size = 0x4, offset = 0x4, fixed_abs, tag = 'smem constant byte address 0x4 - core index']
  #allocation1 [shape = 'u32[144,128]{1,0:T(1,128)}', space=vmem, size = 0x12000, scoped, tag = 'internal scratch']
  %s0 = inlined_call_operand.vmem [shape: bf16[8,512], index: 0, kind: input, shape index: {}]
  %s1 = inlined_call_operand.vmem [shape: bf16[512,64], index: 1, kind: input, shape index: {}]
  %s2 = inlined_call_operand.vmem [shape: bf16[8,64], index: 2, kind: output, shape index: {0}]
  %s3 = inlined_call_operand.vmem [shape: f32[8,64], index: 3, kind: output, shape index: {1}]
  %s4 = inlined_call_operand.vmem [shape: f32[8,64], index: 4, kind: output, shape index: {2}]
  %5 = xla_tuple %s2, %s3, %s4
  %s6 = sld [smem:[#allocation0]]
  $region38: #{_forward_impl.8} parent=0
    _
  %s8 = ssub.s32 1, %s6
  %s9 = scalar_select 0, %s8, %s6
  // Predicated region
  $region2: #{_forward_impl.8} parent=0 // pred_check
    _
  $region3: #{_forward_impl.8} parent=0 // pred_check_branch
    %11 = sbr.rel (0) target = $region5
  $region4: #{_forward_impl.8} parent=0 // pred_region
    %s12 = sadd.s32 0, 0
    %p13 = scmp.lt.s32.totalorder %s12, 0
    %s14 = scalar_select %p13, %s12, 0
    %s15 = smul.addr %s14, 4
    %s16 = smul.addr %s15, 4
    %s17 = scalar_lea.vmem %s0, %s16
    %s18 = sadd.s32 0, 0
  $region5: #{_forward_impl.8} parent=0 // pred_fallthru
    _
  // Predicated region
  $region6: #{_forward_impl.8} parent=0 // pred_check
    _
  $region7: #{_forward_impl.8} parent=0 // pred_check_branch
    %20 = sbr.rel (0) target = $region9
  $region8: #{_forward_impl.8} parent=0 // pred_region
    _
  $region9: #{_forward_impl.8} parent=0 // pred_fallthru
    _
  %s21 = sadd.s32 0, 0
  %p22 = scmp.lt.s32.totalorder %s21, 0
  %s23 = scalar_select %p22, %s21, 0
  %s24 = smul.addr %s23, 4
  %s25 = smul.addr %s24, 4
  %s26 = scalar_lea.vmem %s0, %s25
  %s27 = sadd.s32 0, 0
  %p28 = scmp.lt.s32.totalorder %s27, 0
  %s29 = scalar_select %p28, %s27, 0
  %s30 = smul.addr %s29, 4
  %s31 = scalar_lea.vmem %s2, %s30
  %s32 = sadd.s32 0, 0
  %p33 = scmp.lt.s32.totalorder %s32, 0
  %s34 = scalar_select %p33, %s32, 0
  %s35 = smul.addr %s34, 4
  %s36 = smul.addr %s35, 4
  %s37 = scalar_lea.vmem %s0, %s36
  %s38 = sadd.s32 0, 0
  %s39 = sadd.s32 0, 0
  %p40 = scmp.lt.s32.totalorder %s39, 0
  %s41 = scalar_select %p40, %s39, 0
  %s42 = smul.addr %s41, 4
  %s43 = scalar_lea.vmem %s2, %s42
  %s44 = sadd.s32 0, 0
  %p46 = scmp.eq.s32.totalorder 0, 0
  // Predicated region
  $region10: #{_forward_impl.8} parent=0 // pred_check
    %p47 = pneg %p46
  $region11: #{_forward_impl.8} parent=0 // pred_check_branch
    %49 = sbr.rel (%p47) target = $region13
  $region12: #{_forward_impl.8} parent=0 // pred_region
    %vm50 = vcmask 523264
    %51 = vst.msk [vmem:[%s3] sm:$0xff] %vm50, 0.0
    %52 = vst.msk [vmem:[%s4] sm:$0xff] %vm50, 0.0
  $region13: #{_forward_impl.8} parent=0 // pred_fallthru
    _
  %v53 = vld [vmem:[%s37] sm:$0xff]
  %v54 = vld [vmem:[%s37 + $0x8] sm:$0xff]
  %v55 = vld [vmem:[%s1] sm:$0xf]
  %v56 = vld [vmem:[%s1 + $0x4] sm:$0xf]
  %v57 = vld [vmem:[%s1 + $0x8] sm:$0xf]
  %v58 = vld [vmem:[%s1 + $0xc] sm:$0xf]
  %v59 = vld [vmem:[%s1 + $0x10] sm:$0xf]
  %v60 = vld [vmem:[%s1 + $0x14] sm:$0xf]
  %v61 = vld [vmem:[%s1 + $0x18] sm:$0xf]
  %v62 = vld [vmem:[%s1 + $0x1c] sm:$0xf]
  %v63 = vld [vmem:[%s1 + $0x20] sm:$0xf]
  %v64 = vld [vmem:[%s1 + $0x24] sm:$0xf]
  %v65 = vld [vmem:[%s1 + $0x28] sm:$0xf]
  %v66 = vld [vmem:[%s1 + $0x2c] sm:$0xf]
  %v67 = vld [vmem:[%s1 + $0x30] sm:$0xf]
  %v68 = vld [vmem:[%s1 + $0x34] sm:$0xf]
  %v69 = vld [vmem:[%s1 + $0x38] sm:$0xf]
  %v70 = vld [vmem:[%s1 + $0x3c] sm:$0xf]
  %v71 = vld [vmem:[%s1 + $0x40] sm:$0xf]
  %v72 = vld [vmem:[%s1 + $0x44] sm:$0xf]
  %v73 = vld [vmem:[%s1 + $0x48] sm:$0xf]
  %v74 = vld [vmem:[%s1 + $0x4c] sm:$0xf]
  %v75 = vld [vmem:[%s1 + $0x50] sm:$0xf]
  %v76 = vld [vmem:[%s1 + $0x54] sm:$0xf]
  %v77 = vld [vmem:[%s1 + $0x58] sm:$0xf]
  %v78 = vld [vmem:[%s1 + $0x5c] sm:$0xf]
  %v79 = vld [vmem:[%s1 + $0x60] sm:$0xf]
  %v80 = vld [vmem:[%s1 + $0x64] sm:$0xf]
  %v81 = vld [vmem:[%s1 + $0x68] sm:$0xf]
  %v82 = vld [vmem:[%s1 + $0x6c] sm:$0xf]
  %v83 = vld [vmem:[%s1 + $0x70] sm:$0xf]
  %v84 = vld [vmem:[%s1 + $0x74] sm:$0xf]
  %v85 = vld [vmem:[%s1 + $0x78] sm:$0xf]
  %v86 = vld [vmem:[%s1 + $0x7c] sm:$0xf]
  %v87 = vld [vmem:[%s1 + $0x80] sm:$0xf]
  %v88 = vld [vmem:[%s1 + $0x84] sm:$0xf]
  %v89 = vld [vmem:[%s1 + $0x88] sm:$0xf]
  %v90 = vld [vmem:[%s1 + $0x8c] sm:$0xf]
  %v91 = vld [vmem:[%s1 + $0x90] sm:$0xf]
  %v92 = vld [vmem:[%s1 + $0x94] sm:$0xf]
  %v93 = vld [vmem:[%s1 + $0x98] sm:$0xf]
  %v94 = vld [vmem:[%s1 + $0x9c] sm:$0xf]
  %v95 = vld [vmem:[%s1 + $0xa0] sm:$0xf]
  %v96 = vld [vmem:[%s1 + $0xa4] sm:$0xf]
  %v97 = vld [vmem:[%s1 + $0xa8] sm:$0xf]
  %v98 = vld [vmem:[%s1 + $0xac] sm:$0xf]
  %v99 = vld [vmem:[%s1 + $0xb0] sm:$0xf]
  %v100 = vld [vmem:[%s1 + $0xb4] sm:$0xf]
  %v101 = vld [vmem:[%s1 + $0xb8] sm:$0xf]
  %v102 = vld [vmem:[%s1 + $0xbc] sm:$0xf]
  %v103 = vld [vmem:[%s1 + $0xc0] sm:$0xf]
  %v104 = vld [vmem:[%s1 + $0xc4] sm:$0xf]
  %v105 = vld [vmem:[%s1 + $0xc8] sm:$0xf]
  %v106 = vld [vmem:[%s1 + $0xcc] sm:$0xf]
  %v107 = vld [vmem:[%s1 + $0xd0] sm:$0xf]
  %v108 = vld [vmem:[%s1 + $0xd4] sm:$0xf]
  %v109 = vld [vmem:[%s1 + $0xd8] sm:$0xf]
  %v110 = vld [vmem:[%s1 + $0xdc] sm:$0xf]
  %v111 = vld [vmem:[%s1 + $0xe0] sm:$0xf]
  %v112 = vld [vmem:[%s1 + $0xe4] sm:$0xf]
  %v113 = vld [vmem:[%s1 + $0xe8] sm:$0xf]
  %v114 = vld [vmem:[%s1 + $0xec] sm:$0xf]
  %v115 = vld [vmem:[%s1 + $0xf0] sm:$0xf]
  %v116 = vld [vmem:[%s1 + $0xf4] sm:$0xf]
  %v117 = vld [vmem:[%s1 + $0xf8] sm:$0xf]
  %v118 = vld [vmem:[%s1 + $0xfc] sm:$0xf]
  %v121 = vunpack.c.l.b16 %v53
  %v122 = vunpack.c.h.b16 %v53
  %v123 = vunpack.c.l.b16 %v54
  %v124 = vunpack.c.h.b16 %v54
  %v125 = vpack.c.b16 %v121, %v121
  %v126 = vpack.c.b16 %v122, %v122
  %v127 = vpack.c.b16 %v123, %v123
  %v128 = vpack.c.b16 %v124, %v124
  %v197 = vunpack.c.l.b16 %v55
  %v198 = vunpack.c.l.b16 %v56
  %v199 = vunpack.c.l.b16 %v57
  %v200 = vunpack.c.l.b16 %v58
  %v201 = vunpack.c.l.b16 %v59
  %v202 = vunpack.c.l.b16 %v60
  %v203 = vunpack.c.l.b16 %v61
  %v204 = vunpack.c.l.b16 %v62
  %v205 = vunpack.c.l.b16 %v63
  %v206 = vunpack.c.l.b16 %v64
  %v207 = vunpack.c.l.b16 %v65
  %v208 = vunpack.c.l.b16 %v66
  %v209 = vunpack.c.l.b16 %v67
  %v210 = vunpack.c.l.b16 %v68
  %v211 = vunpack.c.l.b16 %v69
  %v212 = vunpack.c.l.b16 %v70
  %v213 = vunpack.c.l.b16 %v71
  %v214 = vunpack.c.l.b16 %v72
  %v215 = vunpack.c.l.b16 %v73
  %v216 = vunpack.c.l.b16 %v74
  %v217 = vunpack.c.l.b16 %v75
  %v218 = vunpack.c.l.b16 %v76
  %v219 = vunpack.c.l.b16 %v77
  %v220 = vunpack.c.l.b16 %v78
  %v221 = vunpack.c.l.b16 %v79
  %v222 = vunpack.c.l.b16 %v80
  %v223 = vunpack.c.l.b16 %v81
  %v224 = vunpack.c.l.b16 %v82
  %v225 = vunpack.c.l.b16 %v83
  %v226 = vunpack.c.l.b16 %v84
  %v227 = vunpack.c.l.b16 %v85
  %v228 = vunpack.c.l.b16 %v86
  %v229 = vunpack.c.l.b16 %v87
  %v230 = vunpack.c.l.b16 %v88
  %v231 = vunpack.c.l.b16 %v89
  %v232 = vunpack.c.l.b16 %v90
  %v233 = vunpack.c.l.b16 %v91
  %v234 = vunpack.c.l.b16 %v92
  %v235 = vunpack.c.l.b16 %v93
  %v236 = vunpack.c.l.b16 %v94
  %v237 = vunpack.c.l.b16 %v95
  %v238 = vunpack.c.l.b16 %v96
  %v239 = vunpack.c.l.b16 %v97
  %v240 = vunpack.c.l.b16 %v98
  %v241 = vunpack.c.l.b16 %v99
  %v242 = vunpack.c.l.b16 %v100
  %v243 = vunpack.c.l.b16 %v101
  %v244 = vunpack.c.l.b16 %v102
  %v245 = vunpack.c.l.b16 %v103
  %v246 = vunpack.c.l.b16 %v104
  %v247 = vunpack.c.l.b16 %v105
  %v248 = vunpack.c.l.b16 %v106
  %v249 = vunpack.c.l.b16 %v107
  %v250 = vunpack.c.l.b16 %v108
  %v251 = vunpack.c.l.b16 %v109
  %v252 = vunpack.c.l.b16 %v110
  %v253 = vunpack.c.l.b16 %v111
  %v254 = vunpack.c.l.b16 %v112
  %v255 = vunpack.c.l.b16 %v113
  %v256 = vunpack.c.l.b16 %v114
  %v257 = vunpack.c.l.b16 %v115
  %v258 = vunpack.c.l.b16 %v116
  %v259 = vunpack.c.l.b16 %v117
  %v260 = vunpack.c.l.b16 %v118
  %v261 = vpack.c.b16 %v198, %v197
  %v262 = vpack.c.b16 %v200, %v199
  %v263 = vpack.c.b16 %v202, %v201
  %v264 = vpack.c.b16 %v204, %v203
  %v265 = vpack.c.b16 %v206, %v205
  %v266 = vpack.c.b16 %v208, %v207
  %v267 = vpack.c.b16 %v210, %v209
  %v268 = vpack.c.b16 %v212, %v211
  %v269 = vpack.c.b16 %v214, %v213
  %v270 = vpack.c.b16 %v216, %v215
  %v271 = vpack.c.b16 %v218, %v217
  %v272 = vpack.c.b16 %v220, %v219
  %v273 = vpack.c.b16 %v222, %v221
  %v274 = vpack.c.b16 %v224, %v223
  %v275 = vpack.c.b16 %v226, %v225
  %v276 = vpack.c.b16 %v228, %v227
  %v277 = vpack.c.b16 %v230, %v229
  %v278 = vpack.c.b16 %v232, %v231
  %v279 = vpack.c.b16 %v234, %v233
  %v280 = vpack.c.b16 %v236, %v235
  %v281 = vpack.c.b16 %v238, %v237
  %v282 = vpack.c.b16 %v240, %v239
  %v283 = vpack.c.b16 %v242, %v241
  %v284 = vpack.c.b16 %v244, %v243
  %v285 = vpack.c.b16 %v246, %v245
  %v286 = vpack.c.b16 %v248, %v247
  %v287 = vpack.c.b16 %v250, %v249
  %v288 = vpack.c.b16 %v252, %v251
  %v289 = vpack.c.b16 %v254, %v253
  %v290 = vpack.c.b16 %v256, %v255
  %v291 = vpack.c.b16 %v258, %v257
  %v292 = vpack.c.b16 %v260, %v259
  %325 = vmatprep.subr.bf16.mxu0 0
  %326 = vmatpush1.bf16.msra.mxu0 %v268
  %327 = vmatprep.subr.bf16.mxu0 0
  %328 = vmatpush1.bf16.msra.mxu0 %v267
  %329 = vmatprep.subr.bf16.mxu0 0
  %330 = vmatpush1.bf16.msra.mxu0 %v266
  %331 = vmatprep.subr.bf16.mxu0 0
  %332 = vmatpush1.bf16.msra.mxu0 %v265
  %333 = vmatprep.subr.bf16.mxu0 0
  %334 = vmatpush1.bf16.msra.mxu0 %v264
  %335 = vmatprep.subr.bf16.mxu0 0
  %336 = vmatpush1.bf16.msra.mxu0 %v263
  %337 = vmatprep.subr.bf16.mxu0 0
  %338 = vmatpush1.bf16.msra.mxu0 %v262
  %339 = vmatprep.subr.bf16.mxu0 0
  %340 = vmatpush1.bf16.msra.mxu0 %v261
  %341 = vmatprep.subr.bf16.mxu0 0
  %342 = vmatpush2.bf16.msra.mxu0 %v276
  %343 = vmatprep.subr.bf16.mxu0 0
  %344 = vmatpush2.bf16.msra.mxu0 %v275
  %345 = vmatprep.subr.bf16.mxu0 0
  %346 = vmatpush2.bf16.msra.mxu0 %v274
  %347 = vmatprep.subr.bf16.mxu0 0
  %348 = vmatpush2.bf16.msra.mxu0 %v273
  %349 = vmatprep.subr.bf16.mxu0 0
  %350 = vmatpush2.bf16.msra.mxu0 %v272
  %351 = vmatprep.subr.bf16.mxu0 0
  %352 = vmatpush2.bf16.msra.mxu0 %v271
  %353 = vmatprep.subr.bf16.mxu0 0
  %354 = vmatpush2.bf16.msra.mxu0 %v270
  %355 = vmatprep.subr.bf16.mxu0 0
  %356 = vmatpush2.bf16.msra.mxu0 %v269
  %357 = vmatprep.mubr.bf16.mxu0 %v126
  %358 = vmatmul.mubr.bf16.gmra.mxu0 %v125
  %v359 = vpop.f32.mrf.mxu0
  %v360 = vadd.f32 0.0, %v359
  %v361 = vpop.f32.mrf.mxu0
  %v362 = vpop.f32.mrf.mxu0
  %v363 = vpop.f32.mrf.mxu0
  %364 = vdwg.mxu0
  %365 = vmatprep.subr.bf16.mxu0 0
  %366 = vmatpush1.bf16.msra.mxu0 %v284
  %367 = vmatprep.subr.bf16.mxu0 0
  %368 = vmatpush1.bf16.msra.mxu0 %v283
  %369 = vmatprep.subr.bf16.mxu0 0
  %370 = vmatpush1.bf16.msra.mxu0 %v282
  %371 = vmatprep.subr.bf16.mxu0 0
  %372 = vmatpush1.bf16.msra.mxu0 %v281
  %373 = vmatprep.subr.bf16.mxu0 0
  %374 = vmatpush1.bf16.msra.mxu0 %v280
  %375 = vmatprep.subr.bf16.mxu0 0
  %376 = vmatpush1.bf16.msra.mxu0 %v279
  %377 = vmatprep.subr.bf16.mxu0 0
  %378 = vmatpush1.bf16.msra.mxu0 %v278
  %379 = vmatprep.subr.bf16.mxu0 0
  %380 = vmatpush1.bf16.msra.mxu0 %v277
  %381 = vmatprep.subr.bf16.mxu0 0
  %382 = vmatpush2.bf16.msra.mxu0 %v292
  %383 = vmatprep.subr.bf16.mxu0 0
  %384 = vmatpush2.bf16.msra.mxu0 %v291
  %385 = vmatprep.subr.bf16.mxu0 0
  %386 = vmatpush2.bf16.msra.mxu0 %v290
  %387 = vmatprep.subr.bf16.mxu0 0
  %388 = vmatpush2.bf16.msra.mxu0 %v289
  %389 = vmatprep.subr.bf16.mxu0 0
  %390 = vmatpush2.bf16.msra.mxu0 %v288
  %391 = vmatprep.subr.bf16.mxu0 0
  %392 = vmatpush2.bf16.msra.mxu0 %v287
  %393 = vmatprep.subr.bf16.mxu0 0
  %394 = vmatpush2.bf16.msra.mxu0 %v286
  %395 = vmatprep.subr.bf16.mxu0 0
  %396 = vmatpush2.bf16.msra.mxu0 %v285
  %397 = vmatprep.mubr.bf16.mxu0 %v128
  %398 = vmatmul.mubr.bf16.gmra.mxu0 %v127
  %v399 = vpop.f32.mrf.mxu0
  %v400 = vadd.f32 %v360, %v399
  %v401 = vpop.f32.mrf.mxu0
  %v402 = vpop.f32.mrf.mxu0
  %v403 = vpop.f32.mrf.mxu0
  %404 = vdwg.mxu0
  %v405 = vpack.c.bf16 %v400, %v400
  %vm406 = vcmask 519168
  %407 = vst.msk [vmem:[%s43] sm:$0xf] %vm406, %v405
  %v408 = vld [vmem:[%s3] sm:$0xff]
  %v409 = vadd.f32 %v400, 0.0
  %v410 = vadd.f32 %v408, %v409
  %vm411 = vcmask 523264
  %412 = vst.msk [vmem:[%s3] sm:$0xff] %vm411, %v410
  %v413 = vld [vmem:[%s4] sm:$0xff]
  %v414 = vmul.f32 %v400, %v400
  %v415 = vadd.f32 %v414, 0.0
  %v416 = vadd.f32 %v413, %v415
  %417 = vst.msk [vmem:[%s4] sm:$0xff] %vm411, %v416
  %s418 = sadd.s32 0, 0
  %p419 = scmp.lt.s32.totalorder %s418, 0
  %s420 = scalar_select %p419, %s418, 0
  %s421 = smul.addr %s420, 4
  %s422 = scalar_lea.vmem %s2, %s421
  // Predicated region
  $region14: #{_forward_impl.8} parent=0 // pred_check
    _
  $region15: #{_forward_impl.8} parent=0 // pred_check_branch
    %424 = sbr.rel (0) target = $region17
  $region16: #{_forward_impl.8} parent=0 // pred_region
    %s425 = sadd.s32 0, 0
  $region17: #{_forward_impl.8} parent=0 // pred_fallthru
    _
  // Predicated region
  $region18: #{_forward_impl.8} parent=0 // pred_check
    _
  $region19: #{_forward_impl.8} parent=0 // pred_check_branch
    %427 = sbr.rel (0) target = $region21
  $region20: #{_forward_impl.8} parent=0 // pred_region
    _
  $region21: #{_forward_impl.8} parent=0 // pred_fallthru
    _
  // Predicated region
  $region22: #{_forward_impl.8} parent=0 // pred_check
    _
  $region23: #{_forward_impl.8} parent=0 // pred_check_branch
    %429 = sbr.rel (0) target = $region25
  $region24: #{_forward_impl.8} parent=0 // pred_region
    _
  $region25: #{_forward_impl.8} parent=0 // pred_fallthru
    _
  // Predicated region
  $region26: #{_forward_impl.8} parent=0 // pred_check
    _
  $region27: #{_forward_impl.8} parent=0 // pred_check_branch
    %431 = sbr.rel (0) target = $region29
  $region28: #{_forward_impl.8} parent=0 // pred_region
    %s432 = sadd.s32 0, 0
    %p433 = scmp.lt.s32.totalorder %s432, 0
    %s434 = scalar_select %p433, %s432, 0
    %s435 = smul.addr %s434, 4
    %s436 = scalar_lea.vmem %s2, %s435
  $region29: #{_forward_impl.8} parent=0 // pred_fallthru
    _
  // Predicated region
  $region30: #{_forward_impl.8} parent=0 // pred_check
    _
  $region31: #{_forward_impl.8} parent=0 // pred_check_branch
    %438 = sbr.rel (0) target = $region33
  $region32: #{_forward_impl.8} parent=0 // pred_region
    _
  $region33: #{_forward_impl.8} parent=0 // pred_fallthru
    _
  // Predicated region
  $region34: #{_forward_impl.8} parent=0 // pred_check
    _
  $region35: #{_forward_impl.8} parent=0 // pred_check_branch
    %440 = sbr.rel (0) target = $region37
  $region36: #{_forward_impl.8} parent=0 // pred_region
    _
  $region37: #{_forward_impl.8} parent=0 // pred_fallthru
    _

// kernel: _forward_impl.9
$region0: #{_forward_impl.9}
  #allocation0 [shape = 'u32[]', space=smem, size = 0x4, offset = 0x4, fixed_abs, tag = 'smem constant byte address 0x4 - core index']
  #allocation1 [shape = 'u32[144,128]{1,0:T(1,128)}', space=vmem, size = 0x12000, scoped, tag = 'internal scratch']
  %s0 = inlined_call_operand.vmem [shape: bf16[8,1024], index: 0, kind: input, shape index: {}]
  %s1 = inlined_call_operand.vmem [shape: bf16[1024,1], index: 1, kind: input, shape index: {}]
  %s2 = inlined_call_operand.vmem [shape: bf16[8,1], index: 2, kind: output, shape index: {}]
  %s3 = sld [smem:[#allocation0]]
  $region18: #{_forward_impl.9} parent=0
    _
  %s5 = ssub.s32 1, %s3
  %s6 = scalar_select 0, %s5, %s3
  // Predicated region
  $region2: #{_forward_impl.9} parent=0 // pred_check
    _
  $region3: #{_forward_impl.9} parent=0 // pred_check_branch
    %8 = sbr.rel (0) target = $region5
  $region4: #{_forward_impl.9} parent=0 // pred_region
    _
  $region5: #{_forward_impl.9} parent=0 // pred_fallthru
    _
  // Predicated region
  $region6: #{_forward_impl.9} parent=0 // pred_check
    _
  $region7: #{_forward_impl.9} parent=0 // pred_check_branch
    %10 = sbr.rel (0) target = $region9
  $region8: #{_forward_impl.9} parent=0 // pred_region
    _
  $region9: #{_forward_impl.9} parent=0 // pred_fallthru
    _
  %v12 = vld [vmem:[%s0] sm:$0xff]
  %v13 = vld [vmem:[%s0 + $0x8] sm:$0xff]
  %v14 = vld [vmem:[%s0 + $0x10] sm:$0xff]
  %v15 = vld [vmem:[%s0 + $0x18] sm:$0xff]
  %v16 = vld [vmem:[%s1] sm:$0xf]
  %v17 = vld [vmem:[%s1 + $0x4] sm:$0xf]
  %v18 = vld [vmem:[%s1 + $0x8] sm:$0xf]
  %v19 = vld [vmem:[%s1 + $0xc] sm:$0xf]
  %v20 = vld [vmem:[%s1 + $0x10] sm:$0xf]
  %v21 = vld [vmem:[%s1 + $0x14] sm:$0xf]
  %v22 = vld [vmem:[%s1 + $0x18] sm:$0xf]
  %v23 = vld [vmem:[%s1 + $0x1c] sm:$0xf]
  %v24 = vld [vmem:[%s1 + $0x20] sm:$0xf]
  %v25 = vld [vmem:[%s1 + $0x24] sm:$0xf]
  %v26 = vld [vmem:[%s1 + $0x28] sm:$0xf]
  %v27 = vld [vmem:[%s1 + $0x2c] sm:$0xf]
  %v28 = vld [vmem:[%s1 + $0x30] sm:$0xf]
  %v29 = vld [vmem:[%s1 + $0x34] sm:$0xf]
  %v30 = vld [vmem:[%s1 + $0x38] sm:$0xf]
  %v31 = vld [vmem:[%s1 + $0x3c] sm:$0xf]
  %v32 = vld [vmem:[%s1 + $0x40] sm:$0xf]
  %v33 = vld [vmem:[%s1 + $0x44] sm:$0xf]
  %v34 = vld [vmem:[%s1 + $0x48] sm:$0xf]
  %v35 = vld [vmem:[%s1 + $0x4c] sm:$0xf]
  %v36 = vld [vmem:[%s1 + $0x50] sm:$0xf]
  %v37 = vld [vmem:[%s1 + $0x54] sm:$0xf]
  %v38 = vld [vmem:[%s1 + $0x58] sm:$0xf]
  %v39 = vld [vmem:[%s1 + $0x5c] sm:$0xf]
  %v40 = vld [vmem:[%s1 + $0x60] sm:$0xf]
  %v41 = vld [vmem:[%s1 + $0x64] sm:$0xf]
  %v42 = vld [vmem:[%s1 + $0x68] sm:$0xf]
  %v43 = vld [vmem:[%s1 + $0x6c] sm:$0xf]
  %v44 = vld [vmem:[%s1 + $0x70] sm:$0xf]
  %v45 = vld [vmem:[%s1 + $0x74] sm:$0xf]
  %v46 = vld [vmem:[%s1 + $0x78] sm:$0xf]
  %v47 = vld [vmem:[%s1 + $0x7c] sm:$0xf]
  %v48 = vld [vmem:[%s1 + $0x80] sm:$0xf]
  %v49 = vld [vmem:[%s1 + $0x84] sm:$0xf]
  %v50 = vld [vmem:[%s1 + $0x88] sm:$0xf]
  %v51 = vld [vmem:[%s1 + $0x8c] sm:$0xf]
  %v52 = vld [vmem:[%s1 + $0x90] sm:$0xf]
  %v53 = vld [vmem:[%s1 + $0x94] sm:$0xf]
  %v54 = vld [vmem:[%s1 + $0x98] sm:$0xf]
  %v55 = vld [vmem:[%s1 + $0x9c] sm:$0xf]
  %v56 = vld [vmem:[%s1 + $0xa0] sm:$0xf]
  %v57 = vld [vmem:[%s1 + $0xa4] sm:$0xf]
  %v58 = vld [vmem:[%s1 + $0xa8] sm:$0xf]
  %v59 = vld [vmem:[%s1 + $0xac] sm:$0xf]
  %v60 = vld [vmem:[%s1 + $0xb0] sm:$0xf]
  %v61 = vld [vmem:[%s1 + $0xb4] sm:$0xf]
  %v62 = vld [vmem:[%s1 + $0xb8] sm:$0xf]
  %v63 = vld [vmem:[%s1 + $0xbc] sm:$0xf]
  %v64 = vld [vmem:[%s1 + $0xc0] sm:$0xf]
  %v65 = vld [vmem:[%s1 + $0xc4] sm:$0xf]
  %v66 = vld [vmem:[%s1 + $0xc8] sm:$0xf]
  %v67 = vld [vmem:[%s1 + $0xcc] sm:$0xf]
  %v68 = vld [vmem:[%s1 + $0xd0] sm:$0xf]
  %v69 = vld [vmem:[%s1 + $0xd4] sm:$0xf]
  %v70 = vld [vmem:[%s1 + $0xd8] sm:$0xf]
  %v71 = vld [vmem:[%s1 + $0xdc] sm:$0xf]
  %v72 = vld [vmem:[%s1 + $0xe0] sm:$0xf]
  %v73 = vld [vmem:[%s1 + $0xe4] sm:$0xf]
  %v74 = vld [vmem:[%s1 + $0xe8] sm:$0xf]
  %v75 = vld [vmem:[%s1 + $0xec] sm:$0xf]
  %v76 = vld [vmem:[%s1 + $0xf0] sm:$0xf]
  %v77 = vld [vmem:[%s1 + $0xf4] sm:$0xf]
  %v78 = vld [vmem:[%s1 + $0xf8] sm:$0xf]
  %v79 = vld [vmem:[%s1 + $0xfc] sm:$0xf]
  %v80 = vld [vmem:[%s1 + $0x100] sm:$0xf]
  %v81 = vld [vmem:[%s1 + $0x104] sm:$0xf]
  %v82 = vld [vmem:[%s1 + $0x108] sm:$0xf]
  %v83 = vld [vmem:[%s1 + $0x10c] sm:$0xf]
  %v84 = vld [vmem:[%s1 + $0x110] sm:$0xf]
  %v85 = vld [vmem:[%s1 + $0x114] sm:$0xf]
  %v86 = vld [vmem:[%s1 + $0x118] sm:$0xf]
  %v87 = vld [vmem:[%s1 + $0x11c] sm:$0xf]
  %v88 = vld [vmem:[%s1 + $0x120] sm:$0xf]
  %v89 = vld [vmem:[%s1 + $0x124] sm:$0xf]
  %v90 = vld [vmem:[%s1 + $0x128] sm:$0xf]
  %v91 = vld [vmem:[%s1 + $0x12c] sm:$0xf]
  %v92 = vld [vmem:[%s1 + $0x130] sm:$0xf]
  %v93 = vld [vmem:[%s1 + $0x134] sm:$0xf]
  %v94 = vld [vmem:[%s1 + $0x138] sm:$0xf]
  %v95 = vld [vmem:[%s1 + $0x13c] sm:$0xf]
  %v96 = vld [vmem:[%s1 + $0x140] sm:$0xf]
  %v97 = vld [vmem:[%s1 + $0x144] sm:$0xf]
  %v98 = vld [vmem:[%s1 + $0x148] sm:$0xf]
  %v99 = vld [vmem:[%s1 + $0x14c] sm:$0xf]
  %v100 = vld [vmem:[%s1 + $0x150] sm:$0xf]
  %v101 = vld [vmem:[%s1 + $0x154] sm:$0xf]
  %v102 = vld [vmem:[%s1 + $0x158] sm:$0xf]
  %v103 = vld [vmem:[%s1 + $0x15c] sm:$0xf]
  %v104 = vld [vmem:[%s1 + $0x160] sm:$0xf]
  %v105 = vld [vmem:[%s1 + $0x164] sm:$0xf]
  %v106 = vld [vmem:[%s1 + $0x168] sm:$0xf]
  %v107 = vld [vmem:[%s1 + $0x16c] sm:$0xf]
  %v108 = vld [vmem:[%s1 + $0x170] sm:$0xf]
  %v109 = vld [vmem:[%s1 + $0x174] sm:$0xf]
  %v110 = vld [vmem:[%s1 + $0x178] sm:$0xf]
  %v111 = vld [vmem:[%s1 + $0x17c] sm:$0xf]
  %v112 = vld [vmem:[%s1 + $0x180] sm:$0xf]
  %v113 = vld [vmem:[%s1 + $0x184] sm:$0xf]
  %v114 = vld [vmem:[%s1 + $0x188] sm:$0xf]
  %v115 = vld [vmem:[%s1 + $0x18c] sm:$0xf]
  %v116 = vld [vmem:[%s1 + $0x190] sm:$0xf]
  %v117 = vld [vmem:[%s1 + $0x194] sm:$0xf]
  %v118 = vld [vmem:[%s1 + $0x198] sm:$0xf]
  %v119 = vld [vmem:[%s1 + $0x19c] sm:$0xf]
  %v120 = vld [vmem:[%s1 + $0x1a0] sm:$0xf]
  %v121 = vld [vmem:[%s1 + $0x1a4] sm:$0xf]
  %v122 = vld [vmem:[%s1 + $0x1a8] sm:$0xf]
  %v123 = vld [vmem:[%s1 + $0x1ac] sm:$0xf]
  %v124 = vld [vmem:[%s1 + $0x1b0] sm:$0xf]
  %v125 = vld [vmem:[%s1 + $0x1b4] sm:$0xf]
  %v126 = vld [vmem:[%s1 + $0x1b8] sm:$0xf]
  %v127 = vld [vmem:[%s1 + $0x1bc] sm:$0xf]
  %v128 = vld [vmem:[%s1 + $0x1c0] sm:$0xf]
  %v129 = vld [vmem:[%s1 + $0x1c4] sm:$0xf]
  %v130 = vld [vmem:[%s1 + $0x1c8] sm:$0xf]
  %v131 = vld [vmem:[%s1 + $0x1cc] sm:$0xf]
  %v132 = vld [vmem:[%s1 + $0x1d0] sm:$0xf]
  %v133 = vld [vmem:[%s1 + $0x1d4] sm:$0xf]
  %v134 = vld [vmem:[%s1 + $0x1d8] sm:$0xf]
  %v135 = vld [vmem:[%s1 + $0x1dc] sm:$0xf]
  %v136 = vld [vmem:[%s1 + $0x1e0] sm:$0xf]
  %v137 = vld [vmem:[%s1 + $0x1e4] sm:$0xf]
  %v138 = vld [vmem:[%s1 + $0x1e8] sm:$0xf]
  %v139 = vld [vmem:[%s1 + $0x1ec] sm:$0xf]
  %v140 = vld [vmem:[%s1 + $0x1f0] sm:$0xf]
  %v141 = vld [vmem:[%s1 + $0x1f4] sm:$0xf]
  %v142 = vld [vmem:[%s1 + $0x1f8] sm:$0xf]
  %v143 = vld [vmem:[%s1 + $0x1fc] sm:$0xf]
  %v148 = vunpack.c.l.b16 %v12
  %v149 = vunpack.c.h.b16 %v12
  %v150 = vunpack.c.l.b16 %v13
  %v151 = vunpack.c.h.b16 %v13
  %v152 = vunpack.c.l.b16 %v14
  %v153 = vunpack.c.h.b16 %v14
  %v154 = vunpack.c.l.b16 %v15
  %v155 = vunpack.c.h.b16 %v15
  %v156 = vpack.c.b16 %v148, %v148
  %v157 = vpack.c.b16 %v149, %v149
  %v158 = vpack.c.b16 %v150, %v150
  %v159 = vpack.c.b16 %v151, %v151
  %v160 = vpack.c.b16 %v152, %v152
  %v161 = vpack.c.b16 %v153, %v153
  %v162 = vpack.c.b16 %v154, %v154
  %v163 = vpack.c.b16 %v155, %v155
  %v300 = vunpack.c.l.b16 %v16
  %v301 = vunpack.c.l.b16 %v17
  %v302 = vunpack.c.l.b16 %v18
  %v303 = vunpack.c.l.b16 %v19
  %v304 = vunpack.c.l.b16 %v20
  %v305 = vunpack.c.l.b16 %v21
  %v306 = vunpack.c.l.b16 %v22
  %v307 = vunpack.c.l.b16 %v23
  %v308 = vunpack.c.l.b16 %v24
  %v309 = vunpack.c.l.b16 %v25
  %v310 = vunpack.c.l.b16 %v26
  %v311 = vunpack.c.l.b16 %v27
  %v312 = vunpack.c.l.b16 %v28
  %v313 = vunpack.c.l.b16 %v29
  %v314 = vunpack.c.l.b16 %v30
  %v315 = vunpack.c.l.b16 %v31
  %v316 = vunpack.c.l.b16 %v32
  %v317 = vunpack.c.l.b16 %v33
  %v318 = vunpack.c.l.b16 %v34
  %v319 = vunpack.c.l.b16 %v35
  %v320 = vunpack.c.l.b16 %v36
  %v321 = vunpack.c.l.b16 %v37
  %v322 = vunpack.c.l.b16 %v38
  %v323 = vunpack.c.l.b16 %v39
  %v324 = vunpack.c.l.b16 %v40
  %v325 = vunpack.c.l.b16 %v41
  %v326 = vunpack.c.l.b16 %v42
  %v327 = vunpack.c.l.b16 %v43
  %v328 = vunpack.c.l.b16 %v44
  %v329 = vunpack.c.l.b16 %v45
  %v330 = vunpack.c.l.b16 %v46
  %v331 = vunpack.c.l.b16 %v47
  %v332 = vunpack.c.l.b16 %v48
  %v333 = vunpack.c.l.b16 %v49
  %v334 = vunpack.c.l.b16 %v50
  %v335 = vunpack.c.l.b16 %v51
  %v336 = vunpack.c.l.b16 %v52
  %v337 = vunpack.c.l.b16 %v53
  %v338 = vunpack.c.l.b16 %v54
  %v339 = vunpack.c.l.b16 %v55
  %v340 = vunpack.c.l.b16 %v56
  %v341 = vunpack.c.l.b16 %v57
  %v342 = vunpack.c.l.b16 %v58
  %v343 = vunpack.c.l.b16 %v59
  %v344 = vunpack.c.l.b16 %v60
  %v345 = vunpack.c.l.b16 %v61
  %v346 = vunpack.c.l.b16 %v62
  %v347 = vunpack.c.l.b16 %v63
  %v348 = vunpack.c.l.b16 %v64
  %v349 = vunpack.c.l.b16 %v65
  %v350 = vunpack.c.l.b16 %v66
  %v351 = vunpack.c.l.b16 %v67
  %v352 = vunpack.c.l.b16 %v68
  %v353 = vunpack.c.l.b16 %v69
  %v354 = vunpack.c.l.b16 %v70
  %v355 = vunpack.c.l.b16 %v71
  %v356 = vunpack.c.l.b16 %v72
  %v357 = vunpack.c.l.b16 %v73
  %v358 = vunpack.c.l.b16 %v74
  %v359 = vunpack.c.l.b16 %v75
  %v360 = vunpack.c.l.b16 %v76
  %v361 = vunpack.c.l.b16 %v77
  %v362 = vunpack.c.l.b16 %v78
  %v363 = vunpack.c.l.b16 %v79
  %v364 = vunpack.c.l.b16 %v80
  %v365 = vunpack.c.l.b16 %v81
  %v366 = vunpack.c.l.b16 %v82
  %v367 = vunpack.c.l.b16 %v83
  %v368 = vunpack.c.l.b16 %v84
  %v369 = vunpack.c.l.b16 %v85
  %v370 = vunpack.c.l.b16 %v86
  %v371 = vunpack.c.l.b16 %v87
  %v372 = vunpack.c.l.b16 %v88
  %v373 = vunpack.c.l.b16 %v89
  %v374 = vunpack.c.l.b16 %v90
  %v375 = vunpack.c.l.b16 %v91
  %v376 = vunpack.c.l.b16 %v92
  %v377 = vunpack.c.l.b16 %v93
  %v378 = vunpack.c.l.b16 %v94
  %v379 = vunpack.c.l.b16 %v95
  %v380 = vunpack.c.l.b16 %v96
  %v381 = vunpack.c.l.b16 %v97
  %v382 = vunpack.c.l.b16 %v98
  %v383 = vunpack.c.l.b16 %v99
  %v384 = vunpack.c.l.b16 %v100
  %v385 = vunpack.c.l.b16 %v101
  %v386 = vunpack.c.l.b16 %v102
  %v387 = vunpack.c.l.b16 %v103
  %v388 = vunpack.c.l.b16 %v104
  %v389 = vunpack.c.l.b16 %v105
  %v390 = vunpack.c.l.b16 %v106
  %v391 = vunpack.c.l.b16 %v107
  %v392 = vunpack.c.l.b16 %v108
  %v393 = vunpack.c.l.b16 %v109
  %v394 = vunpack.c.l.b16 %v110
  %v395 = vunpack.c.l.b16 %v111
  %v396 = vunpack.c.l.b16 %v112
  %v397 = vunpack.c.l.b16 %v113
  %v398 = vunpack.c.l.b16 %v114
  %v399 = vunpack.c.l.b16 %v115
  %v400 = vunpack.c.l.b16 %v116
  %v401 = vunpack.c.l.b16 %v117
  %v402 = vunpack.c.l.b16 %v118
  %v403 = vunpack.c.l.b16 %v119
  %v404 = vunpack.c.l.b16 %v120
  %v405 = vunpack.c.l.b16 %v121
  %v406 = vunpack.c.l.b16 %v122
  %v407 = vunpack.c.l.b16 %v123
  %v408 = vunpack.c.l.b16 %v124
  %v409 = vunpack.c.l.b16 %v125
  %v410 = vunpack.c.l.b16 %v126
  %v411 = vunpack.c.l.b16 %v127
  %v412 = vunpack.c.l.b16 %v128
  %v413 = vunpack.c.l.b16 %v129
  %v414 = vunpack.c.l.b16 %v130
  %v415 = vunpack.c.l.b16 %v131
  %v416 = vunpack.c.l.b16 %v132
  %v417 = vunpack.c.l.b16 %v133
  %v418 = vunpack.c.l.b16 %v134
  %v419 = vunpack.c.l.b16 %v135
  %v420 = vunpack.c.l.b16 %v136
  %v421 = vunpack.c.l.b16 %v137
  %v422 = vunpack.c.l.b16 %v138
  %v423 = vunpack.c.l.b16 %v139
  %v424 = vunpack.c.l.b16 %v140
  %v425 = vunpack.c.l.b16 %v141
  %v426 = vunpack.c.l.b16 %v142
  %v427 = vunpack.c.l.b16 %v143
  %v428 = vpack.c.b16 %v301, %v300
  %v429 = vpack.c.b16 %v303, %v302
  %v430 = vpack.c.b16 %v305, %v304
  %v431 = vpack.c.b16 %v307, %v306
  %v432 = vpack.c.b16 %v309, %v308
  %v433 = vpack.c.b16 %v311, %v310
  %v434 = vpack.c.b16 %v313, %v312
  %v435 = vpack.c.b16 %v315, %v314
  %v436 = vpack.c.b16 %v317, %v316
  %v437 = vpack.c.b16 %v319, %v318
  %v438 = vpack.c.b16 %v321, %v320
  %v439 = vpack.c.b16 %v323, %v322
  %v440 = vpack.c.b16 %v325, %v324
  %v441 = vpack.c.b16 %v327, %v326
  %v442 = vpack.c.b16 %v329, %v328
  %v443 = vpack.c.b16 %v331, %v330
  %v444 = vpack.c.b16 %v333, %v332
  %v445 = vpack.c.b16 %v335, %v334
  %v446 = vpack.c.b16 %v337, %v336
  %v447 = vpack.c.b16 %v339, %v338
  %v448 = vpack.c.b16 %v341, %v340
  %v449 = vpack.c.b16 %v343, %v342
  %v450 = vpack.c.b16 %v345, %v344
  %v451 = vpack.c.b16 %v347, %v346
  %v452 = vpack.c.b16 %v349, %v348
  %v453 = vpack.c.b16 %v351, %v350
  %v454 = vpack.c.b16 %v353, %v352
  %v455 = vpack.c.b16 %v355, %v354
  %v456 = vpack.c.b16 %v357, %v356
  %v457 = vpack.c.b16 %v359, %v358
  %v458 = vpack.c.b16 %v361, %v360
  %v459 = vpack.c.b16 %v363, %v362
  %v460 = vpack.c.b16 %v365, %v364
  %v461 = vpack.c.b16 %v367, %v366
  %v462 = vpack.c.b16 %v369, %v368
  %v463 = vpack.c.b16 %v371, %v370
  %v464 = vpack.c.b16 %v373, %v372
  %v465 = vpack.c.b16 %v375, %v374
  %v466 = vpack.c.b16 %v377, %v376
  %v467 = vpack.c.b16 %v379, %v378
  %v468 = vpack.c.b16 %v381, %v380
  %v469 = vpack.c.b16 %v383, %v382
  %v470 = vpack.c.b16 %v385, %v384
  %v471 = vpack.c.b16 %v387, %v386
  %v472 = vpack.c.b16 %v389, %v388
  %v473 = vpack.c.b16 %v391, %v390
  %v474 = vpack.c.b16 %v393, %v392
  %v475 = vpack.c.b16 %v395, %v394
  %v476 = vpack.c.b16 %v397, %v396
  %v477 = vpack.c.b16 %v399, %v398
  %v478 = vpack.c.b16 %v401, %v400
  %v479 = vpack.c.b16 %v403, %v402
  %v480 = vpack.c.b16 %v405, %v404
  %v481 = vpack.c.b16 %v407, %v406
  %v482 = vpack.c.b16 %v409, %v408
  %v483 = vpack.c.b16 %v411, %v410
  %v484 = vpack.c.b16 %v413, %v412
  %v485 = vpack.c.b16 %v415, %v414
  %v486 = vpack.c.b16 %v417, %v416
  %v487 = vpack.c.b16 %v419, %v418
  %v488 = vpack.c.b16 %v421, %v420
  %v489 = vpack.c.b16 %v423, %v422
  %v490 = vpack.c.b16 %v425, %v424
  %v491 = vpack.c.b16 %v427, %v426
  %556 = vmatprep.subr.bf16.mxu0 0
  %557 = vmatpush1.bf16.msra.mxu0 %v435
  %558 = vmatprep.subr.bf16.mxu0 0
  %559 = vmatpush1.bf16.msra.mxu0 %v434
  %560 = vmatprep.subr.bf16.mxu0 0
  %561 = vmatpush1.bf16.msra.mxu0 %v433
  %562 = vmatprep.subr.bf16.mxu0 0
  %563 = vmatpush1.bf16.msra.mxu0 %v432
  %564 = vmatprep.subr.bf16.mxu0 0
  %565 = vmatpush1.bf16.msra.mxu0 %v431
  %566 = vmatprep.subr.bf16.mxu0 0
  %567 = vmatpush1.bf16.msra.mxu0 %v430
  %568 = vmatprep.subr.bf16.mxu0 0
  %569 = vmatpush1.bf16.msra.mxu0 %v429
  %570 = vmatprep.subr.bf16.mxu0 0
  %571 = vmatpush1.bf16.msra.mxu0 %v428
  %572 = vmatprep.subr.bf16.mxu0 0
  %573 = vmatpush2.bf16.msra.mxu0 %v443
  %574 = vmatprep.subr.bf16.mxu0 0
  %575 = vmatpush2.bf16.msra.mxu0 %v442
  %576 = vmatprep.subr.bf16.mxu0 0
  %577 = vmatpush2.bf16.msra.mxu0 %v441
  %578 = vmatprep.subr.bf16.mxu0 0
  %579 = vmatpush2.bf16.msra.mxu0 %v440
  %580 = vmatprep.subr.bf16.mxu0 0
  %581 = vmatpush2.bf16.msra.mxu0 %v439
  %582 = vmatprep.subr.bf16.mxu0 0
  %583 = vmatpush2.bf16.msra.mxu0 %v438
  %584 = vmatprep.subr.bf16.mxu0 0
  %585 = vmatpush2.bf16.msra.mxu0 %v437
  %586 = vmatprep.subr.bf16.mxu0 0
  %587 = vmatpush2.bf16.msra.mxu0 %v436
  %588 = vmatprep.mubr.bf16.mxu0 %v157
  %589 = vmatmul.mubr.bf16.gmra.mxu0 %v156
  %v590 = vpop.f32.mrf.mxu0
  %v591 = vadd.f32 0.0, %v590
  %v592 = vpop.f32.mrf.mxu0
  %v593 = vpop.f32.mrf.mxu0
  %v594 = vpop.f32.mrf.mxu0
  %595 = vdwg.mxu0
  %596 = vmatprep.subr.bf16.mxu0 0
  %597 = vmatpush1.bf16.msra.mxu0 %v451
  %598 = vmatprep.subr.bf16.mxu0 0
  %599 = vmatpush1.bf16.msra.mxu0 %v450
  %600 = vmatprep.subr.bf16.mxu0 0
  %601 = vmatpush1.bf16.msra.mxu0 %v449
  %602 = vmatprep.subr.bf16.mxu0 0
  %603 = vmatpush1.bf16.msra.mxu0 %v448
  %604 = vmatprep.subr.bf16.mxu0 0
  %605 = vmatpush1.bf16.msra.mxu0 %v447
  %606 = vmatprep.subr.bf16.mxu0 0
  %607 = vmatpush1.bf16.msra.mxu0 %v446
  %608 = vmatprep.subr.bf16.mxu0 0
  %609 = vmatpush1.bf16.msra.mxu0 %v445
  %610 = vmatprep.subr.bf16.mxu0 0
  %611 = vmatpush1.bf16.msra.mxu0 %v444
  %612 = vmatprep.subr.bf16.mxu0 0
  %613 = vmatpush2.bf16.msra.mxu0 %v459
  %614 = vmatprep.subr.bf16.mxu0 0
  %615 = vmatpush2.bf16.msra.mxu0 %v458
  %616 = vmatprep.subr.bf16.mxu0 0
  %617 = vmatpush2.bf16.msra.mxu0 %v457
  %618 = vmatprep.subr.bf16.mxu0 0
  %619 = vmatpush2.bf16.msra.mxu0 %v456
  %620 = vmatprep.subr.bf16.mxu0 0
  %621 = vmatpush2.bf16.msra.mxu0 %v455
  %622 = vmatprep.subr.bf16.mxu0 0
  %623 = vmatpush2.bf16.msra.mxu0 %v454
  %624 = vmatprep.subr.bf16.mxu0 0
  %625 = vmatpush2.bf16.msra.mxu0 %v453
  %626 = vmatprep.subr.bf16.mxu0 0
  %627 = vmatpush2.bf16.msra.mxu0 %v452
  %628 = vmatprep.mubr.bf16.mxu0 %v159
  %629 = vmatmul.mubr.bf16.gmra.mxu0 %v158
  %v630 = vpop.f32.mrf.mxu0
  %v631 = vadd.f32 %v591, %v630
  %v632 = vpop.f32.mrf.mxu0
  %v633 = vpop.f32.mrf.mxu0
  %v634 = vpop.f32.mrf.mxu0
  %635 = vdwg.mxu0
  %636 = vmatprep.subr.bf16.mxu0 0
  %637 = vmatpush1.bf16.msra.mxu0 %v467
  %638 = vmatprep.subr.bf16.mxu0 0
  %639 = vmatpush1.bf16.msra.mxu0 %v466
  %640 = vmatprep.subr.bf16.mxu0 0
  %641 = vmatpush1.bf16.msra.mxu0 %v465
  %642 = vmatprep.subr.bf16.mxu0 0
  %643 = vmatpush1.bf16.msra.mxu0 %v464
  %644 = vmatprep.subr.bf16.mxu0 0
  %645 = vmatpush1.bf16.msra.mxu0 %v463
  %646 = vmatprep.subr.bf16.mxu0 0
  %647 = vmatpush1.bf16.msra.mxu0 %v462
  %648 = vmatprep.subr.bf16.mxu0 0
  %649 = vmatpush1.bf16.msra.mxu0 %v461
  %650 = vmatprep.subr.bf16.mxu0 0
  %651 = vmatpush1.bf16.msra.mxu0 %v460
  %652 = vmatprep.subr.bf16.mxu0 0
  %653 = vmatpush2.bf16.msra.mxu0 %v475
  %654 = vmatprep.subr.bf16.mxu0 0
  %655 = vmatpush2.bf16.msra.mxu0 %v474
  %656 = vmatprep.subr.bf16.mxu0 0
  %657 = vmatpush2.bf16.msra.mxu0 %v473
  %658 = vmatprep.subr.bf16.mxu0 0
  %659 = vmatpush2.bf16.msra.mxu0 %v472
  %660 = vmatprep.subr.bf16.mxu0 0
  %661 = vmatpush2.bf16.msra.mxu0 %v471
  %662 = vmatprep.subr.bf16.mxu0 0
  %663 = vmatpush2.bf16.msra.mxu0 %v470
  %664 = vmatprep.subr.bf16.mxu0 0
  %665 = vmatpush2.bf16.msra.mxu0 %v469
  %666 = vmatprep.subr.bf16.mxu0 0
  %667 = vmatpush2.bf16.msra.mxu0 %v468
  %668 = vmatprep.mubr.bf16.mxu0 %v161
  %669 = vmatmul.mubr.bf16.gmra.mxu0 %v160
  %v670 = vpop.f32.mrf.mxu0
  %v671 = vadd.f32 %v631, %v670
  %v672 = vpop.f32.mrf.mxu0
  %v673 = vpop.f32.mrf.mxu0
  %v674 = vpop.f32.mrf.mxu0
  %675 = vdwg.mxu0
  %676 = vmatprep.subr.bf16.mxu0 0
  %677 = vmatpush1.bf16.msra.mxu0 %v483
  %678 = vmatprep.subr.bf16.mxu0 0
  %679 = vmatpush1.bf16.msra.mxu0 %v482
  %680 = vmatprep.subr.bf16.mxu0 0
  %681 = vmatpush1.bf16.msra.mxu0 %v481
  %682 = vmatprep.subr.bf16.mxu0 0
  %683 = vmatpush1.bf16.msra.mxu0 %v480
  %684 = vmatprep.subr.bf16.mxu0 0
  %685 = vmatpush1.bf16.msra.mxu0 %v479
  %686 = vmatprep.subr.bf16.mxu0 0
  %687 = vmatpush1.bf16.msra.mxu0 %v478
  %688 = vmatprep.subr.bf16.mxu0 0
  %689 = vmatpush1.bf16.msra.mxu0 %v477
  %690 = vmatprep.subr.bf16.mxu0 0
  %691 = vmatpush1.bf16.msra.mxu0 %v476
  %692 = vmatprep.subr.bf16.mxu0 0
  %693 = vmatpush2.bf16.msra.mxu0 %v491
  %694 = vmatprep.subr.bf16.mxu0 0
  %695 = vmatpush2.bf16.msra.mxu0 %v490
  %696 = vmatprep.subr.bf16.mxu0 0
  %697 = vmatpush2.bf16.msra.mxu0 %v489
  %698 = vmatprep.subr.bf16.mxu0 0
  %699 = vmatpush2.bf16.msra.mxu0 %v488
  %700 = vmatprep.subr.bf16.mxu0 0
  %701 = vmatpush2.bf16.msra.mxu0 %v487
  %702 = vmatprep.subr.bf16.mxu0 0
  %703 = vmatpush2.bf16.msra.mxu0 %v486
  %704 = vmatprep.subr.bf16.mxu0 0
  %705 = vmatpush2.bf16.msra.mxu0 %v485
  %706 = vmatprep.subr.bf16.mxu0 0
  %707 = vmatpush2.bf16.msra.mxu0 %v484
  %708 = vmatprep.mubr.bf16.mxu0 %v163
  %709 = vmatmul.mubr.bf16.gmra.mxu0 %v162
  %v710 = vpop.f32.mrf.mxu0
  %v711 = vadd.f32 %v671, %v710
  %v712 = vpop.f32.mrf.mxu0
  %v713 = vpop.f32.mrf.mxu0
  %v714 = vpop.f32.mrf.mxu0
  %715 = vdwg.mxu0
  %v716 = vxor.u32 %v711, 2147483648
  %v717 = vmul.f32 %v716, 1.442695
  %v718 = vpow.pop %v717
  %v719 = vadd.f32 %v718, 1.0
  %v720 = vrcp.pop %v719
  %v721 = vmul.f32 1.0, %v720
  %v722 = vpack.c.bf16 %v721, %v721
  %vm723 = vcmask 3072
  %724 = vst.msk [vmem:[%s2] sm:$0xf] %vm723, %v722
  // Predicated region
  $region10: #{_forward_impl.9} parent=0 // pred_check
    _
  $region11: #{_forward_impl.9} parent=0 // pred_check_branch
    %726 = sbr.rel (0) target = $region13
  $region12: #{_forward_impl.9} parent=0 // pred_region
    _
  $region13: #{_forward_impl.9} parent=0 // pred_fallthru
    _
  // Predicated region
  $region14: #{_forward_impl.9} parent=0 // pred_check
    _
  $region15: #{_forward_impl.9} parent=0 // pred_check_branch
    %728 = sbr.rel (0) target = $region17
  $region16: #{_forward_impl.9} parent=0 // pred_region
    _
  $region17: #{_forward_impl.9} parent=0 // pred_fallthru
    _

</llo_original>
